<compile_context>
chip_gen: v7x
topology: tpu7x:2x2x1
jax: 0.10.0
libtpu: 0.0.40
codegen_flags: <defaults>
</compile_context>

<pallas_src>
import functools

import numpy as np

import jax
import jax.numpy as jnp
from jax.experimental import pallas as pl
from jax.experimental.pallas import tpu as pltpu


def capsule_kernel(x_ref, w_ref, s_ref, st_ref, out_ref, *, num_capsule,
                   dim_capsule, routings, eps, input_num_capsule):
    # x_ref : (TB*J, Din)  batch tile, input capsules flattened onto rows
    # w_ref : (Din, N*Dc)  shared projection weights (grid-invariant)
    # s_ref : (N*Dc, N)    block indicator S[d, n] = [d // Dc == n]
    # st_ref: (N, N*Dc)    S transposed
    # out_ref: (TB, N*Dc)  output tile (lane dim = full array dim)
    N, Dc, J = num_capsule, dim_capsule, input_num_capsule
    ND = N * Dc
    M = x_ref.shape[0]            # M = TB * J
    TB = M // J

    f32 = jnp.float32
    HI = jax.lax.Precision.HIGHEST

    # ---- projection: one MXU matmul for the whole batch tile ---------------
    u2 = jnp.dot(x_ref[...], w_ref[...], preferred_element_type=f32)  # (TB*J, ND)
    # Split only the leading (major) axis; the N*Dc lane axis stays intact so
    # no cross-lane relayout is needed.
    u = u2.reshape(TB, J, ND)                                         # (TB, J, ND)

    S = s_ref[...]                # (ND, N)
    St = st_ref[...]              # (N, ND)

    def block_sum(x2d):
        # Per-capsule sum over each Dc-wide lane block, on the MXU.
        # HIGHEST precision => effectively exact f32 (0/1 weights).
        return jnp.dot(x2d, S, preferred_element_type=f32, precision=HI)

    def block_bcast(y2d):
        # Broadcast one scalar per capsule across its Dc lanes, on the MXU.
        return jnp.dot(y2d, St, preferred_element_type=f32, precision=HI)

    def squash(s):
        # Module's squash: s / sqrt(sum_k s^2 + eps), per output capsule.
        sq = block_sum(s * s)                                   # (TB, N)
        return s * block_bcast(jax.lax.rsqrt(sq + eps))         # (TB, ND)

    # ---- routing iteration 0 (hoisted): b == 0  =>  c == 1/N exactly -------
    s = jnp.sum(u, axis=1) * (1.0 / N)                          # (TB, ND)
    outputs = squash(s)

    # ---- remaining routing iterations ---------------------------------------
    for _ in range(1, routings):
        # b[b, j, n] = sum_k outputs[b, n, k] * u[b, j, n, k]  (compact layout)
        ou = outputs[:, None, :] * u                            # (TB, J, ND)
        b = block_sum(ou.reshape(M, ND))                        # (TB*J, N)

        # softmax over the capsule axis n, in the compact (TB*J, N) layout
        e = jnp.exp(b - jnp.max(b, axis=-1, keepdims=True))
        c = e / jnp.sum(e, axis=-1, keepdims=True)              # (TB*J, N)

        # broadcast c across Dc lanes once, then weighted sum over j
        cu = block_bcast(c).reshape(TB, J, ND) * u              # (TB, J, ND)
        s = jnp.sum(cu, axis=1)                                 # (TB, ND)
        outputs = squash(s)

    out_ref[...] = outputs.astype(out_ref.dtype)


def _choose_batch_tile(B, J, Din, ND):
    """Pick TB (batch elements per grid step) and the VMEM limit to request.

    * Per-step x DMA target ~4 MiB (amortizes ~0.35us per-step overhead and
      lengthens DMAs); MXU row-fill is irrelevant for this tiny projection.
    * Live-data budget 20 MiB, safe under v7x's 64 MiB physical VMEM
      (v5e/v6e have 128 MiB, so the same budget is safe everywhere).
      Accounting per batch element (f32): u (J*ND) + ~2 routing temporaries
      of the same size (safety factor -> 4x), double-buffered x rows, plus
      small (TB, ND)-sized vectors.
    """
    itemsize = 4
    per_b = (4 * J * ND + 2 * J * Din + 8 * ND) * itemsize
    data_budget = 20 * 1024 * 1024
    tb_vmem = max(1, data_budget // per_b)

    x_row = J * Din * itemsize
    tb_dma = max(1, (4 * 1024 * 1024) // max(x_row, 1))

    tb = min(tb_vmem, tb_dma)

    if tb >= B:
        # Whole batch fits the budget.  For large B split into two blocks so
        # a dual-TensorCore chip (v7x) gets one per core; the extra grid step
        # (~0.35us) is negligible on single-core v5e/v6e.
        if B >= 64:
            half = (B + 1) // 2
            TB = ((half + 7) // 8) * 8
        else:
            TB = B
    else:
        TB = max(8, (tb // 8) * 8)
        # TODO(synk): for extremely large J*ND (one batch element's routing
        # state alone near the VMEM budget) a J-tiled routing loop would be
        # required; here we only raise the requested VMEM limit.

    est = TB * per_b + Din * ND * itemsize + 4 * TB * ND * itemsize
    vmem_limit = min(max(48 * 1024 * 1024, est + (8 << 20)), 56 * 1024 * 1024)
    return TB, vmem_limit


def capsule_layer(x, W, *, num_capsule, dim_capsule, routings, eps=1e-7):
    """x: (B, J, Din), W: (1, Din, N*Dc) or (Din, N*Dc) -> (B, N, Dc)."""
    B, J, Din = x.shape
    N, Dc = num_capsule, dim_capsule
    ND = N * Dc
    w2d = W.reshape(Din, ND)

    TB, vmem_limit = _choose_batch_tile(B, J, Din, ND)
    G = pl.cdiv(B, TB)
    B_pad = G * TB

    # Flatten (B, J, Din) -> (B*J, Din) so each grid step feeds one
    # (TB*J, Din) @ (Din, N*Dc) matmul.  No jnp.pad: if the last block is
    # ragged, its out-of-bounds rows read unspecified values, but routing is
    # independent per batch row and those output rows are sliced off below.
    x_flat = x.reshape(B * J, Din)

    # Constant 0/1 block-indicator matrix: S[d, n] = 1 iff d // Dc == n.
    S = np.kron(np.eye(N, dtype=np.float32),
                np.ones((Dc, 1), dtype=np.float32))             # (ND, N)

    kern = functools.partial(
        capsule_kernel,
        num_capsule=N, dim_capsule=Dc, routings=routings, eps=eps,
        input_num_capsule=J)

    out = pl.pallas_call(
        kern,
        out_shape=jax.ShapeDtypeStruct((B_pad, ND), x.dtype),
        grid_spec=pltpu.PrefetchScalarGridSpec(
            num_scalar_prefetch=0,
            grid=(G,),
            in_specs=[
                pl.BlockSpec((TB * J, Din), lambda g: (g, 0)),
                # Grid-invariant operands (constant block index): kept
                # resident by the pipeline instead of re-fetched per step.
                pl.BlockSpec((Din, ND), lambda g: (0, 0)),
                pl.BlockSpec((ND, N), lambda g: (0, 0)),
                pl.BlockSpec((N, ND), lambda g: (0, 0)),
            ],
            out_specs=pl.BlockSpec((TB, ND), lambda g: (g, 0)),
        ),
        compiler_params=pltpu.CompilerParams(
            dimension_semantics=("parallel",),
            vmem_limit_bytes=vmem_limit),
    )(x_flat, w2d, jnp.asarray(S), jnp.asarray(S.T))

    return out[:B].reshape(B, N, Dc)


def capsule_layer_ref(x, W, *, num_capsule, dim_capsule, routings, eps=1e-7):
    """Pure-JAX reference mirroring the PyTorch forward exactly."""
    B, J, Din = x.shape
    u = jnp.matmul(x, W.reshape(1, Din, num_capsule * dim_capsule))
    u = u.reshape(B, J, num_capsule, dim_capsule)
    u = jnp.transpose(u, (0, 2, 1, 3))            # (B, N, J, Dc)
    b = jnp.zeros(u.shape[:3], u.dtype)           # (B, N, J)
    outputs = None
    for i in range(routings):
        c = jax.nn.softmax(b, axis=1)             # softmax over N
        s = jnp.einsum('bij,bijk->bik', c, u)     # (B, N, Dc)
        outputs = s / jnp.sqrt(jnp.sum(s * s, axis=-1, keepdims=True) + eps)
        if i < routings - 1:
            b = jnp.einsum('bik,bijk->bij', outputs, u)
    return outputs


if __name__ == "__main__":
    # Small shapes consistent with the module's forward.
    batch = 2
    input_num_capsule = 8      # J
    input_dim_capsule = 32     # Din
    num_capsule = 4            # N
    dim_capsule = 16           # Dc
    routings = 3

    key = jax.random.PRNGKey(0)
    kx, kw = jax.random.split(key)

    x = jax.random.normal(kx, (batch, input_num_capsule, input_dim_capsule),
                          dtype=jnp.float32)

    # Deterministic xavier_normal_-style init of W: shape (1, Din, N*Dc).
    fan_in = input_dim_capsule * num_capsule * dim_capsule
    fan_out = num_capsule * dim_capsule
    std = (2.0 / (fan_in + fan_out)) ** 0.5
    W = std * jax.random.normal(
        kw, (1, input_dim_capsule, num_capsule * dim_capsule),
        dtype=jnp.float32)

    out = capsule_layer(x, W, num_capsule=num_capsule,
                        dim_capsule=dim_capsule, routings=routings)
    out = jax.block_until_ready(out)

    ref = capsule_layer_ref(x, W, num_capsule=num_capsule,
                            dim_capsule=dim_capsule, routings=routings)
    assert out.shape == (batch, num_capsule, dim_capsule)
    assert jnp.allclose(out, ref, atol=1e-5, rtol=1e-5), "mismatch vs reference"

    print("KERNEL_OK")
</pallas_src>

<mosaic_0001>
module attributes {stable_mosaic.version = 11 : i64} {
  func.func @capsule_kernel(%arg0: i32, %arg1: memref<16x32xf32, #tpu.memory_space<vmem>>, %arg2: memref<32x64xf32, #tpu.memory_space<vmem>>, %arg3: memref<64x4xf32, #tpu.memory_space<vmem>>, %arg4: memref<4x64xf32, #tpu.memory_space<vmem>>, %arg5: memref<2x64xf32, #tpu.memory_space<vmem>>) attributes {dimension_semantics = [#tpu.dimension_semantics<parallel>], iteration_bounds = array<i64: 1>, scalar_prefetch = 0 : i64, scratch_operands = 0 : i64, tpu.core_type = #tpu.core_type<tc>, window_params = [{transform_indices = @transform_0, window_bounds = array<i64: 16, 32>}, {pipeline_mode = #tpu.pipeline_mode<synchronous>, transform_indices = @transform_1, window_bounds = array<i64: 32, 64>}, {pipeline_mode = #tpu.pipeline_mode<synchronous>, transform_indices = @transform_2, window_bounds = array<i64: 64, 4>}, {pipeline_mode = #tpu.pipeline_mode<synchronous>, transform_indices = @transform_3, window_bounds = array<i64: 4, 64>}, {transform_indices = @transform_4, window_bounds = array<i64: 2, 64>}]} {
    %c0 = arith.constant 0 : index
    %c0_0 = arith.constant 0 : index
    %0 = vector.load %arg1[%c0, %c0_0] : memref<16x32xf32, #tpu.memory_space<vmem>>, vector<16x32xf32>
    %c0_1 = arith.constant 0 : index
    %c0_2 = arith.constant 0 : index
    %1 = vector.load %arg2[%c0_1, %c0_2] : memref<32x64xf32, #tpu.memory_space<vmem>>, vector<32x64xf32>
    %cst = arith.constant dense<0.000000e+00> : vector<16x64xf32>
    %2 = tpu.matmul %0, %1, %cst {dimension_numbers = #tpu.dot_dimension_numbers<[1], [0], [0], [1], [0, 0, 1, 1], [], []>} : vector<16x32xf32>, vector<32x64xf32>, vector<16x64xf32> -> vector<16x64xf32>
    %3 = vector.shape_cast %2 : vector<16x64xf32> to vector<2x8x64xf32>
    %c0_3 = arith.constant 0 : index
    %c0_4 = arith.constant 0 : index
    %4 = vector.load %arg3[%c0_3, %c0_4] : memref<64x4xf32, #tpu.memory_space<vmem>>, vector<64x4xf32>
    %c0_5 = arith.constant 0 : index
    %c0_6 = arith.constant 0 : index
    %5 = vector.load %arg4[%c0_5, %c0_6] : memref<4x64xf32, #tpu.memory_space<vmem>>, vector<4x64xf32>
    %cst_7 = arith.constant dense<0.000000e+00> : vector<2x64xf32>
    %6 = vector.multi_reduction <add>, %3, %cst_7 [1] : vector<2x8x64xf32> to vector<2x64xf32>
    %cst_8 = arith.constant 2.500000e-01 : f32
    %7 = vector.broadcast %cst_8 : f32 to vector<2x64xf32>
    %8 = arith.mulf %6, %7 : vector<2x64xf32>
    %9 = arith.mulf %8, %8 : vector<2x64xf32>
    %cst_9 = arith.constant dense<0.000000e+00> : vector<2x4xf32>
    %10 = tpu.matmul %9, %4, %cst_9 {dimension_numbers = #tpu.dot_dimension_numbers<[1], [0], [0], [1], [0, 0, 1, 1], [], []>, precision = #tpu.contract_precision<fp32>} : vector<2x64xf32>, vector<64x4xf32>, vector<2x4xf32> -> vector<2x4xf32>
    %cst_10 = arith.constant 1.000000e-07 : f32
    %11 = vector.broadcast %cst_10 : f32 to vector<2x4xf32>
    %12 = arith.addf %10, %11 : vector<2x4xf32>
    %13 = math.rsqrt %12 : vector<2x4xf32>
    %cst_11 = arith.constant dense<0.000000e+00> : vector<2x64xf32>
    %14 = tpu.matmul %13, %5, %cst_11 {dimension_numbers = #tpu.dot_dimension_numbers<[1], [0], [0], [1], [0, 0, 1, 1], [], []>, precision = #tpu.contract_precision<fp32>} : vector<2x4xf32>, vector<4x64xf32>, vector<2x64xf32> -> vector<2x64xf32>
    %15 = arith.mulf %8, %14 : vector<2x64xf32>
    %16 = vector.shape_cast %15 : vector<2x64xf32> to vector<2x1x64xf32>
    %17 = vector.broadcast %16 : vector<2x1x64xf32> to vector<2x8x64xf32>
    %18 = arith.mulf %17, %3 : vector<2x8x64xf32>
    %19 = vector.shape_cast %18 : vector<2x8x64xf32> to vector<16x64xf32>
    %cst_12 = arith.constant dense<0.000000e+00> : vector<16x4xf32>
    %20 = tpu.matmul %19, %4, %cst_12 {dimension_numbers = #tpu.dot_dimension_numbers<[1], [0], [0], [1], [0, 0, 1, 1], [], []>, precision = #tpu.contract_precision<fp32>} : vector<16x64xf32>, vector<64x4xf32>, vector<16x4xf32> -> vector<16x4xf32>
    %cst_13 = arith.constant dense<0xFF800000> : vector<16xf32>
    %21 = vector.multi_reduction <maximumf>, %20, %cst_13 [1] : vector<16x4xf32> to vector<16xf32>
    %22 = vector.shape_cast %21 : vector<16xf32> to vector<16x1xf32>
    %23 = vector.broadcast %22 : vector<16x1xf32> to vector<16x4xf32>
    %24 = arith.subf %20, %23 : vector<16x4xf32>
    %25 = math.exp %24 : vector<16x4xf32>
    %cst_14 = arith.constant dense<0.000000e+00> : vector<16xf32>
    %26 = vector.multi_reduction <add>, %25, %cst_14 [1] : vector<16x4xf32> to vector<16xf32>
    %27 = vector.shape_cast %26 : vector<16xf32> to vector<16x1xf32>
    %28 = vector.broadcast %27 : vector<16x1xf32> to vector<16x4xf32>
    %29 = arith.divf %25, %28 : vector<16x4xf32>
    %cst_15 = arith.constant dense<0.000000e+00> : vector<16x64xf32>
    %30 = tpu.matmul %29, %5, %cst_15 {dimension_numbers = #tpu.dot_dimension_numbers<[1], [0], [0], [1], [0, 0, 1, 1], [], []>, precision = #tpu.contract_precision<fp32>} : vector<16x4xf32>, vector<4x64xf32>, vector<16x64xf32> -> vector<16x64xf32>
    %31 = vector.shape_cast %30 : vector<16x64xf32> to vector<2x8x64xf32>
    %32 = arith.mulf %31, %3 : vector<2x8x64xf32>
    %cst_16 = arith.constant dense<0.000000e+00> : vector<2x64xf32>
    %33 = vector.multi_reduction <add>, %32, %cst_16 [1] : vector<2x8x64xf32> to vector<2x64xf32>
    %34 = arith.mulf %33, %33 : vector<2x64xf32>
    %cst_17 = arith.constant dense<0.000000e+00> : vector<2x4xf32>
    %35 = tpu.matmul %34, %4, %cst_17 {dimension_numbers = #tpu.dot_dimension_numbers<[1], [0], [0], [1], [0, 0, 1, 1], [], []>, precision = #tpu.contract_precision<fp32>} : vector<2x64xf32>, vector<64x4xf32>, vector<2x4xf32> -> vector<2x4xf32>
    %cst_18 = arith.constant 1.000000e-07 : f32
    %36 = vector.broadcast %cst_18 : f32 to vector<2x4xf32>
    %37 = arith.addf %35, %36 : vector<2x4xf32>
    %38 = math.rsqrt %37 : vector<2x4xf32>
    %cst_19 = arith.constant dense<0.000000e+00> : vector<2x64xf32>
    %39 = tpu.matmul %38, %5, %cst_19 {dimension_numbers = #tpu.dot_dimension_numbers<[1], [0], [0], [1], [0, 0, 1, 1], [], []>, precision = #tpu.contract_precision<fp32>} : vector<2x4xf32>, vector<4x64xf32>, vector<2x64xf32> -> vector<2x64xf32>
    %40 = arith.mulf %33, %39 : vector<2x64xf32>
    %41 = vector.shape_cast %40 : vector<2x64xf32> to vector<2x1x64xf32>
    %42 = vector.broadcast %41 : vector<2x1x64xf32> to vector<2x8x64xf32>
    %43 = arith.mulf %42, %3 : vector<2x8x64xf32>
    %44 = vector.shape_cast %43 : vector<2x8x64xf32> to vector<16x64xf32>
    %cst_20 = arith.constant dense<0.000000e+00> : vector<16x4xf32>
    %45 = tpu.matmul %44, %4, %cst_20 {dimension_numbers = #tpu.dot_dimension_numbers<[1], [0], [0], [1], [0, 0, 1, 1], [], []>, precision = #tpu.contract_precision<fp32>} : vector<16x64xf32>, vector<64x4xf32>, vector<16x4xf32> -> vector<16x4xf32>
    %cst_21 = arith.constant dense<0xFF800000> : vector<16xf32>
    %46 = vector.multi_reduction <maximumf>, %45, %cst_21 [1] : vector<16x4xf32> to vector<16xf32>
    %47 = vector.shape_cast %46 : vector<16xf32> to vector<16x1xf32>
    %48 = vector.broadcast %47 : vector<16x1xf32> to vector<16x4xf32>
    %49 = arith.subf %45, %48 : vector<16x4xf32>
    %50 = math.exp %49 : vector<16x4xf32>
    %cst_22 = arith.constant dense<0.000000e+00> : vector<16xf32>
    %51 = vector.multi_reduction <add>, %50, %cst_22 [1] : vector<16x4xf32> to vector<16xf32>
    %52 = vector.shape_cast %51 : vector<16xf32> to vector<16x1xf32>
    %53 = vector.broadcast %52 : vector<16x1xf32> to vector<16x4xf32>
    %54 = arith.divf %50, %53 : vector<16x4xf32>
    %cst_23 = arith.constant dense<0.000000e+00> : vector<16x64xf32>
    %55 = tpu.matmul %54, %5, %cst_23 {dimension_numbers = #tpu.dot_dimension_numbers<[1], [0], [0], [1], [0, 0, 1, 1], [], []>, precision = #tpu.contract_precision<fp32>} : vector<16x4xf32>, vector<4x64xf32>, vector<16x64xf32> -> vector<16x64xf32>
    %56 = vector.shape_cast %55 : vector<16x64xf32> to vector<2x8x64xf32>
    %57 = arith.mulf %56, %3 : vector<2x8x64xf32>
    %cst_24 = arith.constant dense<0.000000e+00> : vector<2x64xf32>
    %58 = vector.multi_reduction <add>, %57, %cst_24 [1] : vector<2x8x64xf32> to vector<2x64xf32>
    %59 = arith.mulf %58, %58 : vector<2x64xf32>
    %cst_25 = arith.constant dense<0.000000e+00> : vector<2x4xf32>
    %60 = tpu.matmul %59, %4, %cst_25 {dimension_numbers = #tpu.dot_dimension_numbers<[1], [0], [0], [1], [0, 0, 1, 1], [], []>, precision = #tpu.contract_precision<fp32>} : vector<2x64xf32>, vector<64x4xf32>, vector<2x4xf32> -> vector<2x4xf32>
    %cst_26 = arith.constant 1.000000e-07 : f32
    %61 = vector.broadcast %cst_26 : f32 to vector<2x4xf32>
    %62 = arith.addf %60, %61 : vector<2x4xf32>
    %63 = math.rsqrt %62 : vector<2x4xf32>
    %cst_27 = arith.constant dense<0.000000e+00> : vector<2x64xf32>
    %64 = tpu.matmul %63, %5, %cst_27 {dimension_numbers = #tpu.dot_dimension_numbers<[1], [0], [0], [1], [0, 0, 1, 1], [], []>, precision = #tpu.contract_precision<fp32>} : vector<2x4xf32>, vector<4x64xf32>, vector<2x64xf32> -> vector<2x64xf32>
    %65 = arith.mulf %58, %64 : vector<2x64xf32>
    %c0_28 = arith.constant 0 : index
    %c0_29 = arith.constant 0 : index
    %66 = vector.load %arg5[%c0_28, %c0_29] : memref<2x64xf32, #tpu.memory_space<vmem>>, vector<2x64xf32>
    tpu.vector_store %arg5[%c0_28, %c0_29], %65 {strides = array<i32>} : memref<2x64xf32, #tpu.memory_space<vmem>>, vector<2x64xf32>,
    return
  }
  func.func @transform_0(%arg0: i32) -> (i32, i32) {
    %c0_i32 = arith.constant 0 : i32
    %c0_i32_0 = arith.constant 0 : i32
    return %arg0, %c0_i32 : i32, i32
  }
  func.func @transform_1(%arg0: i32) -> (i32, i32) {
    %c0_i32 = arith.constant 0 : i32
    %c0_i32_0 = arith.constant 0 : i32
    %c0_i32_1 = arith.constant 0 : i32
    return %c0_i32, %c0_i32_0 : i32, i32
  }
  func.func @transform_2(%arg0: i32) -> (i32, i32) {
    %c0_i32 = arith.constant 0 : i32
    %c0_i32_0 = arith.constant 0 : i32
    %c0_i32_1 = arith.constant 0 : i32
    return %c0_i32, %c0_i32_0 : i32, i32
  }
  func.func @transform_3(%arg0: i32) -> (i32, i32) {
    %c0_i32 = arith.constant 0 : i32
    %c0_i32_0 = arith.constant 0 : i32
    %c0_i32_1 = arith.constant 0 : i32
    return %c0_i32, %c0_i32_0 : i32, i32
  }
  func.func @transform_4(%arg0: i32) -> (i32, i32) {
    %c0_i32 = arith.constant 0 : i32
    %c0_i32_0 = arith.constant 0 : i32
    return %arg0, %c0_i32 : i32, i32
  }
}

</mosaic_0001>

<llo_original>
// kernel: tpu_custom_call.1
$region0: #{tpu_custom_call.1}
  #allocation0 [shape = 'u32[]', space=smem, size = 0x4, offset = 0x4, fixed_abs, tag = 'smem constant byte address 0x4 - core index']
  #allocation1 [shape = 'u32[144,128]{1,0:T(1,128)}', space=vmem, size = 0x12000, scoped, tag = 'internal scratch']
  %s0 = inlined_call_operand.vmem [shape: f32[16,32], index: 0, kind: input, shape index: {}]
  %s1 = inlined_call_operand.vmem [shape: f32[32,64], index: 1, kind: input, shape index: {}]
  %s2 = inlined_call_operand.vmem [shape: f32[64,4], index: 2, kind: input, shape index: {}]
  %s3 = inlined_call_operand.vmem [shape: f32[4,64], index: 3, kind: input, shape index: {}]
  %s4 = inlined_call_operand.hbm [shape: f32[2,64], index: 4, kind: output, shape index: {}]
  %s5 = sld [smem:[#allocation0]]
  $region26: #{tpu_custom_call.1} parent=0
    _
  %s7 = ssub.s32 1, %s5
  %s8 = scalar_select 0, %s7, %s5
  $region1: #{tpu_custom_call.1} parent=0
    #allocation2 [shape = 'u8[1024]{0}', space=vmem, size = 0x400, scoped, tag = 'output window, operand 0, single buffered']
    #allocation3 [shape = 's32[1]{0}', space=sflag, size = 0x4, scoped, tag = 'scoped memory for tpu_custom_call.1']
    %9 = vsyncpa [#allocation3], 0
    // Predicated region
    $region2: #{tpu_custom_call.1} parent=1 // pred_check
      _
    $region3: #{tpu_custom_call.1} parent=1 // pred_check_branch
      %11 = sbr.rel (0) target = $region5
    $region4: #{tpu_custom_call.1} parent=1 // pred_region
      _
    $region5: #{tpu_custom_call.1} parent=1 // pred_fallthru
      _
    // Predicated region
    $region6: #{tpu_custom_call.1} parent=1 // pred_check
      _
    $region7: #{tpu_custom_call.1} parent=1 // pred_check_branch
      %13 = sbr.rel (0) target = $region9
    $region8: #{tpu_custom_call.1} parent=1 // pred_region
      _
    $region9: #{tpu_custom_call.1} parent=1 // pred_fallthru
      _
    // Predicated region
    $region10: #{tpu_custom_call.1} parent=1 // pred_check
      _
    $region11: #{tpu_custom_call.1} parent=1 // pred_check_branch
      %15 = sbr.rel (0) target = $region13
    $region12: #{tpu_custom_call.1} parent=1 // pred_region
      _
    $region13: #{tpu_custom_call.1} parent=1 // pred_fallthru
      _
    // Predicated region
    $region14: #{tpu_custom_call.1} parent=1 // pred_check
      _
    $region15: #{tpu_custom_call.1} parent=1 // pred_check_branch
      %17 = sbr.rel (0) target = $region17
    $region16: #{tpu_custom_call.1} parent=1 // pred_region
      _
    $region17: #{tpu_custom_call.1} parent=1 // pred_fallthru
      _
    %v18 = vld [vmem:[%s0] sm:$0xff]
    %v19 = vld [vmem:[%s0 + $0x8] sm:$0xff]
    %v20 = vld [vmem:[%s1] sm:$0xff]
    %v21 = vld [vmem:[%s1 + $0x8] sm:$0xff]
    %v22 = vld [vmem:[%s1 + $0x10] sm:$0xff]
    %v23 = vld [vmem:[%s1 + $0x18] sm:$0xff]
    %vm24 = vcmask 261120
    %v26 = vsel %vm24, %v18, 0
    %v29 = vsel %vm24, %v19, 0
    %31 = vmatprep.subr.mxu0 0.0
    %32 = vmatpush1.msra.mxu0 %v20
    %33 = vmatprep.subr.mxu0 0.0
    %34 = vmatpush1.msra.mxu0 %v21
    %35 = vmatprep.subr.mxu0 0.0
    %36 = vmatpush1.msra.mxu0 %v22
    %37 = vmatprep.subr.mxu0 0.0
    %38 = vmatpush1.msra.mxu0 %v23
    %39 = vmatprep.subr.mxu0 0.0
    %40 = vmatpush1.msra.mxu0 0.0
    %41 = vmatprep.subr.mxu0 0.0
    %42 = vmatpush1.msra.mxu0 0.0
    %43 = vmatprep.subr.mxu0 0.0
    %44 = vmatpush1.msra.mxu0 0.0
    %45 = vmatprep.subr.mxu0 0.0
    %46 = vmatpush1.msra.mxu0 0.0
    %47 = vmatprep.subr.mxu0 0.0
    %48 = vmatpush1.msra.mxu0 0.0
    %49 = vmatprep.subr.mxu0 0.0
    %50 = vmatpush1.msra.mxu0 0.0
    %51 = vmatprep.subr.mxu0 0.0
    %52 = vmatpush1.msra.mxu0 0.0
    %53 = vmatprep.subr.mxu0 0.0
    %54 = vmatpush1.msra.mxu0 0.0
    %55 = vmatprep.subr.mxu0 0.0
    %56 = vmatpush1.msra.mxu0 0.0
    %57 = vmatprep.subr.mxu0 0.0
    %58 = vmatpush1.msra.mxu0 0.0
    %59 = vmatprep.subr.mxu0 0.0
    %60 = vmatpush1.msra.mxu0 0.0
    %61 = vmatprep.subr.mxu0 0.0
    %62 = vmatpush1.msra.mxu0 0.0
    %63 = vmatprep.subr.mxu0 0.0
    %64 = vmatpush1.msra.mxu0 0.0
    %65 = vmatprep.subr.mxu0 0.0
    %66 = vmatpush1.msra.mxu0 0.0
    %67 = vmatprep.subr.mxu0 0.0
    %68 = vmatpush1.msra.mxu0 0.0
    %69 = vmatprep.subr.mxu0 0.0
    %70 = vmatpush1.msra.mxu0 0.0
    %71 = vmatprep.subr.mxu0 0.0
    %72 = vmatpush1.msra.mxu0 0.0
    %73 = vmatprep.subr.mxu0 0.0
    %74 = vmatpush1.msra.mxu0 0.0
    %75 = vmatprep.subr.mxu0 0.0
    %76 = vmatpush1.msra.mxu0 0.0
    %77 = vmatprep.subr.mxu0 0.0
    %78 = vmatpush1.msra.mxu0 0.0
    %79 = vmatprep.subr.mxu0 0.0
    %80 = vmatpush1.msra.mxu0 0.0
    %81 = vmatprep.subr.mxu0 0.0
    %82 = vmatpush1.msra.mxu0 0.0
    %83 = vmatprep.subr.mxu0 0.0
    %84 = vmatpush1.msra.mxu0 0.0
    %85 = vmatprep.subr.mxu0 0.0
    %86 = vmatpush1.msra.mxu0 0.0
    %87 = vmatprep.subr.mxu0 0.0
    %88 = vmatpush1.msra.mxu0 0.0
    %89 = vmatprep.subr.mxu0 0.0
    %90 = vmatpush1.msra.mxu0 0.0
    %91 = vmatprep.subr.mxu0 0.0
    %92 = vmatpush1.msra.mxu0 0.0
    %93 = vmatprep.subr.mxu0 0.0
    %94 = vmatpush1.msra.mxu0 0.0
    %95 = vmatprep.mubr.f32.mxu0 0.0
    %96 = vmatmul.mubr.f32.gmra.mrb[0].mxu0 %v26
    %v97 = vpop.f32.mrb[0].mxu0
    %v98 = vadd.f32 0.0, %v97
    %v99 = vpop.f32.mrb[0].mxu0
    %100 = vmatprep.mubr.f32.mxu0 0.0
    %101 = vmatmul.mubr.f32.gmra.mrb[0].mxu0 %v29
    %v102 = vpop.f32.mrb[0].mxu0
    %v103 = vadd.f32 0.0, %v102
    %v104 = vpop.f32.mrb[0].mxu0
    %105 = vdwg.mxu0
    %v106 = vld [vmem:[%s2] sm:$0xff]
    %v107 = vld [vmem:[%s2 + $0x8] sm:$0xff]
    %v108 = vld [vmem:[%s2 + $0x10] sm:$0xff]
    %v109 = vld [vmem:[%s2 + $0x18] sm:$0xff]
    %v110 = vld [vmem:[%s2 + $0x20] sm:$0xff]
    %v111 = vld [vmem:[%s2 + $0x28] sm:$0xff]
    %v112 = vld [vmem:[%s2 + $0x30] sm:$0xff]
    %v113 = vld [vmem:[%s2 + $0x38] sm:$0xff]
    %v114 = vld [vmem:[%s3] sm:$0xf]
    %vm115 = vcmask 523264
    %v116 = vsel %vm115, %v98, 0.0
    %v117 = vrot.slane %v116, 4
    %v118 = vadd.f32 %v116, %v117
    %v119 = vrot.slane %v118, 2
    %v120 = vadd.f32 %v118, %v119
    %v121 = vrot.slane %v120, 1
    %v122 = vadd.f32 %v120, %v121
    %v123 = vsel %vm115, %v103, 0.0
    %v124 = vrot.slane %v123, 4
    %v125 = vadd.f32 %v123, %v124
    %v126 = vrot.slane %v125, 2
    %v127 = vadd.f32 %v125, %v126
    %v128 = vrot.slane %v127, 1
    %v129 = vadd.f32 %v127, %v128
    %v130 = vmul.f32 %v122, 0.25
    %v131 = vmul.f32 %v129, 0.25
    %v132 = vmul.f32 %v130, %v130
    %v133 = vmul.f32 %v131, %v131
    %vm136 = vcmask 1041409
    %v137 = vsel %vm136, %v133, %v132
    %v138 = vsel %vm115, %v137, 0
    %140 = vmatprep.subr.mxu0 0.0
    %v141 = vand.u32 %v106, 4294901760
    %142 = vmatpush1.msra.mxu0 %v141
    %143 = vmatprep.subr.mxu0 0.0
    %v144 = vand.u32 %v107, 4294901760
    %145 = vmatpush1.msra.mxu0 %v144
    %146 = vmatprep.subr.mxu0 0.0
    %v147 = vand.u32 %v108, 4294901760
    %148 = vmatpush1.msra.mxu0 %v147
    %149 = vmatprep.subr.mxu0 0.0
    %v150 = vand.u32 %v109, 4294901760
    %151 = vmatpush1.msra.mxu0 %v150
    %152 = vmatprep.subr.mxu0 0.0
    %v153 = vand.u32 %v110, 4294901760
    %154 = vmatpush1.msra.mxu0 %v153
    %155 = vmatprep.subr.mxu0 0.0
    %v156 = vand.u32 %v111, 4294901760
    %157 = vmatpush1.msra.mxu0 %v156
    %158 = vmatprep.subr.mxu0 0.0
    %v159 = vand.u32 %v112, 4294901760
    %160 = vmatpush1.msra.mxu0 %v159
    %161 = vmatprep.subr.mxu0 0.0
    %v162 = vand.u32 %v113, 4294901760
    %163 = vmatpush1.msra.mxu0 %v162
    %164 = vmatprep.subr.mxu0 0.0
    %165 = vmatpush1.msra.mxu0 0.0
    %166 = vmatprep.subr.mxu0 0.0
    %167 = vmatpush1.msra.mxu0 0.0
    %168 = vmatprep.subr.mxu0 0.0
    %169 = vmatpush1.msra.mxu0 0.0
    %170 = vmatprep.subr.mxu0 0.0
    %171 = vmatpush1.msra.mxu0 0.0
    %172 = vmatprep.subr.mxu0 0.0
    %173 = vmatpush1.msra.mxu0 0.0
    %174 = vmatprep.subr.mxu0 0.0
    %175 = vmatpush1.msra.mxu0 0.0
    %176 = vmatprep.subr.mxu0 0.0
    %177 = vmatpush1.msra.mxu0 0.0
    %178 = vmatprep.subr.mxu0 0.0
    %179 = vmatpush1.msra.mxu0 0.0
    %180 = vmatprep.subr.mxu0 0.0
    %181 = vmatpush1.msra.mxu0 0.0
    %182 = vmatprep.subr.mxu0 0.0
    %183 = vmatpush1.msra.mxu0 0.0
    %184 = vmatprep.subr.mxu0 0.0
    %185 = vmatpush1.msra.mxu0 0.0
    %186 = vmatprep.subr.mxu0 0.0
    %187 = vmatpush1.msra.mxu0 0.0
    %188 = vmatprep.subr.mxu0 0.0
    %189 = vmatpush1.msra.mxu0 0.0
    %190 = vmatprep.subr.mxu0 0.0
    %191 = vmatpush1.msra.mxu0 0.0
    %192 = vmatprep.subr.mxu0 0.0
    %193 = vmatpush1.msra.mxu0 0.0
    %194 = vmatprep.subr.mxu0 0.0
    %195 = vmatpush1.msra.mxu0 0.0
    %196 = vmatprep.subr.mxu0 0.0
    %197 = vmatpush1.msra.mxu0 0.0
    %198 = vmatprep.subr.mxu0 0.0
    %199 = vmatpush1.msra.mxu0 0.0
    %200 = vmatprep.subr.mxu0 0.0
    %201 = vmatpush1.msra.mxu0 0.0
    %202 = vmatprep.subr.mxu0 0.0
    %203 = vmatpush1.msra.mxu0 0.0
    %204 = vmatprep.subr.mxu0 0.0
    %205 = vmatpush1.msra.mxu0 0.0
    %206 = vmatprep.subr.mxu0 0.0
    %207 = vmatpush1.msra.mxu0 0.0
    %208 = vmatprep.subr.mxu0 0.0
    %209 = vmatpush1.msra.mxu0 0.0
    %210 = vmatprep.subr.mxu0 0.0
    %211 = vmatpush1.msra.mxu0 0.0
    %212 = vmatprep.mubr.f32.mxu0 0.0
    %v213 = vand.u32 %v138, 4294901760
    %v214 = vsub.f32 %v138, %v213
    %v215 = vand.u32 %v214, 4294901760
    %v216 = vsub.f32 %v214, %v215
    %v217 = vand.u32 %v216, 4294901760
    %218 = vmatmul.mubr.f32.gmra.mrb[0].mxu0 %v217
    %v219 = vpop.f32.mrb[0].mxu0
    %v220 = vadd.f32 1e-07, %v219
    %v221 = vpop.f32.mrb[0].mxu0
    %222 = vdwg.mxu0
    %223 = vmatprep.subr.mxu0 0.0
    %v224 = vand.u32 %v106, 4294901760
    %v225 = vsub.f32 %v106, %v224
    %v226 = vand.u32 %v225, 4294901760
    %v227 = vsub.f32 %v225, %v226
    %v228 = vand.u32 %v227, 4294901760
    %229 = vmatpush1.msra.mxu0 %v228
    %230 = vmatprep.subr.mxu0 0.0
    %v231 = vand.u32 %v107, 4294901760
    %v232 = vsub.f32 %v107, %v231
    %v233 = vand.u32 %v232, 4294901760
    %v234 = vsub.f32 %v232, %v233
    %v235 = vand.u32 %v234, 4294901760
    %236 = vmatpush1.msra.mxu0 %v235
    %237 = vmatprep.subr.mxu0 0.0
    %v238 = vand.u32 %v108, 4294901760
    %v239 = vsub.f32 %v108, %v238
    %v240 = vand.u32 %v239, 4294901760
    %v241 = vsub.f32 %v239, %v240
    %v242 = vand.u32 %v241, 4294901760
    %243 = vmatpush1.msra.mxu0 %v242
    %244 = vmatprep.subr.mxu0 0.0
    %v245 = vand.u32 %v109, 4294901760
    %v246 = vsub.f32 %v109, %v245
    %v247 = vand.u32 %v246, 4294901760
    %v248 = vsub.f32 %v246, %v247
    %v249 = vand.u32 %v248, 4294901760
    %250 = vmatpush1.msra.mxu0 %v249
    %251 = vmatprep.subr.mxu0 0.0
    %v252 = vand.u32 %v110, 4294901760
    %v253 = vsub.f32 %v110, %v252
    %v254 = vand.u32 %v253, 4294901760
    %v255 = vsub.f32 %v253, %v254
    %v256 = vand.u32 %v255, 4294901760
    %257 = vmatpush1.msra.mxu0 %v256
    %258 = vmatprep.subr.mxu0 0.0
    %v259 = vand.u32 %v111, 4294901760
    %v260 = vsub.f32 %v111, %v259
    %v261 = vand.u32 %v260, 4294901760
    %v262 = vsub.f32 %v260, %v261
    %v263 = vand.u32 %v262, 4294901760
    %264 = vmatpush1.msra.mxu0 %v263
    %265 = vmatprep.subr.mxu0 0.0
    %v266 = vand.u32 %v112, 4294901760
    %v267 = vsub.f32 %v112, %v266
    %v268 = vand.u32 %v267, 4294901760
    %v269 = vsub.f32 %v267, %v268
    %v270 = vand.u32 %v269, 4294901760
    %271 = vmatpush1.msra.mxu0 %v270
    %272 = vmatprep.subr.mxu0 0.0
    %v273 = vand.u32 %v113, 4294901760
    %v274 = vsub.f32 %v113, %v273
    %v275 = vand.u32 %v274, 4294901760
    %v276 = vsub.f32 %v274, %v275
    %v277 = vand.u32 %v276, 4294901760
    %278 = vmatpush1.msra.mxu0 %v277
    %279 = vmatprep.subr.mxu0 0.0
    %280 = vmatpush1.msra.mxu0 0.0
    %281 = vmatprep.subr.mxu0 0.0
    %282 = vmatpush1.msra.mxu0 0.0
    %283 = vmatprep.subr.mxu0 0.0
    %284 = vmatpush1.msra.mxu0 0.0
    %285 = vmatprep.subr.mxu0 0.0
    %286 = vmatpush1.msra.mxu0 0.0
    %287 = vmatprep.subr.mxu0 0.0
    %288 = vmatpush1.msra.mxu0 0.0
    %289 = vmatprep.subr.mxu0 0.0
    %290 = vmatpush1.msra.mxu0 0.0
    %291 = vmatprep.subr.mxu0 0.0
    %292 = vmatpush1.msra.mxu0 0.0
    %293 = vmatprep.subr.mxu0 0.0
    %294 = vmatpush1.msra.mxu0 0.0
    %295 = vmatprep.subr.mxu0 0.0
    %296 = vmatpush1.msra.mxu0 0.0
    %297 = vmatprep.subr.mxu0 0.0
    %298 = vmatpush1.msra.mxu0 0.0
    %299 = vmatprep.subr.mxu0 0.0
    %300 = vmatpush1.msra.mxu0 0.0
    %301 = vmatprep.subr.mxu0 0.0
    %302 = vmatpush1.msra.mxu0 0.0
    %303 = vmatprep.subr.mxu0 0.0
    %304 = vmatpush1.msra.mxu0 0.0
    %305 = vmatprep.subr.mxu0 0.0
    %306 = vmatpush1.msra.mxu0 0.0
    %307 = vmatprep.subr.mxu0 0.0
    %308 = vmatpush1.msra.mxu0 0.0
    %309 = vmatprep.subr.mxu0 0.0
    %310 = vmatpush1.msra.mxu0 0.0
    %311 = vmatprep.subr.mxu0 0.0
    %312 = vmatpush1.msra.mxu0 0.0
    %313 = vmatprep.subr.mxu0 0.0
    %314 = vmatpush1.msra.mxu0 0.0
    %315 = vmatprep.subr.mxu0 0.0
    %316 = vmatpush1.msra.mxu0 0.0
    %317 = vmatprep.subr.mxu0 0.0
    %318 = vmatpush1.msra.mxu0 0.0
    %319 = vmatprep.subr.mxu0 0.0
    %320 = vmatpush1.msra.mxu0 0.0
    %321 = vmatprep.subr.mxu0 0.0
    %322 = vmatpush1.msra.mxu0 0.0
    %323 = vmatprep.subr.mxu0 0.0
    %324 = vmatpush1.msra.mxu0 0.0
    %325 = vmatprep.subr.mxu0 0.0
    %326 = vmatpush1.msra.mxu0 0.0
    %327 = vmatprep.mubr.f32.mxu0 0.0
    %v328 = vand.u32 %v138, 4294901760
    %329 = vmatmul.mubr.f32.gmra.mrb[0].mxu0 %v328
    %v330 = vpop.f32.mrb[0].mxu0
    %v331 = vadd.f32 %v220, %v330
    %v332 = vpop.f32.mrb[0].mxu0
    %333 = vdwg.mxu0
    %334 = vmatprep.subr.mxu0 0.0
    %v335 = vand.u32 %v106, 4294901760
    %v336 = vsub.f32 %v106, %v335
    %337 = vmatpush1.msra.mxu0 %v336
    %338 = vmatprep.subr.mxu0 0.0
    %v339 = vand.u32 %v107, 4294901760
    %v340 = vsub.f32 %v107, %v339
    %341 = vmatpush1.msra.mxu0 %v340
    %342 = vmatprep.subr.mxu0 0.0
    %v343 = vand.u32 %v108, 4294901760
    %v344 = vsub.f32 %v108, %v343
    %345 = vmatpush1.msra.mxu0 %v344
    %346 = vmatprep.subr.mxu0 0.0
    %v347 = vand.u32 %v109, 4294901760
    %v348 = vsub.f32 %v109, %v347
    %349 = vmatpush1.msra.mxu0 %v348
    %350 = vmatprep.subr.mxu0 0.0
    %v351 = vand.u32 %v110, 4294901760
    %v352 = vsub.f32 %v110, %v351
    %353 = vmatpush1.msra.mxu0 %v352
    %354 = vmatprep.subr.mxu0 0.0
    %v355 = vand.u32 %v111, 4294901760
    %v356 = vsub.f32 %v111, %v355
    %357 = vmatpush1.msra.mxu0 %v356
    %358 = vmatprep.subr.mxu0 0.0
    %v359 = vand.u32 %v112, 4294901760
    %v360 = vsub.f32 %v112, %v359
    %361 = vmatpush1.msra.mxu0 %v360
    %362 = vmatprep.subr.mxu0 0.0
    %v363 = vand.u32 %v113, 4294901760
    %v364 = vsub.f32 %v113, %v363
    %365 = vmatpush1.msra.mxu0 %v364
    %366 = vmatprep.subr.mxu0 0.0
    %367 = vmatpush1.msra.mxu0 0.0
    %368 = vmatprep.subr.mxu0 0.0
    %369 = vmatpush1.msra.mxu0 0.0
    %370 = vmatprep.subr.mxu0 0.0
    %371 = vmatpush1.msra.mxu0 0.0
    %372 = vmatprep.subr.mxu0 0.0
    %373 = vmatpush1.msra.mxu0 0.0
    %374 = vmatprep.subr.mxu0 0.0
    %375 = vmatpush1.msra.mxu0 0.0
    %376 = vmatprep.subr.mxu0 0.0
    %377 = vmatpush1.msra.mxu0 0.0
    %378 = vmatprep.subr.mxu0 0.0
    %379 = vmatpush1.msra.mxu0 0.0
    %380 = vmatprep.subr.mxu0 0.0
    %381 = vmatpush1.msra.mxu0 0.0
    %382 = vmatprep.subr.mxu0 0.0
    %383 = vmatpush1.msra.mxu0 0.0
    %384 = vmatprep.subr.mxu0 0.0
    %385 = vmatpush1.msra.mxu0 0.0
    %386 = vmatprep.subr.mxu0 0.0
    %387 = vmatpush1.msra.mxu0 0.0
    %388 = vmatprep.subr.mxu0 0.0
    %389 = vmatpush1.msra.mxu0 0.0
    %390 = vmatprep.subr.mxu0 0.0
    %391 = vmatpush1.msra.mxu0 0.0
    %392 = vmatprep.subr.mxu0 0.0
    %393 = vmatpush1.msra.mxu0 0.0
    %394 = vmatprep.subr.mxu0 0.0
    %395 = vmatpush1.msra.mxu0 0.0
    %396 = vmatprep.subr.mxu0 0.0
    %397 = vmatpush1.msra.mxu0 0.0
    %398 = vmatprep.subr.mxu0 0.0
    %399 = vmatpush1.msra.mxu0 0.0
    %400 = vmatprep.subr.mxu0 0.0
    %401 = vmatpush1.msra.mxu0 0.0
    %402 = vmatprep.subr.mxu0 0.0
    %403 = vmatpush1.msra.mxu0 0.0
    %404 = vmatprep.subr.mxu0 0.0
    %405 = vmatpush1.msra.mxu0 0.0
    %406 = vmatprep.subr.mxu0 0.0
    %407 = vmatpush1.msra.mxu0 0.0
    %408 = vmatprep.subr.mxu0 0.0
    %409 = vmatpush1.msra.mxu0 0.0
    %410 = vmatprep.subr.mxu0 0.0
    %411 = vmatpush1.msra.mxu0 0.0
    %412 = vmatprep.subr.mxu0 0.0
    %413 = vmatpush1.msra.mxu0 0.0
    %414 = vmatprep.mubr.f32.mxu0 0.0
    %v415 = vand.u32 %v138, 4294901760
    %v416 = vsub.f32 %v138, %v415
    %417 = vmatmul.mubr.f32.gmra.mrb[0].mxu0 %v416
    %v418 = vpop.f32.mrb[0].mxu0
    %v419 = vadd.f32 %v331, %v418
    %v420 = vpop.f32.mrb[0].mxu0
    %421 = vdwg.mxu0
    %422 = vmatprep.subr.mxu0 0.0
    %v423 = vand.u32 %v106, 4294901760
    %424 = vmatpush1.msra.mxu0 %v423
    %425 = vmatprep.subr.mxu0 0.0
    %v426 = vand.u32 %v107, 4294901760
    %427 = vmatpush1.msra.mxu0 %v426
    %428 = vmatprep.subr.mxu0 0.0
    %v429 = vand.u32 %v108, 4294901760
    %430 = vmatpush1.msra.mxu0 %v429
    %431 = vmatprep.subr.mxu0 0.0
    %v432 = vand.u32 %v109, 4294901760
    %433 = vmatpush1.msra.mxu0 %v432
    %434 = vmatprep.subr.mxu0 0.0
    %v435 = vand.u32 %v110, 4294901760
    %436 = vmatpush1.msra.mxu0 %v435
    %437 = vmatprep.subr.mxu0 0.0
    %v438 = vand.u32 %v111, 4294901760
    %439 = vmatpush1.msra.mxu0 %v438
    %440 = vmatprep.subr.mxu0 0.0
    %v441 = vand.u32 %v112, 4294901760
    %442 = vmatpush1.msra.mxu0 %v441
    %443 = vmatprep.subr.mxu0 0.0
    %v444 = vand.u32 %v113, 4294901760
    %445 = vmatpush1.msra.mxu0 %v444
    %446 = vmatprep.subr.mxu0 0.0
    %447 = vmatpush1.msra.mxu0 0.0
    %448 = vmatprep.subr.mxu0 0.0
    %449 = vmatpush1.msra.mxu0 0.0
    %450 = vmatprep.subr.mxu0 0.0
    %451 = vmatpush1.msra.mxu0 0.0
    %452 = vmatprep.subr.mxu0 0.0
    %453 = vmatpush1.msra.mxu0 0.0
    %454 = vmatprep.subr.mxu0 0.0
    %455 = vmatpush1.msra.mxu0 0.0
    %456 = vmatprep.subr.mxu0 0.0
    %457 = vmatpush1.msra.mxu0 0.0
    %458 = vmatprep.subr.mxu0 0.0
    %459 = vmatpush1.msra.mxu0 0.0
    %460 = vmatprep.subr.mxu0 0.0
    %461 = vmatpush1.msra.mxu0 0.0
    %462 = vmatprep.subr.mxu0 0.0
    %463 = vmatpush1.msra.mxu0 0.0
    %464 = vmatprep.subr.mxu0 0.0
    %465 = vmatpush1.msra.mxu0 0.0
    %466 = vmatprep.subr.mxu0 0.0
    %467 = vmatpush1.msra.mxu0 0.0
    %468 = vmatprep.subr.mxu0 0.0
    %469 = vmatpush1.msra.mxu0 0.0
    %470 = vmatprep.subr.mxu0 0.0
    %471 = vmatpush1.msra.mxu0 0.0
    %472 = vmatprep.subr.mxu0 0.0
    %473 = vmatpush1.msra.mxu0 0.0
    %474 = vmatprep.subr.mxu0 0.0
    %475 = vmatpush1.msra.mxu0 0.0
    %476 = vmatprep.subr.mxu0 0.0
    %477 = vmatpush1.msra.mxu0 0.0
    %478 = vmatprep.subr.mxu0 0.0
    %479 = vmatpush1.msra.mxu0 0.0
    %480 = vmatprep.subr.mxu0 0.0
    %481 = vmatpush1.msra.mxu0 0.0
    %482 = vmatprep.subr.mxu0 0.0
    %483 = vmatpush1.msra.mxu0 0.0
    %484 = vmatprep.subr.mxu0 0.0
    %485 = vmatpush1.msra.mxu0 0.0
    %486 = vmatprep.subr.mxu0 0.0
    %487 = vmatpush1.msra.mxu0 0.0
    %488 = vmatprep.subr.mxu0 0.0
    %489 = vmatpush1.msra.mxu0 0.0
    %490 = vmatprep.subr.mxu0 0.0
    %491 = vmatpush1.msra.mxu0 0.0
    %492 = vmatprep.subr.mxu0 0.0
    %493 = vmatpush1.msra.mxu0 0.0
    %494 = vmatprep.mubr.f32.mxu0 0.0
    %v495 = vand.u32 %v138, 4294901760
    %v496 = vsub.f32 %v138, %v495
    %v497 = vand.u32 %v496, 4294901760
    %498 = vmatmul.mubr.f32.gmra.mrb[0].mxu0 %v497
    %v499 = vpop.f32.mrb[0].mxu0
    %v500 = vadd.f32 %v419, %v499
    %v501 = vpop.f32.mrb[0].mxu0
    %502 = vdwg.mxu0
    %503 = vmatprep.subr.mxu0 0.0
    %v504 = vand.u32 %v106, 4294901760
    %v505 = vsub.f32 %v106, %v504
    %v506 = vand.u32 %v505, 4294901760
    %507 = vmatpush1.msra.mxu0 %v506
    %508 = vmatprep.subr.mxu0 0.0
    %v509 = vand.u32 %v107, 4294901760
    %v510 = vsub.f32 %v107, %v509
    %v511 = vand.u32 %v510, 4294901760
    %512 = vmatpush1.msra.mxu0 %v511
    %513 = vmatprep.subr.mxu0 0.0
    %v514 = vand.u32 %v108, 4294901760
    %v515 = vsub.f32 %v108, %v514
    %v516 = vand.u32 %v515, 4294901760
    %517 = vmatpush1.msra.mxu0 %v516
    %518 = vmatprep.subr.mxu0 0.0
    %v519 = vand.u32 %v109, 4294901760
    %v520 = vsub.f32 %v109, %v519
    %v521 = vand.u32 %v520, 4294901760
    %522 = vmatpush1.msra.mxu0 %v521
    %523 = vmatprep.subr.mxu0 0.0
    %v524 = vand.u32 %v110, 4294901760
    %v525 = vsub.f32 %v110, %v524
    %v526 = vand.u32 %v525, 4294901760
    %527 = vmatpush1.msra.mxu0 %v526
    %528 = vmatprep.subr.mxu0 0.0
    %v529 = vand.u32 %v111, 4294901760
    %v530 = vsub.f32 %v111, %v529
    %v531 = vand.u32 %v530, 4294901760
    %532 = vmatpush1.msra.mxu0 %v531
    %533 = vmatprep.subr.mxu0 0.0
    %v534 = vand.u32 %v112, 4294901760
    %v535 = vsub.f32 %v112, %v534
    %v536 = vand.u32 %v535, 4294901760
    %537 = vmatpush1.msra.mxu0 %v536
    %538 = vmatprep.subr.mxu0 0.0
    %v539 = vand.u32 %v113, 4294901760
    %v540 = vsub.f32 %v113, %v539
    %v541 = vand.u32 %v540, 4294901760
    %542 = vmatpush1.msra.mxu0 %v541
    %543 = vmatprep.subr.mxu0 0.0
    %544 = vmatpush1.msra.mxu0 0.0
    %545 = vmatprep.subr.mxu0 0.0
    %546 = vmatpush1.msra.mxu0 0.0
    %547 = vmatprep.subr.mxu0 0.0
    %548 = vmatpush1.msra.mxu0 0.0
    %549 = vmatprep.subr.mxu0 0.0
    %550 = vmatpush1.msra.mxu0 0.0
    %551 = vmatprep.subr.mxu0 0.0
    %552 = vmatpush1.msra.mxu0 0.0
    %553 = vmatprep.subr.mxu0 0.0
    %554 = vmatpush1.msra.mxu0 0.0
    %555 = vmatprep.subr.mxu0 0.0
    %556 = vmatpush1.msra.mxu0 0.0
    %557 = vmatprep.subr.mxu0 0.0
    %558 = vmatpush1.msra.mxu0 0.0
    %559 = vmatprep.subr.mxu0 0.0
    %560 = vmatpush1.msra.mxu0 0.0
    %561 = vmatprep.subr.mxu0 0.0
    %562 = vmatpush1.msra.mxu0 0.0
    %563 = vmatprep.subr.mxu0 0.0
    %564 = vmatpush1.msra.mxu0 0.0
    %565 = vmatprep.subr.mxu0 0.0
    %566 = vmatpush1.msra.mxu0 0.0
    %567 = vmatprep.subr.mxu0 0.0
    %568 = vmatpush1.msra.mxu0 0.0
    %569 = vmatprep.subr.mxu0 0.0
    %570 = vmatpush1.msra.mxu0 0.0
    %571 = vmatprep.subr.mxu0 0.0
    %572 = vmatpush1.msra.mxu0 0.0
    %573 = vmatprep.subr.mxu0 0.0
    %574 = vmatpush1.msra.mxu0 0.0
    %575 = vmatprep.subr.mxu0 0.0
    %576 = vmatpush1.msra.mxu0 0.0
    %577 = vmatprep.subr.mxu0 0.0
    %578 = vmatpush1.msra.mxu0 0.0
    %579 = vmatprep.subr.mxu0 0.0
    %580 = vmatpush1.msra.mxu0 0.0
    %581 = vmatprep.subr.mxu0 0.0
    %582 = vmatpush1.msra.mxu0 0.0
    %583 = vmatprep.subr.mxu0 0.0
    %584 = vmatpush1.msra.mxu0 0.0
    %585 = vmatprep.subr.mxu0 0.0
    %586 = vmatpush1.msra.mxu0 0.0
    %587 = vmatprep.subr.mxu0 0.0
    %588 = vmatpush1.msra.mxu0 0.0
    %589 = vmatprep.subr.mxu0 0.0
    %590 = vmatpush1.msra.mxu0 0.0
    %591 = vmatprep.mubr.f32.mxu0 0.0
    %v592 = vand.u32 %v138, 4294901760
    %593 = vmatmul.mubr.f32.gmra.mrb[0].mxu0 %v592
    %v594 = vpop.f32.mrb[0].mxu0
    %v595 = vadd.f32 %v500, %v594
    %v596 = vpop.f32.mrb[0].mxu0
    %597 = vdwg.mxu0
    %598 = vmatprep.subr.mxu0 0.0
    %v599 = vand.u32 %v106, 4294901760
    %600 = vmatpush1.msra.mxu0 %v599
    %601 = vmatprep.subr.mxu0 0.0
    %v602 = vand.u32 %v107, 4294901760
    %603 = vmatpush1.msra.mxu0 %v602
    %604 = vmatprep.subr.mxu0 0.0
    %v605 = vand.u32 %v108, 4294901760
    %606 = vmatpush1.msra.mxu0 %v605
    %607 = vmatprep.subr.mxu0 0.0
    %v608 = vand.u32 %v109, 4294901760
    %609 = vmatpush1.msra.mxu0 %v608
    %610 = vmatprep.subr.mxu0 0.0
    %v611 = vand.u32 %v110, 4294901760
    %612 = vmatpush1.msra.mxu0 %v611
    %613 = vmatprep.subr.mxu0 0.0
    %v614 = vand.u32 %v111, 4294901760
    %615 = vmatpush1.msra.mxu0 %v614
    %616 = vmatprep.subr.mxu0 0.0
    %v617 = vand.u32 %v112, 4294901760
    %618 = vmatpush1.msra.mxu0 %v617
    %619 = vmatprep.subr.mxu0 0.0
    %v620 = vand.u32 %v113, 4294901760
    %621 = vmatpush1.msra.mxu0 %v620
    %622 = vmatprep.subr.mxu0 0.0
    %623 = vmatpush1.msra.mxu0 0.0
    %624 = vmatprep.subr.mxu0 0.0
    %625 = vmatpush1.msra.mxu0 0.0
    %626 = vmatprep.subr.mxu0 0.0
    %627 = vmatpush1.msra.mxu0 0.0
    %628 = vmatprep.subr.mxu0 0.0
    %629 = vmatpush1.msra.mxu0 0.0
    %630 = vmatprep.subr.mxu0 0.0
    %631 = vmatpush1.msra.mxu0 0.0
    %632 = vmatprep.subr.mxu0 0.0
    %633 = vmatpush1.msra.mxu0 0.0
    %634 = vmatprep.subr.mxu0 0.0
    %635 = vmatpush1.msra.mxu0 0.0
    %636 = vmatprep.subr.mxu0 0.0
    %637 = vmatpush1.msra.mxu0 0.0
    %638 = vmatprep.subr.mxu0 0.0
    %639 = vmatpush1.msra.mxu0 0.0
    %640 = vmatprep.subr.mxu0 0.0
    %641 = vmatpush1.msra.mxu0 0.0
    %642 = vmatprep.subr.mxu0 0.0
    %643 = vmatpush1.msra.mxu0 0.0
    %644 = vmatprep.subr.mxu0 0.0
    %645 = vmatpush1.msra.mxu0 0.0
    %646 = vmatprep.subr.mxu0 0.0
    %647 = vmatpush1.msra.mxu0 0.0
    %648 = vmatprep.subr.mxu0 0.0
    %649 = vmatpush1.msra.mxu0 0.0
    %650 = vmatprep.subr.mxu0 0.0
    %651 = vmatpush1.msra.mxu0 0.0
    %652 = vmatprep.subr.mxu0 0.0
    %653 = vmatpush1.msra.mxu0 0.0
    %654 = vmatprep.subr.mxu0 0.0
    %655 = vmatpush1.msra.mxu0 0.0
    %656 = vmatprep.subr.mxu0 0.0
    %657 = vmatpush1.msra.mxu0 0.0
    %658 = vmatprep.subr.mxu0 0.0
    %659 = vmatpush1.msra.mxu0 0.0
    %660 = vmatprep.subr.mxu0 0.0
    %661 = vmatpush1.msra.mxu0 0.0
    %662 = vmatprep.subr.mxu0 0.0
    %663 = vmatpush1.msra.mxu0 0.0
    %664 = vmatprep.subr.mxu0 0.0
    %665 = vmatpush1.msra.mxu0 0.0
    %666 = vmatprep.subr.mxu0 0.0
    %667 = vmatpush1.msra.mxu0 0.0
    %668 = vmatprep.subr.mxu0 0.0
    %669 = vmatpush1.msra.mxu0 0.0
    %670 = vmatprep.mubr.f32.mxu0 0.0
    %v671 = vand.u32 %v138, 4294901760
    %672 = vmatmul.mubr.f32.gmra.mrb[0].mxu0 %v671
    %v673 = vpop.f32.mrb[0].mxu0
    %v674 = vadd.f32 %v595, %v673
    %v675 = vpop.f32.mrb[0].mxu0
    %676 = vdwg.mxu0
    %v677 = vrsqrt.pop %v674
    %vm678 = vcmask 31744
    %v680 = vsel %vm678, %v677, 0
    %vm682 = vcmask 1043456
    %v684 = vsel %vm682, %v114, 0
    %686 = vmatprep.subr.mxu0 0.0
    %v687 = vand.u32 %v684, 4294901760
    %688 = vmatpush1.msra.mxu0 %v687
    %689 = vmatprep.subr.mxu0 0.0
    %690 = vmatpush1.msra.mxu0 0.0
    %691 = vmatprep.subr.mxu0 0.0
    %692 = vmatpush1.msra.mxu0 0.0
    %693 = vmatprep.subr.mxu0 0.0
    %694 = vmatpush1.msra.mxu0 0.0
    %695 = vmatprep.subr.mxu0 0.0
    %696 = vmatpush1.msra.mxu0 0.0
    %697 = vmatprep.subr.mxu0 0.0
    %698 = vmatpush1.msra.mxu0 0.0
    %699 = vmatprep.subr.mxu0 0.0
    %700 = vmatpush1.msra.mxu0 0.0
    %701 = vmatprep.subr.mxu0 0.0
    %702 = vmatpush1.msra.mxu0 0.0
    %703 = vmatprep.subr.mxu0 0.0
    %704 = vmatpush1.msra.mxu0 0.0
    %705 = vmatprep.subr.mxu0 0.0
    %706 = vmatpush1.msra.mxu0 0.0
    %707 = vmatprep.subr.mxu0 0.0
    %708 = vmatpush1.msra.mxu0 0.0
    %709 = vmatprep.subr.mxu0 0.0
    %710 = vmatpush1.msra.mxu0 0.0
    %711 = vmatprep.subr.mxu0 0.0
    %712 = vmatpush1.msra.mxu0 0.0
    %713 = vmatprep.subr.mxu0 0.0
    %714 = vmatpush1.msra.mxu0 0.0
    %715 = vmatprep.subr.mxu0 0.0
    %716 = vmatpush1.msra.mxu0 0.0
    %717 = vmatprep.subr.mxu0 0.0
    %718 = vmatpush1.msra.mxu0 0.0
    %719 = vmatprep.subr.mxu0 0.0
    %720 = vmatpush1.msra.mxu0 0.0
    %721 = vmatprep.subr.mxu0 0.0
    %722 = vmatpush1.msra.mxu0 0.0
    %723 = vmatprep.subr.mxu0 0.0
    %724 = vmatpush1.msra.mxu0 0.0
    %725 = vmatprep.subr.mxu0 0.0
    %726 = vmatpush1.msra.mxu0 0.0
    %727 = vmatprep.subr.mxu0 0.0
    %728 = vmatpush1.msra.mxu0 0.0
    %729 = vmatprep.subr.mxu0 0.0
    %730 = vmatpush1.msra.mxu0 0.0
    %731 = vmatprep.subr.mxu0 0.0
    %732 = vmatpush1.msra.mxu0 0.0
    %733 = vmatprep.subr.mxu0 0.0
    %734 = vmatpush1.msra.mxu0 0.0
    %735 = vmatprep.subr.mxu0 0.0
    %736 = vmatpush1.msra.mxu0 0.0
    %737 = vmatprep.subr.mxu0 0.0
    %738 = vmatpush1.msra.mxu0 0.0
    %739 = vmatprep.subr.mxu0 0.0
    %740 = vmatpush1.msra.mxu0 0.0
    %741 = vmatprep.subr.mxu0 0.0
    %742 = vmatpush1.msra.mxu0 0.0
    %743 = vmatprep.subr.mxu0 0.0
    %744 = vmatpush1.msra.mxu0 0.0
    %745 = vmatprep.subr.mxu0 0.0
    %746 = vmatpush1.msra.mxu0 0.0
    %747 = vmatprep.subr.mxu0 0.0
    %748 = vmatpush1.msra.mxu0 0.0
    %749 = vmatprep.subr.mxu0 0.0
    %750 = vmatpush1.msra.mxu0 0.0
    %751 = vmatprep.mubr.f32.mxu0 0.0
    %v752 = vand.u32 %v680, 4294901760
    %v753 = vsub.f32 %v680, %v752
    %v754 = vand.u32 %v753, 4294901760
    %v755 = vsub.f32 %v753, %v754
    %v756 = vand.u32 %v755, 4294901760
    %757 = vmatmul.mubr.f32.gmra.mrb[0].mxu0 %v756
    %v758 = vpop.f32.mrb[0].mxu0
    %v759 = vadd.f32 0.0, %v758
    %v760 = vpop.f32.mrb[0].mxu0
    %761 = vdwg.mxu0
    %762 = vmatprep.subr.mxu0 0.0
    %v763 = vand.u32 %v684, 4294901760
    %v764 = vsub.f32 %v684, %v763
    %v765 = vand.u32 %v764, 4294901760
    %v766 = vsub.f32 %v764, %v765
    %v767 = vand.u32 %v766, 4294901760
    %768 = vmatpush1.msra.mxu0 %v767
    %769 = vmatprep.subr.mxu0 0.0
    %770 = vmatpush1.msra.mxu0 0.0
    %771 = vmatprep.subr.mxu0 0.0
    %772 = vmatpush1.msra.mxu0 0.0
    %773 = vmatprep.subr.mxu0 0.0
    %774 = vmatpush1.msra.mxu0 0.0
    %775 = vmatprep.subr.mxu0 0.0
    %776 = vmatpush1.msra.mxu0 0.0
    %777 = vmatprep.subr.mxu0 0.0
    %778 = vmatpush1.msra.mxu0 0.0
    %779 = vmatprep.subr.mxu0 0.0
    %780 = vmatpush1.msra.mxu0 0.0
    %781 = vmatprep.subr.mxu0 0.0
    %782 = vmatpush1.msra.mxu0 0.0
    %783 = vmatprep.subr.mxu0 0.0
    %784 = vmatpush1.msra.mxu0 0.0
    %785 = vmatprep.subr.mxu0 0.0
    %786 = vmatpush1.msra.mxu0 0.0
    %787 = vmatprep.subr.mxu0 0.0
    %788 = vmatpush1.msra.mxu0 0.0
    %789 = vmatprep.subr.mxu0 0.0
    %790 = vmatpush1.msra.mxu0 0.0
    %791 = vmatprep.subr.mxu0 0.0
    %792 = vmatpush1.msra.mxu0 0.0
    %793 = vmatprep.subr.mxu0 0.0
    %794 = vmatpush1.msra.mxu0 0.0
    %795 = vmatprep.subr.mxu0 0.0
    %796 = vmatpush1.msra.mxu0 0.0
    %797 = vmatprep.subr.mxu0 0.0
    %798 = vmatpush1.msra.mxu0 0.0
    %799 = vmatprep.subr.mxu0 0.0
    %800 = vmatpush1.msra.mxu0 0.0
    %801 = vmatprep.subr.mxu0 0.0
    %802 = vmatpush1.msra.mxu0 0.0
    %803 = vmatprep.subr.mxu0 0.0
    %804 = vmatpush1.msra.mxu0 0.0
    %805 = vmatprep.subr.mxu0 0.0
    %806 = vmatpush1.msra.mxu0 0.0
    %807 = vmatprep.subr.mxu0 0.0
    %808 = vmatpush1.msra.mxu0 0.0
    %809 = vmatprep.subr.mxu0 0.0
    %810 = vmatpush1.msra.mxu0 0.0
    %811 = vmatprep.subr.mxu0 0.0
    %812 = vmatpush1.msra.mxu0 0.0
    %813 = vmatprep.subr.mxu0 0.0
    %814 = vmatpush1.msra.mxu0 0.0
    %815 = vmatprep.subr.mxu0 0.0
    %816 = vmatpush1.msra.mxu0 0.0
    %817 = vmatprep.subr.mxu0 0.0
    %818 = vmatpush1.msra.mxu0 0.0
    %819 = vmatprep.subr.mxu0 0.0
    %820 = vmatpush1.msra.mxu0 0.0
    %821 = vmatprep.subr.mxu0 0.0
    %822 = vmatpush1.msra.mxu0 0.0
    %823 = vmatprep.subr.mxu0 0.0
    %824 = vmatpush1.msra.mxu0 0.0
    %825 = vmatprep.subr.mxu0 0.0
    %826 = vmatpush1.msra.mxu0 0.0
    %827 = vmatprep.subr.mxu0 0.0
    %828 = vmatpush1.msra.mxu0 0.0
    %829 = vmatprep.subr.mxu0 0.0
    %830 = vmatpush1.msra.mxu0 0.0
    %831 = vmatprep.mubr.f32.mxu0 0.0
    %v832 = vand.u32 %v680, 4294901760
    %833 = vmatmul.mubr.f32.gmra.mrb[0].mxu0 %v832
    %v834 = vpop.f32.mrb[0].mxu0
    %v835 = vadd.f32 %v759, %v834
    %v836 = vpop.f32.mrb[0].mxu0
    %837 = vdwg.mxu0
    %838 = vmatprep.subr.mxu0 0.0
    %v839 = vand.u32 %v684, 4294901760
    %v840 = vsub.f32 %v684, %v839
    %841 = vmatpush1.msra.mxu0 %v840
    %842 = vmatprep.subr.mxu0 0.0
    %843 = vmatpush1.msra.mxu0 0.0
    %844 = vmatprep.subr.mxu0 0.0
    %845 = vmatpush1.msra.mxu0 0.0
    %846 = vmatprep.subr.mxu0 0.0
    %847 = vmatpush1.msra.mxu0 0.0
    %848 = vmatprep.subr.mxu0 0.0
    %849 = vmatpush1.msra.mxu0 0.0
    %850 = vmatprep.subr.mxu0 0.0
    %851 = vmatpush1.msra.mxu0 0.0
    %852 = vmatprep.subr.mxu0 0.0
    %853 = vmatpush1.msra.mxu0 0.0
    %854 = vmatprep.subr.mxu0 0.0
    %855 = vmatpush1.msra.mxu0 0.0
    %856 = vmatprep.subr.mxu0 0.0
    %857 = vmatpush1.msra.mxu0 0.0
    %858 = vmatprep.subr.mxu0 0.0
    %859 = vmatpush1.msra.mxu0 0.0
    %860 = vmatprep.subr.mxu0 0.0
    %861 = vmatpush1.msra.mxu0 0.0
    %862 = vmatprep.subr.mxu0 0.0
    %863 = vmatpush1.msra.mxu0 0.0
    %864 = vmatprep.subr.mxu0 0.0
    %865 = vmatpush1.msra.mxu0 0.0
    %866 = vmatprep.subr.mxu0 0.0
    %867 = vmatpush1.msra.mxu0 0.0
    %868 = vmatprep.subr.mxu0 0.0
    %869 = vmatpush1.msra.mxu0 0.0
    %870 = vmatprep.subr.mxu0 0.0
    %871 = vmatpush1.msra.mxu0 0.0
    %872 = vmatprep.subr.mxu0 0.0
    %873 = vmatpush1.msra.mxu0 0.0
    %874 = vmatprep.subr.mxu0 0.0
    %875 = vmatpush1.msra.mxu0 0.0
    %876 = vmatprep.subr.mxu0 0.0
    %877 = vmatpush1.msra.mxu0 0.0
    %878 = vmatprep.subr.mxu0 0.0
    %879 = vmatpush1.msra.mxu0 0.0
    %880 = vmatprep.subr.mxu0 0.0
    %881 = vmatpush1.msra.mxu0 0.0
    %882 = vmatprep.subr.mxu0 0.0
    %883 = vmatpush1.msra.mxu0 0.0
    %884 = vmatprep.subr.mxu0 0.0
    %885 = vmatpush1.msra.mxu0 0.0
    %886 = vmatprep.subr.mxu0 0.0
    %887 = vmatpush1.msra.mxu0 0.0
    %888 = vmatprep.subr.mxu0 0.0
    %889 = vmatpush1.msra.mxu0 0.0
    %890 = vmatprep.subr.mxu0 0.0
    %891 = vmatpush1.msra.mxu0 0.0
    %892 = vmatprep.subr.mxu0 0.0
    %893 = vmatpush1.msra.mxu0 0.0
    %894 = vmatprep.subr.mxu0 0.0
    %895 = vmatpush1.msra.mxu0 0.0
    %896 = vmatprep.subr.mxu0 0.0
    %897 = vmatpush1.msra.mxu0 0.0
    %898 = vmatprep.subr.mxu0 0.0
    %899 = vmatpush1.msra.mxu0 0.0
    %900 = vmatprep.subr.mxu0 0.0
    %901 = vmatpush1.msra.mxu0 0.0
    %902 = vmatprep.subr.mxu0 0.0
    %903 = vmatpush1.msra.mxu0 0.0
    %904 = vmatprep.mubr.f32.mxu0 0.0
    %v905 = vand.u32 %v680, 4294901760
    %v906 = vsub.f32 %v680, %v905
    %907 = vmatmul.mubr.f32.gmra.mrb[0].mxu0 %v906
    %v908 = vpop.f32.mrb[0].mxu0
    %v909 = vadd.f32 %v835, %v908
    %v910 = vpop.f32.mrb[0].mxu0
    %911 = vdwg.mxu0
    %912 = vmatprep.subr.mxu0 0.0
    %v913 = vand.u32 %v684, 4294901760
    %914 = vmatpush1.msra.mxu0 %v913
    %915 = vmatprep.subr.mxu0 0.0
    %916 = vmatpush1.msra.mxu0 0.0
    %917 = vmatprep.subr.mxu0 0.0
    %918 = vmatpush1.msra.mxu0 0.0
    %919 = vmatprep.subr.mxu0 0.0
    %920 = vmatpush1.msra.mxu0 0.0
    %921 = vmatprep.subr.mxu0 0.0
    %922 = vmatpush1.msra.mxu0 0.0
    %923 = vmatprep.subr.mxu0 0.0
    %924 = vmatpush1.msra.mxu0 0.0
    %925 = vmatprep.subr.mxu0 0.0
    %926 = vmatpush1.msra.mxu0 0.0
    %927 = vmatprep.subr.mxu0 0.0
    %928 = vmatpush1.msra.mxu0 0.0
    %929 = vmatprep.subr.mxu0 0.0
    %930 = vmatpush1.msra.mxu0 0.0
    %931 = vmatprep.subr.mxu0 0.0
    %932 = vmatpush1.msra.mxu0 0.0
    %933 = vmatprep.subr.mxu0 0.0
    %934 = vmatpush1.msra.mxu0 0.0
    %935 = vmatprep.subr.mxu0 0.0
    %936 = vmatpush1.msra.mxu0 0.0
    %937 = vmatprep.subr.mxu0 0.0
    %938 = vmatpush1.msra.mxu0 0.0
    %939 = vmatprep.subr.mxu0 0.0
    %940 = vmatpush1.msra.mxu0 0.0
    %941 = vmatprep.subr.mxu0 0.0
    %942 = vmatpush1.msra.mxu0 0.0
    %943 = vmatprep.subr.mxu0 0.0
    %944 = vmatpush1.msra.mxu0 0.0
    %945 = vmatprep.subr.mxu0 0.0
    %946 = vmatpush1.msra.mxu0 0.0
    %947 = vmatprep.subr.mxu0 0.0
    %948 = vmatpush1.msra.mxu0 0.0
    %949 = vmatprep.subr.mxu0 0.0
    %950 = vmatpush1.msra.mxu0 0.0
    %951 = vmatprep.subr.mxu0 0.0
    %952 = vmatpush1.msra.mxu0 0.0
    %953 = vmatprep.subr.mxu0 0.0
    %954 = vmatpush1.msra.mxu0 0.0
    %955 = vmatprep.subr.mxu0 0.0
    %956 = vmatpush1.msra.mxu0 0.0
    %957 = vmatprep.subr.mxu0 0.0
    %958 = vmatpush1.msra.mxu0 0.0
    %959 = vmatprep.subr.mxu0 0.0
    %960 = vmatpush1.msra.mxu0 0.0
    %961 = vmatprep.subr.mxu0 0.0
    %962 = vmatpush1.msra.mxu0 0.0
    %963 = vmatprep.subr.mxu0 0.0
    %964 = vmatpush1.msra.mxu0 0.0
    %965 = vmatprep.subr.mxu0 0.0
    %966 = vmatpush1.msra.mxu0 0.0
    %967 = vmatprep.subr.mxu0 0.0
    %968 = vmatpush1.msra.mxu0 0.0
    %969 = vmatprep.subr.mxu0 0.0
    %970 = vmatpush1.msra.mxu0 0.0
    %971 = vmatprep.subr.mxu0 0.0
    %972 = vmatpush1.msra.mxu0 0.0
    %973 = vmatprep.subr.mxu0 0.0
    %974 = vmatpush1.msra.mxu0 0.0
    %975 = vmatprep.subr.mxu0 0.0
    %976 = vmatpush1.msra.mxu0 0.0
    %977 = vmatprep.mubr.f32.mxu0 0.0
    %v978 = vand.u32 %v680, 4294901760
    %v979 = vsub.f32 %v680, %v978
    %v980 = vand.u32 %v979, 4294901760
    %981 = vmatmul.mubr.f32.gmra.mrb[0].mxu0 %v980
    %v982 = vpop.f32.mrb[0].mxu0
    %v983 = vadd.f32 %v909, %v982
    %v984 = vpop.f32.mrb[0].mxu0
    %985 = vdwg.mxu0
    %986 = vmatprep.subr.mxu0 0.0
    %v987 = vand.u32 %v684, 4294901760
    %v988 = vsub.f32 %v684, %v987
    %v989 = vand.u32 %v988, 4294901760
    %990 = vmatpush1.msra.mxu0 %v989
    %991 = vmatprep.subr.mxu0 0.0
    %992 = vmatpush1.msra.mxu0 0.0
    %993 = vmatprep.subr.mxu0 0.0
    %994 = vmatpush1.msra.mxu0 0.0
    %995 = vmatprep.subr.mxu0 0.0
    %996 = vmatpush1.msra.mxu0 0.0
    %997 = vmatprep.subr.mxu0 0.0
    %998 = vmatpush1.msra.mxu0 0.0
    %999 = vmatprep.subr.mxu0 0.0
    %1000 = vmatpush1.msra.mxu0 0.0
    %1001 = vmatprep.subr.mxu0 0.0
    %1002 = vmatpush1.msra.mxu0 0.0
    %1003 = vmatprep.subr.mxu0 0.0
    %1004 = vmatpush1.msra.mxu0 0.0
    %1005 = vmatprep.subr.mxu0 0.0
    %1006 = vmatpush1.msra.mxu0 0.0
    %1007 = vmatprep.subr.mxu0 0.0
    %1008 = vmatpush1.msra.mxu0 0.0
    %1009 = vmatprep.subr.mxu0 0.0
    %1010 = vmatpush1.msra.mxu0 0.0
    %1011 = vmatprep.subr.mxu0 0.0
    %1012 = vmatpush1.msra.mxu0 0.0
    %1013 = vmatprep.subr.mxu0 0.0
    %1014 = vmatpush1.msra.mxu0 0.0
    %1015 = vmatprep.subr.mxu0 0.0
    %1016 = vmatpush1.msra.mxu0 0.0
    %1017 = vmatprep.subr.mxu0 0.0
    %1018 = vmatpush1.msra.mxu0 0.0
    %1019 = vmatprep.subr.mxu0 0.0
    %1020 = vmatpush1.msra.mxu0 0.0
    %1021 = vmatprep.subr.mxu0 0.0
    %1022 = vmatpush1.msra.mxu0 0.0
    %1023 = vmatprep.subr.mxu0 0.0
    %1024 = vmatpush1.msra.mxu0 0.0
    %1025 = vmatprep.subr.mxu0 0.0
    %1026 = vmatpush1.msra.mxu0 0.0
    %1027 = vmatprep.subr.mxu0 0.0
    %1028 = vmatpush1.msra.mxu0 0.0
    %1029 = vmatprep.subr.mxu0 0.0
    %1030 = vmatpush1.msra.mxu0 0.0
    %1031 = vmatprep.subr.mxu0 0.0
    %1032 = vmatpush1.msra.mxu0 0.0
    %1033 = vmatprep.subr.mxu0 0.0
    %1034 = vmatpush1.msra.mxu0 0.0
    %1035 = vmatprep.subr.mxu0 0.0
    %1036 = vmatpush1.msra.mxu0 0.0
    %1037 = vmatprep.subr.mxu0 0.0
    %1038 = vmatpush1.msra.mxu0 0.0
    %1039 = vmatprep.subr.mxu0 0.0
    %1040 = vmatpush1.msra.mxu0 0.0
    %1041 = vmatprep.subr.mxu0 0.0
    %1042 = vmatpush1.msra.mxu0 0.0
    %1043 = vmatprep.subr.mxu0 0.0
    %1044 = vmatpush1.msra.mxu0 0.0
    %1045 = vmatprep.subr.mxu0 0.0
    %1046 = vmatpush1.msra.mxu0 0.0
    %1047 = vmatprep.subr.mxu0 0.0
    %1048 = vmatpush1.msra.mxu0 0.0
    %1049 = vmatprep.subr.mxu0 0.0
    %1050 = vmatpush1.msra.mxu0 0.0
    %1051 = vmatprep.subr.mxu0 0.0
    %1052 = vmatpush1.msra.mxu0 0.0
    %1053 = vmatprep.mubr.f32.mxu0 0.0
    %v1054 = vand.u32 %v680, 4294901760
    %1055 = vmatmul.mubr.f32.gmra.mrb[0].mxu0 %v1054
    %v1056 = vpop.f32.mrb[0].mxu0
    %v1057 = vadd.f32 %v983, %v1056
    %v1058 = vpop.f32.mrb[0].mxu0
    %1059 = vdwg.mxu0
    %1060 = vmatprep.subr.mxu0 0.0
    %v1061 = vand.u32 %v684, 4294901760
    %1062 = vmatpush1.msra.mxu0 %v1061
    %1063 = vmatprep.subr.mxu0 0.0
    %1064 = vmatpush1.msra.mxu0 0.0
    %1065 = vmatprep.subr.mxu0 0.0
    %1066 = vmatpush1.msra.mxu0 0.0
    %1067 = vmatprep.subr.mxu0 0.0
    %1068 = vmatpush1.msra.mxu0 0.0
    %1069 = vmatprep.subr.mxu0 0.0
    %1070 = vmatpush1.msra.mxu0 0.0
    %1071 = vmatprep.subr.mxu0 0.0
    %1072 = vmatpush1.msra.mxu0 0.0
    %1073 = vmatprep.subr.mxu0 0.0
    %1074 = vmatpush1.msra.mxu0 0.0
    %1075 = vmatprep.subr.mxu0 0.0
    %1076 = vmatpush1.msra.mxu0 0.0
    %1077 = vmatprep.subr.mxu0 0.0
    %1078 = vmatpush1.msra.mxu0 0.0
    %1079 = vmatprep.subr.mxu0 0.0
    %1080 = vmatpush1.msra.mxu0 0.0
    %1081 = vmatprep.subr.mxu0 0.0
    %1082 = vmatpush1.msra.mxu0 0.0
    %1083 = vmatprep.subr.mxu0 0.0
    %1084 = vmatpush1.msra.mxu0 0.0
    %1085 = vmatprep.subr.mxu0 0.0
    %1086 = vmatpush1.msra.mxu0 0.0
    %1087 = vmatprep.subr.mxu0 0.0
    %1088 = vmatpush1.msra.mxu0 0.0
    %1089 = vmatprep.subr.mxu0 0.0
    %1090 = vmatpush1.msra.mxu0 0.0
    %1091 = vmatprep.subr.mxu0 0.0
    %1092 = vmatpush1.msra.mxu0 0.0
    %1093 = vmatprep.subr.mxu0 0.0
    %1094 = vmatpush1.msra.mxu0 0.0
    %1095 = vmatprep.subr.mxu0 0.0
    %1096 = vmatpush1.msra.mxu0 0.0
    %1097 = vmatprep.subr.mxu0 0.0
    %1098 = vmatpush1.msra.mxu0 0.0
    %1099 = vmatprep.subr.mxu0 0.0
    %1100 = vmatpush1.msra.mxu0 0.0
    %1101 = vmatprep.subr.mxu0 0.0
    %1102 = vmatpush1.msra.mxu0 0.0
    %1103 = vmatprep.subr.mxu0 0.0
    %1104 = vmatpush1.msra.mxu0 0.0
    %1105 = vmatprep.subr.mxu0 0.0
    %1106 = vmatpush1.msra.mxu0 0.0
    %1107 = vmatprep.subr.mxu0 0.0
    %1108 = vmatpush1.msra.mxu0 0.0
    %1109 = vmatprep.subr.mxu0 0.0
    %1110 = vmatpush1.msra.mxu0 0.0
    %1111 = vmatprep.subr.mxu0 0.0
    %1112 = vmatpush1.msra.mxu0 0.0
    %1113 = vmatprep.subr.mxu0 0.0
    %1114 = vmatpush1.msra.mxu0 0.0
    %1115 = vmatprep.subr.mxu0 0.0
    %1116 = vmatpush1.msra.mxu0 0.0
    %1117 = vmatprep.subr.mxu0 0.0
    %1118 = vmatpush1.msra.mxu0 0.0
    %1119 = vmatprep.subr.mxu0 0.0
    %1120 = vmatpush1.msra.mxu0 0.0
    %1121 = vmatprep.subr.mxu0 0.0
    %1122 = vmatpush1.msra.mxu0 0.0
    %1123 = vmatprep.subr.mxu0 0.0
    %1124 = vmatpush1.msra.mxu0 0.0
    %1125 = vmatprep.mubr.f32.mxu0 0.0
    %v1126 = vand.u32 %v680, 4294901760
    %1127 = vmatmul.mubr.f32.gmra.mrb[0].mxu0 %v1126
    %v1128 = vpop.f32.mrb[0].mxu0
    %v1129 = vadd.f32 %v1057, %v1128
    %v1130 = vpop.f32.mrb[0].mxu0
    %1131 = vdwg.mxu0
    %v1133 = vrot.slane %v1129, 1
    %v1136 = vmul.f32 %v130, %v1129
    %v1137 = vmul.f32 %v131, %v1133
    %v1138 = vlaneseq
    %v1139 = vshrl.u32 %v1138, 7
    %v1140 = vsub.s32 0, %v1139
    %v1141 = vrot.slane %v1136, %v1140
    %v1142 = vlaneseq
    %v1143 = vshrl.u32 %v1142, 7
    %v1144 = vsub.s32 0, %v1143
    %v1145 = vrot.slane %v1137, %v1144
    %v1146 = vmul.f32 %v1141, %v98
    %v1147 = vmul.f32 %v1145, %v103
    %v1149 = vsel %vm115, %v1146, 0
    %v1152 = vsel %vm115, %v1147, 0
    %1154 = vmatprep.subr.mxu0 0.0
    %v1155 = vand.u32 %v106, 4294901760
    %1156 = vmatpush1.msra.mxu0 %v1155
    %1157 = vmatprep.subr.mxu0 0.0
    %v1158 = vand.u32 %v107, 4294901760
    %1159 = vmatpush1.msra.mxu0 %v1158
    %1160 = vmatprep.subr.mxu0 0.0
    %v1161 = vand.u32 %v108, 4294901760
    %1162 = vmatpush1.msra.mxu0 %v1161
    %1163 = vmatprep.subr.mxu0 0.0
    %v1164 = vand.u32 %v109, 4294901760
    %1165 = vmatpush1.msra.mxu0 %v1164
    %1166 = vmatprep.subr.mxu0 0.0
    %v1167 = vand.u32 %v110, 4294901760
    %1168 = vmatpush1.msra.mxu0 %v1167
    %1169 = vmatprep.subr.mxu0 0.0
    %v1170 = vand.u32 %v111, 4294901760
    %1171 = vmatpush1.msra.mxu0 %v1170
    %1172 = vmatprep.subr.mxu0 0.0
    %v1173 = vand.u32 %v112, 4294901760
    %1174 = vmatpush1.msra.mxu0 %v1173
    %1175 = vmatprep.subr.mxu0 0.0
    %v1176 = vand.u32 %v113, 4294901760
    %1177 = vmatpush1.msra.mxu0 %v1176
    %1178 = vmatprep.subr.mxu0 0.0
    %1179 = vmatpush1.msra.mxu0 0.0
    %1180 = vmatprep.subr.mxu0 0.0
    %1181 = vmatpush1.msra.mxu0 0.0
    %1182 = vmatprep.subr.mxu0 0.0
    %1183 = vmatpush1.msra.mxu0 0.0
    %1184 = vmatprep.subr.mxu0 0.0
    %1185 = vmatpush1.msra.mxu0 0.0
    %1186 = vmatprep.subr.mxu0 0.0
    %1187 = vmatpush1.msra.mxu0 0.0
    %1188 = vmatprep.subr.mxu0 0.0
    %1189 = vmatpush1.msra.mxu0 0.0
    %1190 = vmatprep.subr.mxu0 0.0
    %1191 = vmatpush1.msra.mxu0 0.0
    %1192 = vmatprep.subr.mxu0 0.0
    %1193 = vmatpush1.msra.mxu0 0.0
    %1194 = vmatprep.subr.mxu0 0.0
    %1195 = vmatpush1.msra.mxu0 0.0
    %1196 = vmatprep.subr.mxu0 0.0
    %1197 = vmatpush1.msra.mxu0 0.0
    %1198 = vmatprep.subr.mxu0 0.0
    %1199 = vmatpush1.msra.mxu0 0.0
    %1200 = vmatprep.subr.mxu0 0.0
    %1201 = vmatpush1.msra.mxu0 0.0
    %1202 = vmatprep.subr.mxu0 0.0
    %1203 = vmatpush1.msra.mxu0 0.0
    %1204 = vmatprep.subr.mxu0 0.0
    %1205 = vmatpush1.msra.mxu0 0.0
    %1206 = vmatprep.subr.mxu0 0.0
    %1207 = vmatpush1.msra.mxu0 0.0
    %1208 = vmatprep.subr.mxu0 0.0
    %1209 = vmatpush1.msra.mxu0 0.0
    %1210 = vmatprep.subr.mxu0 0.0
    %1211 = vmatpush1.msra.mxu0 0.0
    %1212 = vmatprep.subr.mxu0 0.0
    %1213 = vmatpush1.msra.mxu0 0.0
    %1214 = vmatprep.subr.mxu0 0.0
    %1215 = vmatpush1.msra.mxu0 0.0
    %1216 = vmatprep.subr.mxu0 0.0
    %1217 = vmatpush1.msra.mxu0 0.0
    %1218 = vmatprep.subr.mxu0 0.0
    %1219 = vmatpush1.msra.mxu0 0.0
    %1220 = vmatprep.subr.mxu0 0.0
    %1221 = vmatpush1.msra.mxu0 0.0
    %1222 = vmatprep.subr.mxu0 0.0
    %1223 = vmatpush1.msra.mxu0 0.0
    %1224 = vmatprep.subr.mxu0 0.0
    %1225 = vmatpush1.msra.mxu0 0.0
    %1226 = vmatprep.mubr.f32.mxu0 0.0
    %v1227 = vand.u32 %v1149, 4294901760
    %v1228 = vsub.f32 %v1149, %v1227
    %v1229 = vand.u32 %v1228, 4294901760
    %v1230 = vsub.f32 %v1228, %v1229
    %v1231 = vand.u32 %v1230, 4294901760
    %1232 = vmatmul.mubr.f32.gmra.mrb[0].mxu0 %v1231
    %v1233 = vpop.f32.mrb[0].mxu0
    %v1234 = vadd.f32 0.0, %v1233
    %v1235 = vpop.f32.mrb[0].mxu0
    %1236 = vmatprep.mubr.f32.mxu0 0.0
    %v1237 = vand.u32 %v1152, 4294901760
    %v1238 = vsub.f32 %v1152, %v1237
    %v1239 = vand.u32 %v1238, 4294901760
    %v1240 = vsub.f32 %v1238, %v1239
    %v1241 = vand.u32 %v1240, 4294901760
    %1242 = vmatmul.mubr.f32.gmra.mrb[0].mxu0 %v1241
    %v1243 = vpop.f32.mrb[0].mxu0
    %v1244 = vadd.f32 0.0, %v1243
    %v1245 = vpop.f32.mrb[0].mxu0
    %1246 = vdwg.mxu0
    %1247 = vmatprep.subr.mxu0 0.0
    %v1248 = vand.u32 %v106, 4294901760
    %v1249 = vsub.f32 %v106, %v1248
    %v1250 = vand.u32 %v1249, 4294901760
    %v1251 = vsub.f32 %v1249, %v1250
    %v1252 = vand.u32 %v1251, 4294901760
    %1253 = vmatpush1.msra.mxu0 %v1252
    %1254 = vmatprep.subr.mxu0 0.0
    %v1255 = vand.u32 %v107, 4294901760
    %v1256 = vsub.f32 %v107, %v1255
    %v1257 = vand.u32 %v1256, 4294901760
    %v1258 = vsub.f32 %v1256, %v1257
    %v1259 = vand.u32 %v1258, 4294901760
    %1260 = vmatpush1.msra.mxu0 %v1259
    %1261 = vmatprep.subr.mxu0 0.0
    %v1262 = vand.u32 %v108, 4294901760
    %v1263 = vsub.f32 %v108, %v1262
    %v1264 = vand.u32 %v1263, 4294901760
    %v1265 = vsub.f32 %v1263, %v1264
    %v1266 = vand.u32 %v1265, 4294901760
    %1267 = vmatpush1.msra.mxu0 %v1266
    %1268 = vmatprep.subr.mxu0 0.0
    %v1269 = vand.u32 %v109, 4294901760
    %v1270 = vsub.f32 %v109, %v1269
    %v1271 = vand.u32 %v1270, 4294901760
    %v1272 = vsub.f32 %v1270, %v1271
    %v1273 = vand.u32 %v1272, 4294901760
    %1274 = vmatpush1.msra.mxu0 %v1273
    %1275 = vmatprep.subr.mxu0 0.0
    %v1276 = vand.u32 %v110, 4294901760
    %v1277 = vsub.f32 %v110, %v1276
    %v1278 = vand.u32 %v1277, 4294901760
    %v1279 = vsub.f32 %v1277, %v1278
    %v1280 = vand.u32 %v1279, 4294901760
    %1281 = vmatpush1.msra.mxu0 %v1280
    %1282 = vmatprep.subr.mxu0 0.0
    %v1283 = vand.u32 %v111, 4294901760
    %v1284 = vsub.f32 %v111, %v1283
    %v1285 = vand.u32 %v1284, 4294901760
    %v1286 = vsub.f32 %v1284, %v1285
    %v1287 = vand.u32 %v1286, 4294901760
    %1288 = vmatpush1.msra.mxu0 %v1287
    %1289 = vmatprep.subr.mxu0 0.0
    %v1290 = vand.u32 %v112, 4294901760
    %v1291 = vsub.f32 %v112, %v1290
    %v1292 = vand.u32 %v1291, 4294901760
    %v1293 = vsub.f32 %v1291, %v1292
    %v1294 = vand.u32 %v1293, 4294901760
    %1295 = vmatpush1.msra.mxu0 %v1294
    %1296 = vmatprep.subr.mxu0 0.0
    %v1297 = vand.u32 %v113, 4294901760
    %v1298 = vsub.f32 %v113, %v1297
    %v1299 = vand.u32 %v1298, 4294901760
    %v1300 = vsub.f32 %v1298, %v1299
    %v1301 = vand.u32 %v1300, 4294901760
    %1302 = vmatpush1.msra.mxu0 %v1301
    %1303 = vmatprep.subr.mxu0 0.0
    %1304 = vmatpush1.msra.mxu0 0.0
    %1305 = vmatprep.subr.mxu0 0.0
    %1306 = vmatpush1.msra.mxu0 0.0
    %1307 = vmatprep.subr.mxu0 0.0
    %1308 = vmatpush1.msra.mxu0 0.0
    %1309 = vmatprep.subr.mxu0 0.0
    %1310 = vmatpush1.msra.mxu0 0.0
    %1311 = vmatprep.subr.mxu0 0.0
    %1312 = vmatpush1.msra.mxu0 0.0
    %1313 = vmatprep.subr.mxu0 0.0
    %1314 = vmatpush1.msra.mxu0 0.0
    %1315 = vmatprep.subr.mxu0 0.0
    %1316 = vmatpush1.msra.mxu0 0.0
    %1317 = vmatprep.subr.mxu0 0.0
    %1318 = vmatpush1.msra.mxu0 0.0
    %1319 = vmatprep.subr.mxu0 0.0
    %1320 = vmatpush1.msra.mxu0 0.0
    %1321 = vmatprep.subr.mxu0 0.0
    %1322 = vmatpush1.msra.mxu0 0.0
    %1323 = vmatprep.subr.mxu0 0.0
    %1324 = vmatpush1.msra.mxu0 0.0
    %1325 = vmatprep.subr.mxu0 0.0
    %1326 = vmatpush1.msra.mxu0 0.0
    %1327 = vmatprep.subr.mxu0 0.0
    %1328 = vmatpush1.msra.mxu0 0.0
    %1329 = vmatprep.subr.mxu0 0.0
    %1330 = vmatpush1.msra.mxu0 0.0
    %1331 = vmatprep.subr.mxu0 0.0
    %1332 = vmatpush1.msra.mxu0 0.0
    %1333 = vmatprep.subr.mxu0 0.0
    %1334 = vmatpush1.msra.mxu0 0.0
    %1335 = vmatprep.subr.mxu0 0.0
    %1336 = vmatpush1.msra.mxu0 0.0
    %1337 = vmatprep.subr.mxu0 0.0
    %1338 = vmatpush1.msra.mxu0 0.0
    %1339 = vmatprep.subr.mxu0 0.0
    %1340 = vmatpush1.msra.mxu0 0.0
    %1341 = vmatprep.subr.mxu0 0.0
    %1342 = vmatpush1.msra.mxu0 0.0
    %1343 = vmatprep.subr.mxu0 0.0
    %1344 = vmatpush1.msra.mxu0 0.0
    %1345 = vmatprep.subr.mxu0 0.0
    %1346 = vmatpush1.msra.mxu0 0.0
    %1347 = vmatprep.subr.mxu0 0.0
    %1348 = vmatpush1.msra.mxu0 0.0
    %1349 = vmatprep.subr.mxu0 0.0
    %1350 = vmatpush1.msra.mxu0 0.0
    %1351 = vmatprep.mubr.f32.mxu0 0.0
    %v1352 = vand.u32 %v1149, 4294901760
    %1353 = vmatmul.mubr.f32.gmra.mrb[0].mxu0 %v1352
    %v1354 = vpop.f32.mrb[0].mxu0
    %v1355 = vadd.f32 %v1234, %v1354
    %v1356 = vpop.f32.mrb[0].mxu0
    %1357 = vmatprep.mubr.f32.mxu0 0.0
    %v1358 = vand.u32 %v1152, 4294901760
    %1359 = vmatmul.mubr.f32.gmra.mrb[0].mxu0 %v1358
    %v1360 = vpop.f32.mrb[0].mxu0
    %v1361 = vadd.f32 %v1244, %v1360
    %v1362 = vpop.f32.mrb[0].mxu0
    %1363 = vdwg.mxu0
    %1364 = vmatprep.subr.mxu0 0.0
    %v1365 = vand.u32 %v106, 4294901760
    %v1366 = vsub.f32 %v106, %v1365
    %1367 = vmatpush1.msra.mxu0 %v1366
    %1368 = vmatprep.subr.mxu0 0.0
    %v1369 = vand.u32 %v107, 4294901760
    %v1370 = vsub.f32 %v107, %v1369
    %1371 = vmatpush1.msra.mxu0 %v1370
    %1372 = vmatprep.subr.mxu0 0.0
    %v1373 = vand.u32 %v108, 4294901760
    %v1374 = vsub.f32 %v108, %v1373
    %1375 = vmatpush1.msra.mxu0 %v1374
    %1376 = vmatprep.subr.mxu0 0.0
    %v1377 = vand.u32 %v109, 4294901760
    %v1378 = vsub.f32 %v109, %v1377
    %1379 = vmatpush1.msra.mxu0 %v1378
    %1380 = vmatprep.subr.mxu0 0.0
    %v1381 = vand.u32 %v110, 4294901760
    %v1382 = vsub.f32 %v110, %v1381
    %1383 = vmatpush1.msra.mxu0 %v1382
    %1384 = vmatprep.subr.mxu0 0.0
    %v1385 = vand.u32 %v111, 4294901760
    %v1386 = vsub.f32 %v111, %v1385
    %1387 = vmatpush1.msra.mxu0 %v1386
    %1388 = vmatprep.subr.mxu0 0.0
    %v1389 = vand.u32 %v112, 4294901760
    %v1390 = vsub.f32 %v112, %v1389
    %1391 = vmatpush1.msra.mxu0 %v1390
    %1392 = vmatprep.subr.mxu0 0.0
    %v1393 = vand.u32 %v113, 4294901760
    %v1394 = vsub.f32 %v113, %v1393
    %1395 = vmatpush1.msra.mxu0 %v1394
    %1396 = vmatprep.subr.mxu0 0.0
    %1397 = vmatpush1.msra.mxu0 0.0
    %1398 = vmatprep.subr.mxu0 0.0
    %1399 = vmatpush1.msra.mxu0 0.0
    %1400 = vmatprep.subr.mxu0 0.0
    %1401 = vmatpush1.msra.mxu0 0.0
    %1402 = vmatprep.subr.mxu0 0.0
    %1403 = vmatpush1.msra.mxu0 0.0
    %1404 = vmatprep.subr.mxu0 0.0
    %1405 = vmatpush1.msra.mxu0 0.0
    %1406 = vmatprep.subr.mxu0 0.0
    %1407 = vmatpush1.msra.mxu0 0.0
    %1408 = vmatprep.subr.mxu0 0.0
    %1409 = vmatpush1.msra.mxu0 0.0
    %1410 = vmatprep.subr.mxu0 0.0
    %1411 = vmatpush1.msra.mxu0 0.0
    %1412 = vmatprep.subr.mxu0 0.0
    %1413 = vmatpush1.msra.mxu0 0.0
    %1414 = vmatprep.subr.mxu0 0.0
    %1415 = vmatpush1.msra.mxu0 0.0
    %1416 = vmatprep.subr.mxu0 0.0
    %1417 = vmatpush1.msra.mxu0 0.0
    %1418 = vmatprep.subr.mxu0 0.0
    %1419 = vmatpush1.msra.mxu0 0.0
    %1420 = vmatprep.subr.mxu0 0.0
    %1421 = vmatpush1.msra.mxu0 0.0
    %1422 = vmatprep.subr.mxu0 0.0
    %1423 = vmatpush1.msra.mxu0 0.0
    %1424 = vmatprep.subr.mxu0 0.0
    %1425 = vmatpush1.msra.mxu0 0.0
    %1426 = vmatprep.subr.mxu0 0.0
    %1427 = vmatpush1.msra.mxu0 0.0
    %1428 = vmatprep.subr.mxu0 0.0
    %1429 = vmatpush1.msra.mxu0 0.0
    %1430 = vmatprep.subr.mxu0 0.0
    %1431 = vmatpush1.msra.mxu0 0.0
    %1432 = vmatprep.subr.mxu0 0.0
    %1433 = vmatpush1.msra.mxu0 0.0
    %1434 = vmatprep.subr.mxu0 0.0
    %1435 = vmatpush1.msra.mxu0 0.0
    %1436 = vmatprep.subr.mxu0 0.0
    %1437 = vmatpush1.msra.mxu0 0.0
    %1438 = vmatprep.subr.mxu0 0.0
    %1439 = vmatpush1.msra.mxu0 0.0
    %1440 = vmatprep.subr.mxu0 0.0
    %1441 = vmatpush1.msra.mxu0 0.0
    %1442 = vmatprep.subr.mxu0 0.0
    %1443 = vmatpush1.msra.mxu0 0.0
    %1444 = vmatprep.mubr.f32.mxu0 0.0
    %v1445 = vand.u32 %v1149, 4294901760
    %v1446 = vsub.f32 %v1149, %v1445
    %1447 = vmatmul.mubr.f32.gmra.mrb[0].mxu0 %v1446
    %v1448 = vpop.f32.mrb[0].mxu0
    %v1449 = vadd.f32 %v1355, %v1448
    %v1450 = vpop.f32.mrb[0].mxu0
    %1451 = vmatprep.mubr.f32.mxu0 0.0
    %v1452 = vand.u32 %v1152, 4294901760
    %v1453 = vsub.f32 %v1152, %v1452
    %1454 = vmatmul.mubr.f32.gmra.mrb[0].mxu0 %v1453
    %v1455 = vpop.f32.mrb[0].mxu0
    %v1456 = vadd.f32 %v1361, %v1455
    %v1457 = vpop.f32.mrb[0].mxu0
    %1458 = vdwg.mxu0
    %1459 = vmatprep.subr.mxu0 0.0
    %v1460 = vand.u32 %v106, 4294901760
    %1461 = vmatpush1.msra.mxu0 %v1460
    %1462 = vmatprep.subr.mxu0 0.0
    %v1463 = vand.u32 %v107, 4294901760
    %1464 = vmatpush1.msra.mxu0 %v1463
    %1465 = vmatprep.subr.mxu0 0.0
    %v1466 = vand.u32 %v108, 4294901760
    %1467 = vmatpush1.msra.mxu0 %v1466
    %1468 = vmatprep.subr.mxu0 0.0
    %v1469 = vand.u32 %v109, 4294901760
    %1470 = vmatpush1.msra.mxu0 %v1469
    %1471 = vmatprep.subr.mxu0 0.0
    %v1472 = vand.u32 %v110, 4294901760
    %1473 = vmatpush1.msra.mxu0 %v1472
    %1474 = vmatprep.subr.mxu0 0.0
    %v1475 = vand.u32 %v111, 4294901760
    %1476 = vmatpush1.msra.mxu0 %v1475
    %1477 = vmatprep.subr.mxu0 0.0
    %v1478 = vand.u32 %v112, 4294901760
    %1479 = vmatpush1.msra.mxu0 %v1478
    %1480 = vmatprep.subr.mxu0 0.0
    %v1481 = vand.u32 %v113, 4294901760
    %1482 = vmatpush1.msra.mxu0 %v1481
    %1483 = vmatprep.subr.mxu0 0.0
    %1484 = vmatpush1.msra.mxu0 0.0
    %1485 = vmatprep.subr.mxu0 0.0
    %1486 = vmatpush1.msra.mxu0 0.0
    %1487 = vmatprep.subr.mxu0 0.0
    %1488 = vmatpush1.msra.mxu0 0.0
    %1489 = vmatprep.subr.mxu0 0.0
    %1490 = vmatpush1.msra.mxu0 0.0
    %1491 = vmatprep.subr.mxu0 0.0
    %1492 = vmatpush1.msra.mxu0 0.0
    %1493 = vmatprep.subr.mxu0 0.0
    %1494 = vmatpush1.msra.mxu0 0.0
    %1495 = vmatprep.subr.mxu0 0.0
    %1496 = vmatpush1.msra.mxu0 0.0
    %1497 = vmatprep.subr.mxu0 0.0
    %1498 = vmatpush1.msra.mxu0 0.0
    %1499 = vmatprep.subr.mxu0 0.0
    %1500 = vmatpush1.msra.mxu0 0.0
    %1501 = vmatprep.subr.mxu0 0.0
    %1502 = vmatpush1.msra.mxu0 0.0
    %1503 = vmatprep.subr.mxu0 0.0
    %1504 = vmatpush1.msra.mxu0 0.0
    %1505 = vmatprep.subr.mxu0 0.0
    %1506 = vmatpush1.msra.mxu0 0.0
    %1507 = vmatprep.subr.mxu0 0.0
    %1508 = vmatpush1.msra.mxu0 0.0
    %1509 = vmatprep.subr.mxu0 0.0
    %1510 = vmatpush1.msra.mxu0 0.0
    %1511 = vmatprep.subr.mxu0 0.0
    %1512 = vmatpush1.msra.mxu0 0.0
    %1513 = vmatprep.subr.mxu0 0.0
    %1514 = vmatpush1.msra.mxu0 0.0
    %1515 = vmatprep.subr.mxu0 0.0
    %1516 = vmatpush1.msra.mxu0 0.0
    %1517 = vmatprep.subr.mxu0 0.0
    %1518 = vmatpush1.msra.mxu0 0.0
    %1519 = vmatprep.subr.mxu0 0.0
    %1520 = vmatpush1.msra.mxu0 0.0
    %1521 = vmatprep.subr.mxu0 0.0
    %1522 = vmatpush1.msra.mxu0 0.0
    %1523 = vmatprep.subr.mxu0 0.0
    %1524 = vmatpush1.msra.mxu0 0.0
    %1525 = vmatprep.subr.mxu0 0.0
    %1526 = vmatpush1.msra.mxu0 0.0
    %1527 = vmatprep.subr.mxu0 0.0
    %1528 = vmatpush1.msra.mxu0 0.0
    %1529 = vmatprep.subr.mxu0 0.0
    %1530 = vmatpush1.msra.mxu0 0.0
    %1531 = vmatprep.mubr.f32.mxu0 0.0
    %v1532 = vand.u32 %v1149, 4294901760
    %v1533 = vsub.f32 %v1149, %v1532
    %v1534 = vand.u32 %v1533, 4294901760
    %1535 = vmatmul.mubr.f32.gmra.mrb[0].mxu0 %v1534
    %v1536 = vpop.f32.mrb[0].mxu0
    %v1537 = vadd.f32 %v1449, %v1536
    %v1538 = vpop.f32.mrb[0].mxu0
    %1539 = vmatprep.mubr.f32.mxu0 0.0
    %v1540 = vand.u32 %v1152, 4294901760
    %v1541 = vsub.f32 %v1152, %v1540
    %v1542 = vand.u32 %v1541, 4294901760
    %1543 = vmatmul.mubr.f32.gmra.mrb[0].mxu0 %v1542
    %v1544 = vpop.f32.mrb[0].mxu0
    %v1545 = vadd.f32 %v1456, %v1544
    %v1546 = vpop.f32.mrb[0].mxu0
    %1547 = vdwg.mxu0
    %1548 = vmatprep.subr.mxu0 0.0
    %v1549 = vand.u32 %v106, 4294901760
    %v1550 = vsub.f32 %v106, %v1549
    %v1551 = vand.u32 %v1550, 4294901760
    %1552 = vmatpush1.msra.mxu0 %v1551
    %1553 = vmatprep.subr.mxu0 0.0
    %v1554 = vand.u32 %v107, 4294901760
    %v1555 = vsub.f32 %v107, %v1554
    %v1556 = vand.u32 %v1555, 4294901760
    %1557 = vmatpush1.msra.mxu0 %v1556
    %1558 = vmatprep.subr.mxu0 0.0
    %v1559 = vand.u32 %v108, 4294901760
    %v1560 = vsub.f32 %v108, %v1559
    %v1561 = vand.u32 %v1560, 4294901760
    %1562 = vmatpush1.msra.mxu0 %v1561
    %1563 = vmatprep.subr.mxu0 0.0
    %v1564 = vand.u32 %v109, 4294901760
    %v1565 = vsub.f32 %v109, %v1564
    %v1566 = vand.u32 %v1565, 4294901760
    %1567 = vmatpush1.msra.mxu0 %v1566
    %1568 = vmatprep.subr.mxu0 0.0
    %v1569 = vand.u32 %v110, 4294901760
    %v1570 = vsub.f32 %v110, %v1569
    %v1571 = vand.u32 %v1570, 4294901760
    %1572 = vmatpush1.msra.mxu0 %v1571
    %1573 = vmatprep.subr.mxu0 0.0
    %v1574 = vand.u32 %v111, 4294901760
    %v1575 = vsub.f32 %v111, %v1574
    %v1576 = vand.u32 %v1575, 4294901760
    %1577 = vmatpush1.msra.mxu0 %v1576
    %1578 = vmatprep.subr.mxu0 0.0
    %v1579 = vand.u32 %v112, 4294901760
    %v1580 = vsub.f32 %v112, %v1579
    %v1581 = vand.u32 %v1580, 4294901760
    %1582 = vmatpush1.msra.mxu0 %v1581
    %1583 = vmatprep.subr.mxu0 0.0
    %v1584 = vand.u32 %v113, 4294901760
    %v1585 = vsub.f32 %v113, %v1584
    %v1586 = vand.u32 %v1585, 4294901760
    %1587 = vmatpush1.msra.mxu0 %v1586
    %1588 = vmatprep.subr.mxu0 0.0
    %1589 = vmatpush1.msra.mxu0 0.0
    %1590 = vmatprep.subr.mxu0 0.0
    %1591 = vmatpush1.msra.mxu0 0.0
    %1592 = vmatprep.subr.mxu0 0.0
    %1593 = vmatpush1.msra.mxu0 0.0
    %1594 = vmatprep.subr.mxu0 0.0
    %1595 = vmatpush1.msra.mxu0 0.0
    %1596 = vmatprep.subr.mxu0 0.0
    %1597 = vmatpush1.msra.mxu0 0.0
    %1598 = vmatprep.subr.mxu0 0.0
    %1599 = vmatpush1.msra.mxu0 0.0
    %1600 = vmatprep.subr.mxu0 0.0
    %1601 = vmatpush1.msra.mxu0 0.0
    %1602 = vmatprep.subr.mxu0 0.0
    %1603 = vmatpush1.msra.mxu0 0.0
    %1604 = vmatprep.subr.mxu0 0.0
    %1605 = vmatpush1.msra.mxu0 0.0
    %1606 = vmatprep.subr.mxu0 0.0
    %1607 = vmatpush1.msra.mxu0 0.0
    %1608 = vmatprep.subr.mxu0 0.0
    %1609 = vmatpush1.msra.mxu0 0.0
    %1610 = vmatprep.subr.mxu0 0.0
    %1611 = vmatpush1.msra.mxu0 0.0
    %1612 = vmatprep.subr.mxu0 0.0
    %1613 = vmatpush1.msra.mxu0 0.0
    %1614 = vmatprep.subr.mxu0 0.0
    %1615 = vmatpush1.msra.mxu0 0.0
    %1616 = vmatprep.subr.mxu0 0.0
    %1617 = vmatpush1.msra.mxu0 0.0
    %1618 = vmatprep.subr.mxu0 0.0
    %1619 = vmatpush1.msra.mxu0 0.0
    %1620 = vmatprep.subr.mxu0 0.0
    %1621 = vmatpush1.msra.mxu0 0.0
    %1622 = vmatprep.subr.mxu0 0.0
    %1623 = vmatpush1.msra.mxu0 0.0
    %1624 = vmatprep.subr.mxu0 0.0
    %1625 = vmatpush1.msra.mxu0 0.0
    %1626 = vmatprep.subr.mxu0 0.0
    %1627 = vmatpush1.msra.mxu0 0.0
    %1628 = vmatprep.subr.mxu0 0.0
    %1629 = vmatpush1.msra.mxu0 0.0
    %1630 = vmatprep.subr.mxu0 0.0
    %1631 = vmatpush1.msra.mxu0 0.0
    %1632 = vmatprep.subr.mxu0 0.0
    %1633 = vmatpush1.msra.mxu0 0.0
    %1634 = vmatprep.subr.mxu0 0.0
    %1635 = vmatpush1.msra.mxu0 0.0
    %1636 = vmatprep.mubr.f32.mxu0 0.0
    %v1637 = vand.u32 %v1149, 4294901760
    %1638 = vmatmul.mubr.f32.gmra.mrb[0].mxu0 %v1637
    %v1639 = vpop.f32.mrb[0].mxu0
    %v1640 = vadd.f32 %v1537, %v1639
    %v1641 = vpop.f32.mrb[0].mxu0
    %1642 = vmatprep.mubr.f32.mxu0 0.0
    %v1643 = vand.u32 %v1152, 4294901760
    %1644 = vmatmul.mubr.f32.gmra.mrb[0].mxu0 %v1643
    %v1645 = vpop.f32.mrb[0].mxu0
    %v1646 = vadd.f32 %v1545, %v1645
    %v1647 = vpop.f32.mrb[0].mxu0
    %1648 = vdwg.mxu0
    %1649 = vmatprep.subr.mxu0 0.0
    %v1650 = vand.u32 %v106, 4294901760
    %1651 = vmatpush1.msra.mxu0 %v1650
    %1652 = vmatprep.subr.mxu0 0.0
    %v1653 = vand.u32 %v107, 4294901760
    %1654 = vmatpush1.msra.mxu0 %v1653
    %1655 = vmatprep.subr.mxu0 0.0
    %v1656 = vand.u32 %v108, 4294901760
    %1657 = vmatpush1.msra.mxu0 %v1656
    %1658 = vmatprep.subr.mxu0 0.0
    %v1659 = vand.u32 %v109, 4294901760
    %1660 = vmatpush1.msra.mxu0 %v1659
    %1661 = vmatprep.subr.mxu0 0.0
    %v1662 = vand.u32 %v110, 4294901760
    %1663 = vmatpush1.msra.mxu0 %v1662
    %1664 = vmatprep.subr.mxu0 0.0
    %v1665 = vand.u32 %v111, 4294901760
    %1666 = vmatpush1.msra.mxu0 %v1665
    %1667 = vmatprep.subr.mxu0 0.0
    %v1668 = vand.u32 %v112, 4294901760
    %1669 = vmatpush1.msra.mxu0 %v1668
    %1670 = vmatprep.subr.mxu0 0.0
    %v1671 = vand.u32 %v113, 4294901760
    %1672 = vmatpush1.msra.mxu0 %v1671
    %1673 = vmatprep.subr.mxu0 0.0
    %1674 = vmatpush1.msra.mxu0 0.0
    %1675 = vmatprep.subr.mxu0 0.0
    %1676 = vmatpush1.msra.mxu0 0.0
    %1677 = vmatprep.subr.mxu0 0.0
    %1678 = vmatpush1.msra.mxu0 0.0
    %1679 = vmatprep.subr.mxu0 0.0
    %1680 = vmatpush1.msra.mxu0 0.0
    %1681 = vmatprep.subr.mxu0 0.0
    %1682 = vmatpush1.msra.mxu0 0.0
    %1683 = vmatprep.subr.mxu0 0.0
    %1684 = vmatpush1.msra.mxu0 0.0
    %1685 = vmatprep.subr.mxu0 0.0
    %1686 = vmatpush1.msra.mxu0 0.0
    %1687 = vmatprep.subr.mxu0 0.0
    %1688 = vmatpush1.msra.mxu0 0.0
    %1689 = vmatprep.subr.mxu0 0.0
    %1690 = vmatpush1.msra.mxu0 0.0
    %1691 = vmatprep.subr.mxu0 0.0
    %1692 = vmatpush1.msra.mxu0 0.0
    %1693 = vmatprep.subr.mxu0 0.0
    %1694 = vmatpush1.msra.mxu0 0.0
    %1695 = vmatprep.subr.mxu0 0.0
    %1696 = vmatpush1.msra.mxu0 0.0
    %1697 = vmatprep.subr.mxu0 0.0
    %1698 = vmatpush1.msra.mxu0 0.0
    %1699 = vmatprep.subr.mxu0 0.0
    %1700 = vmatpush1.msra.mxu0 0.0
    %1701 = vmatprep.subr.mxu0 0.0
    %1702 = vmatpush1.msra.mxu0 0.0
    %1703 = vmatprep.subr.mxu0 0.0
    %1704 = vmatpush1.msra.mxu0 0.0
    %1705 = vmatprep.subr.mxu0 0.0
    %1706 = vmatpush1.msra.mxu0 0.0
    %1707 = vmatprep.subr.mxu0 0.0
    %1708 = vmatpush1.msra.mxu0 0.0
    %1709 = vmatprep.subr.mxu0 0.0
    %1710 = vmatpush1.msra.mxu0 0.0
    %1711 = vmatprep.subr.mxu0 0.0
    %1712 = vmatpush1.msra.mxu0 0.0
    %1713 = vmatprep.subr.mxu0 0.0
    %1714 = vmatpush1.msra.mxu0 0.0
    %1715 = vmatprep.subr.mxu0 0.0
    %1716 = vmatpush1.msra.mxu0 0.0
    %1717 = vmatprep.subr.mxu0 0.0
    %1718 = vmatpush1.msra.mxu0 0.0
    %1719 = vmatprep.subr.mxu0 0.0
    %1720 = vmatpush1.msra.mxu0 0.0
    %1721 = vmatprep.mubr.f32.mxu0 0.0
    %v1722 = vand.u32 %v1149, 4294901760
    %1723 = vmatmul.mubr.f32.gmra.mrb[0].mxu0 %v1722
    %v1724 = vpop.f32.mrb[0].mxu0
    %v1725 = vadd.f32 %v1640, %v1724
    %v1726 = vpop.f32.mrb[0].mxu0
    %1727 = vmatprep.mubr.f32.mxu0 0.0
    %v1728 = vand.u32 %v1152, 4294901760
    %1729 = vmatmul.mubr.f32.gmra.mrb[0].mxu0 %v1728
    %v1730 = vpop.f32.mrb[0].mxu0
    %v1731 = vadd.f32 %v1646, %v1730
    %v1732 = vpop.f32.mrb[0].mxu0
    %1733 = vdwg.mxu0
    %v1734 = vsel %vm678, %v1725, -inf
    %1735 = vmax.xlane.f32.xlu0 %v1734
    %v1736 = vpop.xlane.xlu0 %1735
    %v1737 = vsel %vm678, %v1731, -inf
    %1738 = vmax.xlane.f32.xlu0 %v1737
    %v1739 = vpop.xlane.xlu0 %1738
    %v1740 = vsub.f32 %v1725, %v1736
    %v1741 = vsub.f32 %v1731, %v1739
    %v1742 = vmul.f32 %v1740, 1.442695
    %v1743 = vpow.pop %v1742
    %v1744 = vmul.f32 %v1741, 1.442695
    %v1745 = vpow.pop %v1744
    %v1746 = vsel %vm678, %v1743, 0.0
    %1747 = vadd.xlane.f32.xlu0 %v1746
    %v1748 = vpop.xlane.xlu0 %1747
    %v1749 = vsel %vm678, %v1745, 0.0
    %1750 = vadd.xlane.f32.xlu0 %v1749
    %v1751 = vpop.xlane.xlu0 %1750
    %v1752 = vrcp.pop %v1748
    %v1753 = vmul.f32 %v1743, %v1752
    %v1754 = vrcp.pop %v1751
    %v1755 = vmul.f32 %v1745, %v1754
    %v1757 = vsel %vm678, %v1753, 0
    %v1760 = vsel %vm678, %v1755, 0
    %1762 = vmatprep.subr.mxu0 0.0
    %v1763 = vand.u32 %v684, 4294901760
    %1764 = vmatpush1.msra.mxu0 %v1763
    %1765 = vmatprep.subr.mxu0 0.0
    %1766 = vmatpush1.msra.mxu0 0.0
    %1767 = vmatprep.subr.mxu0 0.0
    %1768 = vmatpush1.msra.mxu0 0.0
    %1769 = vmatprep.subr.mxu0 0.0
    %1770 = vmatpush1.msra.mxu0 0.0
    %1771 = vmatprep.subr.mxu0 0.0
    %1772 = vmatpush1.msra.mxu0 0.0
    %1773 = vmatprep.subr.mxu0 0.0
    %1774 = vmatpush1.msra.mxu0 0.0
    %1775 = vmatprep.subr.mxu0 0.0
    %1776 = vmatpush1.msra.mxu0 0.0
    %1777 = vmatprep.subr.mxu0 0.0
    %1778 = vmatpush1.msra.mxu0 0.0
    %1779 = vmatprep.subr.mxu0 0.0
    %1780 = vmatpush1.msra.mxu0 0.0
    %1781 = vmatprep.subr.mxu0 0.0
    %1782 = vmatpush1.msra.mxu0 0.0
    %1783 = vmatprep.subr.mxu0 0.0
    %1784 = vmatpush1.msra.mxu0 0.0
    %1785 = vmatprep.subr.mxu0 0.0
    %1786 = vmatpush1.msra.mxu0 0.0
    %1787 = vmatprep.subr.mxu0 0.0
    %1788 = vmatpush1.msra.mxu0 0.0
    %1789 = vmatprep.subr.mxu0 0.0
    %1790 = vmatpush1.msra.mxu0 0.0
    %1791 = vmatprep.subr.mxu0 0.0
    %1792 = vmatpush1.msra.mxu0 0.0
    %1793 = vmatprep.subr.mxu0 0.0
    %1794 = vmatpush1.msra.mxu0 0.0
    %1795 = vmatprep.subr.mxu0 0.0
    %1796 = vmatpush1.msra.mxu0 0.0
    %1797 = vmatprep.subr.mxu0 0.0
    %1798 = vmatpush1.msra.mxu0 0.0
    %1799 = vmatprep.subr.mxu0 0.0
    %1800 = vmatpush1.msra.mxu0 0.0
    %1801 = vmatprep.subr.mxu0 0.0
    %1802 = vmatpush1.msra.mxu0 0.0
    %1803 = vmatprep.subr.mxu0 0.0
    %1804 = vmatpush1.msra.mxu0 0.0
    %1805 = vmatprep.subr.mxu0 0.0
    %1806 = vmatpush1.msra.mxu0 0.0
    %1807 = vmatprep.subr.mxu0 0.0
    %1808 = vmatpush1.msra.mxu0 0.0
    %1809 = vmatprep.subr.mxu0 0.0
    %1810 = vmatpush1.msra.mxu0 0.0
    %1811 = vmatprep.subr.mxu0 0.0
    %1812 = vmatpush1.msra.mxu0 0.0
    %1813 = vmatprep.subr.mxu0 0.0
    %1814 = vmatpush1.msra.mxu0 0.0
    %1815 = vmatprep.subr.mxu0 0.0
    %1816 = vmatpush1.msra.mxu0 0.0
    %1817 = vmatprep.subr.mxu0 0.0
    %1818 = vmatpush1.msra.mxu0 0.0
    %1819 = vmatprep.subr.mxu0 0.0
    %1820 = vmatpush1.msra.mxu0 0.0
    %1821 = vmatprep.subr.mxu0 0.0
    %1822 = vmatpush1.msra.mxu0 0.0
    %1823 = vmatprep.subr.mxu0 0.0
    %1824 = vmatpush1.msra.mxu0 0.0
    %1825 = vmatprep.subr.mxu0 0.0
    %1826 = vmatpush1.msra.mxu0 0.0
    %1827 = vmatprep.mubr.f32.mxu0 0.0
    %v1828 = vand.u32 %v1757, 4294901760
    %v1829 = vsub.f32 %v1757, %v1828
    %v1830 = vand.u32 %v1829, 4294901760
    %v1831 = vsub.f32 %v1829, %v1830
    %v1832 = vand.u32 %v1831, 4294901760
    %1833 = vmatmul.mubr.f32.gmra.mrb[0].mxu0 %v1832
    %v1834 = vpop.f32.mrb[0].mxu0
    %v1835 = vadd.f32 0.0, %v1834
    %v1836 = vpop.f32.mrb[0].mxu0
    %1837 = vmatprep.mubr.f32.mxu0 0.0
    %v1838 = vand.u32 %v1760, 4294901760
    %v1839 = vsub.f32 %v1760, %v1838
    %v1840 = vand.u32 %v1839, 4294901760
    %v1841 = vsub.f32 %v1839, %v1840
    %v1842 = vand.u32 %v1841, 4294901760
    %1843 = vmatmul.mubr.f32.gmra.mrb[0].mxu0 %v1842
    %v1844 = vpop.f32.mrb[0].mxu0
    %v1845 = vadd.f32 0.0, %v1844
    %v1846 = vpop.f32.mrb[0].mxu0
    %1847 = vdwg.mxu0
    %1848 = vmatprep.subr.mxu0 0.0
    %v1849 = vand.u32 %v684, 4294901760
    %v1850 = vsub.f32 %v684, %v1849
    %v1851 = vand.u32 %v1850, 4294901760
    %v1852 = vsub.f32 %v1850, %v1851
    %v1853 = vand.u32 %v1852, 4294901760
    %1854 = vmatpush1.msra.mxu0 %v1853
    %1855 = vmatprep.subr.mxu0 0.0
    %1856 = vmatpush1.msra.mxu0 0.0
    %1857 = vmatprep.subr.mxu0 0.0
    %1858 = vmatpush1.msra.mxu0 0.0
    %1859 = vmatprep.subr.mxu0 0.0
    %1860 = vmatpush1.msra.mxu0 0.0
    %1861 = vmatprep.subr.mxu0 0.0
    %1862 = vmatpush1.msra.mxu0 0.0
    %1863 = vmatprep.subr.mxu0 0.0
    %1864 = vmatpush1.msra.mxu0 0.0
    %1865 = vmatprep.subr.mxu0 0.0
    %1866 = vmatpush1.msra.mxu0 0.0
    %1867 = vmatprep.subr.mxu0 0.0
    %1868 = vmatpush1.msra.mxu0 0.0
    %1869 = vmatprep.subr.mxu0 0.0
    %1870 = vmatpush1.msra.mxu0 0.0
    %1871 = vmatprep.subr.mxu0 0.0
    %1872 = vmatpush1.msra.mxu0 0.0
    %1873 = vmatprep.subr.mxu0 0.0
    %1874 = vmatpush1.msra.mxu0 0.0
    %1875 = vmatprep.subr.mxu0 0.0
    %1876 = vmatpush1.msra.mxu0 0.0
    %1877 = vmatprep.subr.mxu0 0.0
    %1878 = vmatpush1.msra.mxu0 0.0
    %1879 = vmatprep.subr.mxu0 0.0
    %1880 = vmatpush1.msra.mxu0 0.0
    %1881 = vmatprep.subr.mxu0 0.0
    %1882 = vmatpush1.msra.mxu0 0.0
    %1883 = vmatprep.subr.mxu0 0.0
    %1884 = vmatpush1.msra.mxu0 0.0
    %1885 = vmatprep.subr.mxu0 0.0
    %1886 = vmatpush1.msra.mxu0 0.0
    %1887 = vmatprep.subr.mxu0 0.0
    %1888 = vmatpush1.msra.mxu0 0.0
    %1889 = vmatprep.subr.mxu0 0.0
    %1890 = vmatpush1.msra.mxu0 0.0
    %1891 = vmatprep.subr.mxu0 0.0
    %1892 = vmatpush1.msra.mxu0 0.0
    %1893 = vmatprep.subr.mxu0 0.0
    %1894 = vmatpush1.msra.mxu0 0.0
    %1895 = vmatprep.subr.mxu0 0.0
    %1896 = vmatpush1.msra.mxu0 0.0
    %1897 = vmatprep.subr.mxu0 0.0
    %1898 = vmatpush1.msra.mxu0 0.0
    %1899 = vmatprep.subr.mxu0 0.0
    %1900 = vmatpush1.msra.mxu0 0.0
    %1901 = vmatprep.subr.mxu0 0.0
    %1902 = vmatpush1.msra.mxu0 0.0
    %1903 = vmatprep.subr.mxu0 0.0
    %1904 = vmatpush1.msra.mxu0 0.0
    %1905 = vmatprep.subr.mxu0 0.0
    %1906 = vmatpush1.msra.mxu0 0.0
    %1907 = vmatprep.subr.mxu0 0.0
    %1908 = vmatpush1.msra.mxu0 0.0
    %1909 = vmatprep.subr.mxu0 0.0
    %1910 = vmatpush1.msra.mxu0 0.0
    %1911 = vmatprep.subr.mxu0 0.0
    %1912 = vmatpush1.msra.mxu0 0.0
    %1913 = vmatprep.subr.mxu0 0.0
    %1914 = vmatpush1.msra.mxu0 0.0
    %1915 = vmatprep.subr.mxu0 0.0
    %1916 = vmatpush1.msra.mxu0 0.0
    %1917 = vmatprep.mubr.f32.mxu0 0.0
    %v1918 = vand.u32 %v1757, 4294901760
    %1919 = vmatmul.mubr.f32.gmra.mrb[0].mxu0 %v1918
    %v1920 = vpop.f32.mrb[0].mxu0
    %v1921 = vadd.f32 %v1835, %v1920
    %v1922 = vpop.f32.mrb[0].mxu0
    %1923 = vmatprep.mubr.f32.mxu0 0.0
    %v1924 = vand.u32 %v1760, 4294901760
    %1925 = vmatmul.mubr.f32.gmra.mrb[0].mxu0 %v1924
    %v1926 = vpop.f32.mrb[0].mxu0
    %v1927 = vadd.f32 %v1845, %v1926
    %v1928 = vpop.f32.mrb[0].mxu0
    %1929 = vdwg.mxu0
    %1930 = vmatprep.subr.mxu0 0.0
    %v1931 = vand.u32 %v684, 4294901760
    %v1932 = vsub.f32 %v684, %v1931
    %1933 = vmatpush1.msra.mxu0 %v1932
    %1934 = vmatprep.subr.mxu0 0.0
    %1935 = vmatpush1.msra.mxu0 0.0
    %1936 = vmatprep.subr.mxu0 0.0
    %1937 = vmatpush1.msra.mxu0 0.0
    %1938 = vmatprep.subr.mxu0 0.0
    %1939 = vmatpush1.msra.mxu0 0.0
    %1940 = vmatprep.subr.mxu0 0.0
    %1941 = vmatpush1.msra.mxu0 0.0
    %1942 = vmatprep.subr.mxu0 0.0
    %1943 = vmatpush1.msra.mxu0 0.0
    %1944 = vmatprep.subr.mxu0 0.0
    %1945 = vmatpush1.msra.mxu0 0.0
    %1946 = vmatprep.subr.mxu0 0.0
    %1947 = vmatpush1.msra.mxu0 0.0
    %1948 = vmatprep.subr.mxu0 0.0
    %1949 = vmatpush1.msra.mxu0 0.0
    %1950 = vmatprep.subr.mxu0 0.0
    %1951 = vmatpush1.msra.mxu0 0.0
    %1952 = vmatprep.subr.mxu0 0.0
    %1953 = vmatpush1.msra.mxu0 0.0
    %1954 = vmatprep.subr.mxu0 0.0
    %1955 = vmatpush1.msra.mxu0 0.0
    %1956 = vmatprep.subr.mxu0 0.0
    %1957 = vmatpush1.msra.mxu0 0.0
    %1958 = vmatprep.subr.mxu0 0.0
    %1959 = vmatpush1.msra.mxu0 0.0
    %1960 = vmatprep.subr.mxu0 0.0
    %1961 = vmatpush1.msra.mxu0 0.0
    %1962 = vmatprep.subr.mxu0 0.0
    %1963 = vmatpush1.msra.mxu0 0.0
    %1964 = vmatprep.subr.mxu0 0.0
    %1965 = vmatpush1.msra.mxu0 0.0
    %1966 = vmatprep.subr.mxu0 0.0
    %1967 = vmatpush1.msra.mxu0 0.0
    %1968 = vmatprep.subr.mxu0 0.0
    %1969 = vmatpush1.msra.mxu0 0.0
    %1970 = vmatprep.subr.mxu0 0.0
    %1971 = vmatpush1.msra.mxu0 0.0
    %1972 = vmatprep.subr.mxu0 0.0
    %1973 = vmatpush1.msra.mxu0 0.0
    %1974 = vmatprep.subr.mxu0 0.0
    %1975 = vmatpush1.msra.mxu0 0.0
    %1976 = vmatprep.subr.mxu0 0.0
    %1977 = vmatpush1.msra.mxu0 0.0
    %1978 = vmatprep.subr.mxu0 0.0
    %1979 = vmatpush1.msra.mxu0 0.0
    %1980 = vmatprep.subr.mxu0 0.0
    %1981 = vmatpush1.msra.mxu0 0.0
    %1982 = vmatprep.subr.mxu0 0.0
    %1983 = vmatpush1.msra.mxu0 0.0
    %1984 = vmatprep.subr.mxu0 0.0
    %1985 = vmatpush1.msra.mxu0 0.0
    %1986 = vmatprep.subr.mxu0 0.0
    %1987 = vmatpush1.msra.mxu0 0.0
    %1988 = vmatprep.subr.mxu0 0.0
    %1989 = vmatpush1.msra.mxu0 0.0
    %1990 = vmatprep.subr.mxu0 0.0
    %1991 = vmatpush1.msra.mxu0 0.0
    %1992 = vmatprep.subr.mxu0 0.0
    %1993 = vmatpush1.msra.mxu0 0.0
    %1994 = vmatprep.subr.mxu0 0.0
    %1995 = vmatpush1.msra.mxu0 0.0
    %1996 = vmatprep.mubr.f32.mxu0 0.0
    %v1997 = vand.u32 %v1757, 4294901760
    %v1998 = vsub.f32 %v1757, %v1997
    %1999 = vmatmul.mubr.f32.gmra.mrb[0].mxu0 %v1998
    %v2000 = vpop.f32.mrb[0].mxu0
    %v2001 = vadd.f32 %v1921, %v2000
    %v2002 = vpop.f32.mrb[0].mxu0
    %2003 = vmatprep.mubr.f32.mxu0 0.0
    %v2004 = vand.u32 %v1760, 4294901760
    %v2005 = vsub.f32 %v1760, %v2004
    %2006 = vmatmul.mubr.f32.gmra.mrb[0].mxu0 %v2005
    %v2007 = vpop.f32.mrb[0].mxu0
    %v2008 = vadd.f32 %v1927, %v2007
    %v2009 = vpop.f32.mrb[0].mxu0
    %2010 = vdwg.mxu0
    %2011 = vmatprep.subr.mxu0 0.0
    %v2012 = vand.u32 %v684, 4294901760
    %2013 = vmatpush1.msra.mxu0 %v2012
    %2014 = vmatprep.subr.mxu0 0.0
    %2015 = vmatpush1.msra.mxu0 0.0
    %2016 = vmatprep.subr.mxu0 0.0
    %2017 = vmatpush1.msra.mxu0 0.0
    %2018 = vmatprep.subr.mxu0 0.0
    %2019 = vmatpush1.msra.mxu0 0.0
    %2020 = vmatprep.subr.mxu0 0.0
    %2021 = vmatpush1.msra.mxu0 0.0
    %2022 = vmatprep.subr.mxu0 0.0
    %2023 = vmatpush1.msra.mxu0 0.0
    %2024 = vmatprep.subr.mxu0 0.0
    %2025 = vmatpush1.msra.mxu0 0.0
    %2026 = vmatprep.subr.mxu0 0.0
    %2027 = vmatpush1.msra.mxu0 0.0
    %2028 = vmatprep.subr.mxu0 0.0
    %2029 = vmatpush1.msra.mxu0 0.0
    %2030 = vmatprep.subr.mxu0 0.0
    %2031 = vmatpush1.msra.mxu0 0.0
    %2032 = vmatprep.subr.mxu0 0.0
    %2033 = vmatpush1.msra.mxu0 0.0
    %2034 = vmatprep.subr.mxu0 0.0
    %2035 = vmatpush1.msra.mxu0 0.0
    %2036 = vmatprep.subr.mxu0 0.0
    %2037 = vmatpush1.msra.mxu0 0.0
    %2038 = vmatprep.subr.mxu0 0.0
    %2039 = vmatpush1.msra.mxu0 0.0
    %2040 = vmatprep.subr.mxu0 0.0
    %2041 = vmatpush1.msra.mxu0 0.0
    %2042 = vmatprep.subr.mxu0 0.0
    %2043 = vmatpush1.msra.mxu0 0.0
    %2044 = vmatprep.subr.mxu0 0.0
    %2045 = vmatpush1.msra.mxu0 0.0
    %2046 = vmatprep.subr.mxu0 0.0
    %2047 = vmatpush1.msra.mxu0 0.0
    %2048 = vmatprep.subr.mxu0 0.0
    %2049 = vmatpush1.msra.mxu0 0.0
    %2050 = vmatprep.subr.mxu0 0.0
    %2051 = vmatpush1.msra.mxu0 0.0
    %2052 = vmatprep.subr.mxu0 0.0
    %2053 = vmatpush1.msra.mxu0 0.0
    %2054 = vmatprep.subr.mxu0 0.0
    %2055 = vmatpush1.msra.mxu0 0.0
    %2056 = vmatprep.subr.mxu0 0.0
    %2057 = vmatpush1.msra.mxu0 0.0
    %2058 = vmatprep.subr.mxu0 0.0
    %2059 = vmatpush1.msra.mxu0 0.0
    %2060 = vmatprep.subr.mxu0 0.0
    %2061 = vmatpush1.msra.mxu0 0.0
    %2062 = vmatprep.subr.mxu0 0.0
    %2063 = vmatpush1.msra.mxu0 0.0
    %2064 = vmatprep.subr.mxu0 0.0
    %2065 = vmatpush1.msra.mxu0 0.0
    %2066 = vmatprep.subr.mxu0 0.0
    %2067 = vmatpush1.msra.mxu0 0.0
    %2068 = vmatprep.subr.mxu0 0.0
    %2069 = vmatpush1.msra.mxu0 0.0
    %2070 = vmatprep.subr.mxu0 0.0
    %2071 = vmatpush1.msra.mxu0 0.0
    %2072 = vmatprep.subr.mxu0 0.0
    %2073 = vmatpush1.msra.mxu0 0.0
    %2074 = vmatprep.subr.mxu0 0.0
    %2075 = vmatpush1.msra.mxu0 0.0
    %2076 = vmatprep.mubr.f32.mxu0 0.0
    %v2077 = vand.u32 %v1757, 4294901760
    %v2078 = vsub.f32 %v1757, %v2077
    %v2079 = vand.u32 %v2078, 4294901760
    %2080 = vmatmul.mubr.f32.gmra.mrb[0].mxu0 %v2079
    %v2081 = vpop.f32.mrb[0].mxu0
    %v2082 = vadd.f32 %v2001, %v2081
    %v2083 = vpop.f32.mrb[0].mxu0
    %2084 = vmatprep.mubr.f32.mxu0 0.0
    %v2085 = vand.u32 %v1760, 4294901760
    %v2086 = vsub.f32 %v1760, %v2085
    %v2087 = vand.u32 %v2086, 4294901760
    %2088 = vmatmul.mubr.f32.gmra.mrb[0].mxu0 %v2087
    %v2089 = vpop.f32.mrb[0].mxu0
    %v2090 = vadd.f32 %v2008, %v2089
    %v2091 = vpop.f32.mrb[0].mxu0
    %2092 = vdwg.mxu0
    %2093 = vmatprep.subr.mxu0 0.0
    %v2094 = vand.u32 %v684, 4294901760
    %v2095 = vsub.f32 %v684, %v2094
    %v2096 = vand.u32 %v2095, 4294901760
    %2097 = vmatpush1.msra.mxu0 %v2096
    %2098 = vmatprep.subr.mxu0 0.0
    %2099 = vmatpush1.msra.mxu0 0.0
    %2100 = vmatprep.subr.mxu0 0.0
    %2101 = vmatpush1.msra.mxu0 0.0
    %2102 = vmatprep.subr.mxu0 0.0
    %2103 = vmatpush1.msra.mxu0 0.0
    %2104 = vmatprep.subr.mxu0 0.0
    %2105 = vmatpush1.msra.mxu0 0.0
    %2106 = vmatprep.subr.mxu0 0.0
    %2107 = vmatpush1.msra.mxu0 0.0
    %2108 = vmatprep.subr.mxu0 0.0
    %2109 = vmatpush1.msra.mxu0 0.0
    %2110 = vmatprep.subr.mxu0 0.0
    %2111 = vmatpush1.msra.mxu0 0.0
    %2112 = vmatprep.subr.mxu0 0.0
    %2113 = vmatpush1.msra.mxu0 0.0
    %2114 = vmatprep.subr.mxu0 0.0
    %2115 = vmatpush1.msra.mxu0 0.0
    %2116 = vmatprep.subr.mxu0 0.0
    %2117 = vmatpush1.msra.mxu0 0.0
    %2118 = vmatprep.subr.mxu0 0.0
    %2119 = vmatpush1.msra.mxu0 0.0
    %2120 = vmatprep.subr.mxu0 0.0
    %2121 = vmatpush1.msra.mxu0 0.0
    %2122 = vmatprep.subr.mxu0 0.0
    %2123 = vmatpush1.msra.mxu0 0.0
    %2124 = vmatprep.subr.mxu0 0.0
    %2125 = vmatpush1.msra.mxu0 0.0
    %2126 = vmatprep.subr.mxu0 0.0
    %2127 = vmatpush1.msra.mxu0 0.0
    %2128 = vmatprep.subr.mxu0 0.0
    %2129 = vmatpush1.msra.mxu0 0.0
    %2130 = vmatprep.subr.mxu0 0.0
    %2131 = vmatpush1.msra.mxu0 0.0
    %2132 = vmatprep.subr.mxu0 0.0
    %2133 = vmatpush1.msra.mxu0 0.0
    %2134 = vmatprep.subr.mxu0 0.0
    %2135 = vmatpush1.msra.mxu0 0.0
    %2136 = vmatprep.subr.mxu0 0.0
    %2137 = vmatpush1.msra.mxu0 0.0
    %2138 = vmatprep.subr.mxu0 0.0
    %2139 = vmatpush1.msra.mxu0 0.0
    %2140 = vmatprep.subr.mxu0 0.0
    %2141 = vmatpush1.msra.mxu0 0.0
    %2142 = vmatprep.subr.mxu0 0.0
    %2143 = vmatpush1.msra.mxu0 0.0
    %2144 = vmatprep.subr.mxu0 0.0
    %2145 = vmatpush1.msra.mxu0 0.0
    %2146 = vmatprep.subr.mxu0 0.0
    %2147 = vmatpush1.msra.mxu0 0.0
    %2148 = vmatprep.subr.mxu0 0.0
    %2149 = vmatpush1.msra.mxu0 0.0
    %2150 = vmatprep.subr.mxu0 0.0
    %2151 = vmatpush1.msra.mxu0 0.0
    %2152 = vmatprep.subr.mxu0 0.0
    %2153 = vmatpush1.msra.mxu0 0.0
    %2154 = vmatprep.subr.mxu0 0.0
    %2155 = vmatpush1.msra.mxu0 0.0
    %2156 = vmatprep.subr.mxu0 0.0
    %2157 = vmatpush1.msra.mxu0 0.0
    %2158 = vmatprep.subr.mxu0 0.0
    %2159 = vmatpush1.msra.mxu0 0.0
    %2160 = vmatprep.mubr.f32.mxu0 0.0
    %v2161 = vand.u32 %v1757, 4294901760
    %2162 = vmatmul.mubr.f32.gmra.mrb[0].mxu0 %v2161
    %v2163 = vpop.f32.mrb[0].mxu0
    %v2164 = vadd.f32 %v2082, %v2163
    %v2165 = vpop.f32.mrb[0].mxu0
    %2166 = vmatprep.mubr.f32.mxu0 0.0
    %v2167 = vand.u32 %v1760, 4294901760
    %2168 = vmatmul.mubr.f32.gmra.mrb[0].mxu0 %v2167
    %v2169 = vpop.f32.mrb[0].mxu0
    %v2170 = vadd.f32 %v2090, %v2169
    %v2171 = vpop.f32.mrb[0].mxu0
    %2172 = vdwg.mxu0
    %2173 = vmatprep.subr.mxu0 0.0
    %v2174 = vand.u32 %v684, 4294901760
    %2175 = vmatpush1.msra.mxu0 %v2174
    %2176 = vmatprep.subr.mxu0 0.0
    %2177 = vmatpush1.msra.mxu0 0.0
    %2178 = vmatprep.subr.mxu0 0.0
    %2179 = vmatpush1.msra.mxu0 0.0
    %2180 = vmatprep.subr.mxu0 0.0
    %2181 = vmatpush1.msra.mxu0 0.0
    %2182 = vmatprep.subr.mxu0 0.0
    %2183 = vmatpush1.msra.mxu0 0.0
    %2184 = vmatprep.subr.mxu0 0.0
    %2185 = vmatpush1.msra.mxu0 0.0
    %2186 = vmatprep.subr.mxu0 0.0
    %2187 = vmatpush1.msra.mxu0 0.0
    %2188 = vmatprep.subr.mxu0 0.0
    %2189 = vmatpush1.msra.mxu0 0.0
    %2190 = vmatprep.subr.mxu0 0.0
    %2191 = vmatpush1.msra.mxu0 0.0
    %2192 = vmatprep.subr.mxu0 0.0
    %2193 = vmatpush1.msra.mxu0 0.0
    %2194 = vmatprep.subr.mxu0 0.0
    %2195 = vmatpush1.msra.mxu0 0.0
    %2196 = vmatprep.subr.mxu0 0.0
    %2197 = vmatpush1.msra.mxu0 0.0
    %2198 = vmatprep.subr.mxu0 0.0
    %2199 = vmatpush1.msra.mxu0 0.0
    %2200 = vmatprep.subr.mxu0 0.0
    %2201 = vmatpush1.msra.mxu0 0.0
    %2202 = vmatprep.subr.mxu0 0.0
    %2203 = vmatpush1.msra.mxu0 0.0
    %2204 = vmatprep.subr.mxu0 0.0
    %2205 = vmatpush1.msra.mxu0 0.0
    %2206 = vmatprep.subr.mxu0 0.0
    %2207 = vmatpush1.msra.mxu0 0.0
    %2208 = vmatprep.subr.mxu0 0.0
    %2209 = vmatpush1.msra.mxu0 0.0
    %2210 = vmatprep.subr.mxu0 0.0
    %2211 = vmatpush1.msra.mxu0 0.0
    %2212 = vmatprep.subr.mxu0 0.0
    %2213 = vmatpush1.msra.mxu0 0.0
    %2214 = vmatprep.subr.mxu0 0.0
    %2215 = vmatpush1.msra.mxu0 0.0
    %2216 = vmatprep.subr.mxu0 0.0
    %2217 = vmatpush1.msra.mxu0 0.0
    %2218 = vmatprep.subr.mxu0 0.0
    %2219 = vmatpush1.msra.mxu0 0.0
    %2220 = vmatprep.subr.mxu0 0.0
    %2221 = vmatpush1.msra.mxu0 0.0
    %2222 = vmatprep.subr.mxu0 0.0
    %2223 = vmatpush1.msra.mxu0 0.0
    %2224 = vmatprep.subr.mxu0 0.0
    %2225 = vmatpush1.msra.mxu0 0.0
    %2226 = vmatprep.subr.mxu0 0.0
    %2227 = vmatpush1.msra.mxu0 0.0
    %2228 = vmatprep.subr.mxu0 0.0
    %2229 = vmatpush1.msra.mxu0 0.0
    %2230 = vmatprep.subr.mxu0 0.0
    %2231 = vmatpush1.msra.mxu0 0.0
    %2232 = vmatprep.subr.mxu0 0.0
    %2233 = vmatpush1.msra.mxu0 0.0
    %2234 = vmatprep.subr.mxu0 0.0
    %2235 = vmatpush1.msra.mxu0 0.0
    %2236 = vmatprep.subr.mxu0 0.0
    %2237 = vmatpush1.msra.mxu0 0.0
    %2238 = vmatprep.mubr.f32.mxu0 0.0
    %v2239 = vand.u32 %v1757, 4294901760
    %2240 = vmatmul.mubr.f32.gmra.mrb[0].mxu0 %v2239
    %v2241 = vpop.f32.mrb[0].mxu0
    %v2242 = vadd.f32 %v2164, %v2241
    %v2243 = vpop.f32.mrb[0].mxu0
    %2244 = vmatprep.mubr.f32.mxu0 0.0
    %v2245 = vand.u32 %v1760, 4294901760
    %2246 = vmatmul.mubr.f32.gmra.mrb[0].mxu0 %v2245
    %v2247 = vpop.f32.mrb[0].mxu0
    %v2248 = vadd.f32 %v2170, %v2247
    %v2249 = vpop.f32.mrb[0].mxu0
    %2250 = vdwg.mxu0
    %v2251 = vmul.f32 %v2242, %v98
    %v2252 = vmul.f32 %v2248, %v103
    %v2253 = vsel %vm115, %v2251, 0.0
    %v2254 = vrot.slane %v2253, 4
    %v2255 = vadd.f32 %v2253, %v2254
    %v2256 = vrot.slane %v2255, 2
    %v2257 = vadd.f32 %v2255, %v2256
    %v2258 = vrot.slane %v2257, 1
    %v2259 = vadd.f32 %v2257, %v2258
    %v2260 = vsel %vm115, %v2252, 0.0
    %v2261 = vrot.slane %v2260, 4
    %v2262 = vadd.f32 %v2260, %v2261
    %v2263 = vrot.slane %v2262, 2
    %v2264 = vadd.f32 %v2262, %v2263
    %v2265 = vrot.slane %v2264, 1
    %v2266 = vadd.f32 %v2264, %v2265
    %v2267 = vmul.f32 %v2259, %v2259
    %v2268 = vmul.f32 %v2266, %v2266
    %v2271 = vsel %vm136, %v2268, %v2267
    %v2272 = vsel %vm115, %v2271, 0
    %2274 = vmatprep.subr.mxu0 0.0
    %v2275 = vand.u32 %v106, 4294901760
    %2276 = vmatpush1.msra.mxu0 %v2275
    %2277 = vmatprep.subr.mxu0 0.0
    %v2278 = vand.u32 %v107, 4294901760
    %2279 = vmatpush1.msra.mxu0 %v2278
    %2280 = vmatprep.subr.mxu0 0.0
    %v2281 = vand.u32 %v108, 4294901760
    %2282 = vmatpush1.msra.mxu0 %v2281
    %2283 = vmatprep.subr.mxu0 0.0
    %v2284 = vand.u32 %v109, 4294901760
    %2285 = vmatpush1.msra.mxu0 %v2284
    %2286 = vmatprep.subr.mxu0 0.0
    %v2287 = vand.u32 %v110, 4294901760
    %2288 = vmatpush1.msra.mxu0 %v2287
    %2289 = vmatprep.subr.mxu0 0.0
    %v2290 = vand.u32 %v111, 4294901760
    %2291 = vmatpush1.msra.mxu0 %v2290
    %2292 = vmatprep.subr.mxu0 0.0
    %v2293 = vand.u32 %v112, 4294901760
    %2294 = vmatpush1.msra.mxu0 %v2293
    %2295 = vmatprep.subr.mxu0 0.0
    %v2296 = vand.u32 %v113, 4294901760
    %2297 = vmatpush1.msra.mxu0 %v2296
    %2298 = vmatprep.subr.mxu0 0.0
    %2299 = vmatpush1.msra.mxu0 0.0
    %2300 = vmatprep.subr.mxu0 0.0
    %2301 = vmatpush1.msra.mxu0 0.0
    %2302 = vmatprep.subr.mxu0 0.0
    %2303 = vmatpush1.msra.mxu0 0.0
    %2304 = vmatprep.subr.mxu0 0.0
    %2305 = vmatpush1.msra.mxu0 0.0
    %2306 = vmatprep.subr.mxu0 0.0
    %2307 = vmatpush1.msra.mxu0 0.0
    %2308 = vmatprep.subr.mxu0 0.0
    %2309 = vmatpush1.msra.mxu0 0.0
    %2310 = vmatprep.subr.mxu0 0.0
    %2311 = vmatpush1.msra.mxu0 0.0
    %2312 = vmatprep.subr.mxu0 0.0
    %2313 = vmatpush1.msra.mxu0 0.0
    %2314 = vmatprep.subr.mxu0 0.0
    %2315 = vmatpush1.msra.mxu0 0.0
    %2316 = vmatprep.subr.mxu0 0.0
    %2317 = vmatpush1.msra.mxu0 0.0
    %2318 = vmatprep.subr.mxu0 0.0
    %2319 = vmatpush1.msra.mxu0 0.0
    %2320 = vmatprep.subr.mxu0 0.0
    %2321 = vmatpush1.msra.mxu0 0.0
    %2322 = vmatprep.subr.mxu0 0.0
    %2323 = vmatpush1.msra.mxu0 0.0
    %2324 = vmatprep.subr.mxu0 0.0
    %2325 = vmatpush1.msra.mxu0 0.0
    %2326 = vmatprep.subr.mxu0 0.0
    %2327 = vmatpush1.msra.mxu0 0.0
    %2328 = vmatprep.subr.mxu0 0.0
    %2329 = vmatpush1.msra.mxu0 0.0
    %2330 = vmatprep.subr.mxu0 0.0
    %2331 = vmatpush1.msra.mxu0 0.0
    %2332 = vmatprep.subr.mxu0 0.0
    %2333 = vmatpush1.msra.mxu0 0.0
    %2334 = vmatprep.subr.mxu0 0.0
    %2335 = vmatpush1.msra.mxu0 0.0
    %2336 = vmatprep.subr.mxu0 0.0
    %2337 = vmatpush1.msra.mxu0 0.0
    %2338 = vmatprep.subr.mxu0 0.0
    %2339 = vmatpush1.msra.mxu0 0.0
    %2340 = vmatprep.subr.mxu0 0.0
    %2341 = vmatpush1.msra.mxu0 0.0
    %2342 = vmatprep.subr.mxu0 0.0
    %2343 = vmatpush1.msra.mxu0 0.0
    %2344 = vmatprep.subr.mxu0 0.0
    %2345 = vmatpush1.msra.mxu0 0.0
    %2346 = vmatprep.mubr.f32.mxu0 0.0
    %v2347 = vand.u32 %v2272, 4294901760
    %v2348 = vsub.f32 %v2272, %v2347
    %v2349 = vand.u32 %v2348, 4294901760
    %v2350 = vsub.f32 %v2348, %v2349
    %v2351 = vand.u32 %v2350, 4294901760
    %2352 = vmatmul.mubr.f32.gmra.mrb[0].mxu0 %v2351
    %v2353 = vpop.f32.mrb[0].mxu0
    %v2354 = vadd.f32 1e-07, %v2353
    %v2355 = vpop.f32.mrb[0].mxu0
    %2356 = vdwg.mxu0
    %2357 = vmatprep.subr.mxu0 0.0
    %v2358 = vand.u32 %v106, 4294901760
    %v2359 = vsub.f32 %v106, %v2358
    %v2360 = vand.u32 %v2359, 4294901760
    %v2361 = vsub.f32 %v2359, %v2360
    %v2362 = vand.u32 %v2361, 4294901760
    %2363 = vmatpush1.msra.mxu0 %v2362
    %2364 = vmatprep.subr.mxu0 0.0
    %v2365 = vand.u32 %v107, 4294901760
    %v2366 = vsub.f32 %v107, %v2365
    %v2367 = vand.u32 %v2366, 4294901760
    %v2368 = vsub.f32 %v2366, %v2367
    %v2369 = vand.u32 %v2368, 4294901760
    %2370 = vmatpush1.msra.mxu0 %v2369
    %2371 = vmatprep.subr.mxu0 0.0
    %v2372 = vand.u32 %v108, 4294901760
    %v2373 = vsub.f32 %v108, %v2372
    %v2374 = vand.u32 %v2373, 4294901760
    %v2375 = vsub.f32 %v2373, %v2374
    %v2376 = vand.u32 %v2375, 4294901760
    %2377 = vmatpush1.msra.mxu0 %v2376
    %2378 = vmatprep.subr.mxu0 0.0
    %v2379 = vand.u32 %v109, 4294901760
    %v2380 = vsub.f32 %v109, %v2379
    %v2381 = vand.u32 %v2380, 4294901760
    %v2382 = vsub.f32 %v2380, %v2381
    %v2383 = vand.u32 %v2382, 4294901760
    %2384 = vmatpush1.msra.mxu0 %v2383
    %2385 = vmatprep.subr.mxu0 0.0
    %v2386 = vand.u32 %v110, 4294901760
    %v2387 = vsub.f32 %v110, %v2386
    %v2388 = vand.u32 %v2387, 4294901760
    %v2389 = vsub.f32 %v2387, %v2388
    %v2390 = vand.u32 %v2389, 4294901760
    %2391 = vmatpush1.msra.mxu0 %v2390
    %2392 = vmatprep.subr.mxu0 0.0
    %v2393 = vand.u32 %v111, 4294901760
    %v2394 = vsub.f32 %v111, %v2393
    %v2395 = vand.u32 %v2394, 4294901760
    %v2396 = vsub.f32 %v2394, %v2395
    %v2397 = vand.u32 %v2396, 4294901760
    %2398 = vmatpush1.msra.mxu0 %v2397
    %2399 = vmatprep.subr.mxu0 0.0
    %v2400 = vand.u32 %v112, 4294901760
    %v2401 = vsub.f32 %v112, %v2400
    %v2402 = vand.u32 %v2401, 4294901760
    %v2403 = vsub.f32 %v2401, %v2402
    %v2404 = vand.u32 %v2403, 4294901760
    %2405 = vmatpush1.msra.mxu0 %v2404
    %2406 = vmatprep.subr.mxu0 0.0
    %v2407 = vand.u32 %v113, 4294901760
    %v2408 = vsub.f32 %v113, %v2407
    %v2409 = vand.u32 %v2408, 4294901760
    %v2410 = vsub.f32 %v2408, %v2409
    %v2411 = vand.u32 %v2410, 4294901760
    %2412 = vmatpush1.msra.mxu0 %v2411
    %2413 = vmatprep.subr.mxu0 0.0
    %2414 = vmatpush1.msra.mxu0 0.0
    %2415 = vmatprep.subr.mxu0 0.0
    %2416 = vmatpush1.msra.mxu0 0.0
    %2417 = vmatprep.subr.mxu0 0.0
    %2418 = vmatpush1.msra.mxu0 0.0
    %2419 = vmatprep.subr.mxu0 0.0
    %2420 = vmatpush1.msra.mxu0 0.0
    %2421 = vmatprep.subr.mxu0 0.0
    %2422 = vmatpush1.msra.mxu0 0.0
    %2423 = vmatprep.subr.mxu0 0.0
    %2424 = vmatpush1.msra.mxu0 0.0
    %2425 = vmatprep.subr.mxu0 0.0
    %2426 = vmatpush1.msra.mxu0 0.0
    %2427 = vmatprep.subr.mxu0 0.0
    %2428 = vmatpush1.msra.mxu0 0.0
    %2429 = vmatprep.subr.mxu0 0.0
    %2430 = vmatpush1.msra.mxu0 0.0
    %2431 = vmatprep.subr.mxu0 0.0
    %2432 = vmatpush1.msra.mxu0 0.0
    %2433 = vmatprep.subr.mxu0 0.0
    %2434 = vmatpush1.msra.mxu0 0.0
    %2435 = vmatprep.subr.mxu0 0.0
    %2436 = vmatpush1.msra.mxu0 0.0
    %2437 = vmatprep.subr.mxu0 0.0
    %2438 = vmatpush1.msra.mxu0 0.0
    %2439 = vmatprep.subr.mxu0 0.0
    %2440 = vmatpush1.msra.mxu0 0.0
    %2441 = vmatprep.subr.mxu0 0.0
    %2442 = vmatpush1.msra.mxu0 0.0
    %2443 = vmatprep.subr.mxu0 0.0
    %2444 = vmatpush1.msra.mxu0 0.0
    %2445 = vmatprep.subr.mxu0 0.0
    %2446 = vmatpush1.msra.mxu0 0.0
    %2447 = vmatprep.subr.mxu0 0.0
    %2448 = vmatpush1.msra.mxu0 0.0
    %2449 = vmatprep.subr.mxu0 0.0
    %2450 = vmatpush1.msra.mxu0 0.0
    %2451 = vmatprep.subr.mxu0 0.0
    %2452 = vmatpush1.msra.mxu0 0.0
    %2453 = vmatprep.subr.mxu0 0.0
    %2454 = vmatpush1.msra.mxu0 0.0
    %2455 = vmatprep.subr.mxu0 0.0
    %2456 = vmatpush1.msra.mxu0 0.0
    %2457 = vmatprep.subr.mxu0 0.0
    %2458 = vmatpush1.msra.mxu0 0.0
    %2459 = vmatprep.subr.mxu0 0.0
    %2460 = vmatpush1.msra.mxu0 0.0
    %2461 = vmatprep.mubr.f32.mxu0 0.0
    %v2462 = vand.u32 %v2272, 4294901760
    %2463 = vmatmul.mubr.f32.gmra.mrb[0].mxu0 %v2462
    %v2464 = vpop.f32.mrb[0].mxu0
    %v2465 = vadd.f32 %v2354, %v2464
    %v2466 = vpop.f32.mrb[0].mxu0
    %2467 = vdwg.mxu0
    %2468 = vmatprep.subr.mxu0 0.0
    %v2469 = vand.u32 %v106, 4294901760
    %v2470 = vsub.f32 %v106, %v2469
    %2471 = vmatpush1.msra.mxu0 %v2470
    %2472 = vmatprep.subr.mxu0 0.0
    %v2473 = vand.u32 %v107, 4294901760
    %v2474 = vsub.f32 %v107, %v2473
    %2475 = vmatpush1.msra.mxu0 %v2474
    %2476 = vmatprep.subr.mxu0 0.0
    %v2477 = vand.u32 %v108, 4294901760
    %v2478 = vsub.f32 %v108, %v2477
    %2479 = vmatpush1.msra.mxu0 %v2478
    %2480 = vmatprep.subr.mxu0 0.0
    %v2481 = vand.u32 %v109, 4294901760
    %v2482 = vsub.f32 %v109, %v2481
    %2483 = vmatpush1.msra.mxu0 %v2482
    %2484 = vmatprep.subr.mxu0 0.0
    %v2485 = vand.u32 %v110, 4294901760
    %v2486 = vsub.f32 %v110, %v2485
    %2487 = vmatpush1.msra.mxu0 %v2486
    %2488 = vmatprep.subr.mxu0 0.0
    %v2489 = vand.u32 %v111, 4294901760
    %v2490 = vsub.f32 %v111, %v2489
    %2491 = vmatpush1.msra.mxu0 %v2490
    %2492 = vmatprep.subr.mxu0 0.0
    %v2493 = vand.u32 %v112, 4294901760
    %v2494 = vsub.f32 %v112, %v2493
    %2495 = vmatpush1.msra.mxu0 %v2494
    %2496 = vmatprep.subr.mxu0 0.0
    %v2497 = vand.u32 %v113, 4294901760
    %v2498 = vsub.f32 %v113, %v2497
    %2499 = vmatpush1.msra.mxu0 %v2498
    %2500 = vmatprep.subr.mxu0 0.0
    %2501 = vmatpush1.msra.mxu0 0.0
    %2502 = vmatprep.subr.mxu0 0.0
    %2503 = vmatpush1.msra.mxu0 0.0
    %2504 = vmatprep.subr.mxu0 0.0
    %2505 = vmatpush1.msra.mxu0 0.0
    %2506 = vmatprep.subr.mxu0 0.0
    %2507 = vmatpush1.msra.mxu0 0.0
    %2508 = vmatprep.subr.mxu0 0.0
    %2509 = vmatpush1.msra.mxu0 0.0
    %2510 = vmatprep.subr.mxu0 0.0
    %2511 = vmatpush1.msra.mxu0 0.0
    %2512 = vmatprep.subr.mxu0 0.0
    %2513 = vmatpush1.msra.mxu0 0.0
    %2514 = vmatprep.subr.mxu0 0.0
    %2515 = vmatpush1.msra.mxu0 0.0
    %2516 = vmatprep.subr.mxu0 0.0
    %2517 = vmatpush1.msra.mxu0 0.0
    %2518 = vmatprep.subr.mxu0 0.0
    %2519 = vmatpush1.msra.mxu0 0.0
    %2520 = vmatprep.subr.mxu0 0.0
    %2521 = vmatpush1.msra.mxu0 0.0
    %2522 = vmatprep.subr.mxu0 0.0
    %2523 = vmatpush1.msra.mxu0 0.0
    %2524 = vmatprep.subr.mxu0 0.0
    %2525 = vmatpush1.msra.mxu0 0.0
    %2526 = vmatprep.subr.mxu0 0.0
    %2527 = vmatpush1.msra.mxu0 0.0
    %2528 = vmatprep.subr.mxu0 0.0
    %2529 = vmatpush1.msra.mxu0 0.0
    %2530 = vmatprep.subr.mxu0 0.0
    %2531 = vmatpush1.msra.mxu0 0.0
    %2532 = vmatprep.subr.mxu0 0.0
    %2533 = vmatpush1.msra.mxu0 0.0
    %2534 = vmatprep.subr.mxu0 0.0
    %2535 = vmatpush1.msra.mxu0 0.0
    %2536 = vmatprep.subr.mxu0 0.0
    %2537 = vmatpush1.msra.mxu0 0.0
    %2538 = vmatprep.subr.mxu0 0.0
    %2539 = vmatpush1.msra.mxu0 0.0
    %2540 = vmatprep.subr.mxu0 0.0
    %2541 = vmatpush1.msra.mxu0 0.0
    %2542 = vmatprep.subr.mxu0 0.0
    %2543 = vmatpush1.msra.mxu0 0.0
    %2544 = vmatprep.subr.mxu0 0.0
    %2545 = vmatpush1.msra.mxu0 0.0
    %2546 = vmatprep.subr.mxu0 0.0
    %2547 = vmatpush1.msra.mxu0 0.0
    %2548 = vmatprep.mubr.f32.mxu0 0.0
    %v2549 = vand.u32 %v2272, 4294901760
    %v2550 = vsub.f32 %v2272, %v2549
    %2551 = vmatmul.mubr.f32.gmra.mrb[0].mxu0 %v2550
    %v2552 = vpop.f32.mrb[0].mxu0
    %v2553 = vadd.f32 %v2465, %v2552
    %v2554 = vpop.f32.mrb[0].mxu0
    %2555 = vdwg.mxu0
    %2556 = vmatprep.subr.mxu0 0.0
    %v2557 = vand.u32 %v106, 4294901760
    %2558 = vmatpush1.msra.mxu0 %v2557
    %2559 = vmatprep.subr.mxu0 0.0
    %v2560 = vand.u32 %v107, 4294901760
    %2561 = vmatpush1.msra.mxu0 %v2560
    %2562 = vmatprep.subr.mxu0 0.0
    %v2563 = vand.u32 %v108, 4294901760
    %2564 = vmatpush1.msra.mxu0 %v2563
    %2565 = vmatprep.subr.mxu0 0.0
    %v2566 = vand.u32 %v109, 4294901760
    %2567 = vmatpush1.msra.mxu0 %v2566
    %2568 = vmatprep.subr.mxu0 0.0
    %v2569 = vand.u32 %v110, 4294901760
    %2570 = vmatpush1.msra.mxu0 %v2569
    %2571 = vmatprep.subr.mxu0 0.0
    %v2572 = vand.u32 %v111, 4294901760
    %2573 = vmatpush1.msra.mxu0 %v2572
    %2574 = vmatprep.subr.mxu0 0.0
    %v2575 = vand.u32 %v112, 4294901760
    %2576 = vmatpush1.msra.mxu0 %v2575
    %2577 = vmatprep.subr.mxu0 0.0
    %v2578 = vand.u32 %v113, 4294901760
    %2579 = vmatpush1.msra.mxu0 %v2578
    %2580 = vmatprep.subr.mxu0 0.0
    %2581 = vmatpush1.msra.mxu0 0.0
    %2582 = vmatprep.subr.mxu0 0.0
    %2583 = vmatpush1.msra.mxu0 0.0
    %2584 = vmatprep.subr.mxu0 0.0
    %2585 = vmatpush1.msra.mxu0 0.0
    %2586 = vmatprep.subr.mxu0 0.0
    %2587 = vmatpush1.msra.mxu0 0.0
    %2588 = vmatprep.subr.mxu0 0.0
    %2589 = vmatpush1.msra.mxu0 0.0
    %2590 = vmatprep.subr.mxu0 0.0
    %2591 = vmatpush1.msra.mxu0 0.0
    %2592 = vmatprep.subr.mxu0 0.0
    %2593 = vmatpush1.msra.mxu0 0.0
    %2594 = vmatprep.subr.mxu0 0.0
    %2595 = vmatpush1.msra.mxu0 0.0
    %2596 = vmatprep.subr.mxu0 0.0
    %2597 = vmatpush1.msra.mxu0 0.0
    %2598 = vmatprep.subr.mxu0 0.0
    %2599 = vmatpush1.msra.mxu0 0.0
    %2600 = vmatprep.subr.mxu0 0.0
    %2601 = vmatpush1.msra.mxu0 0.0
    %2602 = vmatprep.subr.mxu0 0.0
    %2603 = vmatpush1.msra.mxu0 0.0
    %2604 = vmatprep.subr.mxu0 0.0
    %2605 = vmatpush1.msra.mxu0 0.0
    %2606 = vmatprep.subr.mxu0 0.0
    %2607 = vmatpush1.msra.mxu0 0.0
    %2608 = vmatprep.subr.mxu0 0.0
    %2609 = vmatpush1.msra.mxu0 0.0
    %2610 = vmatprep.subr.mxu0 0.0
    %2611 = vmatpush1.msra.mxu0 0.0
    %2612 = vmatprep.subr.mxu0 0.0
    %2613 = vmatpush1.msra.mxu0 0.0
    %2614 = vmatprep.subr.mxu0 0.0
    %2615 = vmatpush1.msra.mxu0 0.0
    %2616 = vmatprep.subr.mxu0 0.0
    %2617 = vmatpush1.msra.mxu0 0.0
    %2618 = vmatprep.subr.mxu0 0.0
    %2619 = vmatpush1.msra.mxu0 0.0
    %2620 = vmatprep.subr.mxu0 0.0
    %2621 = vmatpush1.msra.mxu0 0.0
    %2622 = vmatprep.subr.mxu0 0.0
    %2623 = vmatpush1.msra.mxu0 0.0
    %2624 = vmatprep.subr.mxu0 0.0
    %2625 = vmatpush1.msra.mxu0 0.0
    %2626 = vmatprep.subr.mxu0 0.0
    %2627 = vmatpush1.msra.mxu0 0.0
    %2628 = vmatprep.mubr.f32.mxu0 0.0
    %v2629 = vand.u32 %v2272, 4294901760
    %v2630 = vsub.f32 %v2272, %v2629
    %v2631 = vand.u32 %v2630, 4294901760
    %2632 = vmatmul.mubr.f32.gmra.mrb[0].mxu0 %v2631
    %v2633 = vpop.f32.mrb[0].mxu0
    %v2634 = vadd.f32 %v2553, %v2633
    %v2635 = vpop.f32.mrb[0].mxu0
    %2636 = vdwg.mxu0
    %2637 = vmatprep.subr.mxu0 0.0
    %v2638 = vand.u32 %v106, 4294901760
    %v2639 = vsub.f32 %v106, %v2638
    %v2640 = vand.u32 %v2639, 4294901760
    %2641 = vmatpush1.msra.mxu0 %v2640
    %2642 = vmatprep.subr.mxu0 0.0
    %v2643 = vand.u32 %v107, 4294901760
    %v2644 = vsub.f32 %v107, %v2643
    %v2645 = vand.u32 %v2644, 4294901760
    %2646 = vmatpush1.msra.mxu0 %v2645
    %2647 = vmatprep.subr.mxu0 0.0
    %v2648 = vand.u32 %v108, 4294901760
    %v2649 = vsub.f32 %v108, %v2648
    %v2650 = vand.u32 %v2649, 4294901760
    %2651 = vmatpush1.msra.mxu0 %v2650
    %2652 = vmatprep.subr.mxu0 0.0
    %v2653 = vand.u32 %v109, 4294901760
    %v2654 = vsub.f32 %v109, %v2653
    %v2655 = vand.u32 %v2654, 4294901760
    %2656 = vmatpush1.msra.mxu0 %v2655
    %2657 = vmatprep.subr.mxu0 0.0
    %v2658 = vand.u32 %v110, 4294901760
    %v2659 = vsub.f32 %v110, %v2658
    %v2660 = vand.u32 %v2659, 4294901760
    %2661 = vmatpush1.msra.mxu0 %v2660
    %2662 = vmatprep.subr.mxu0 0.0
    %v2663 = vand.u32 %v111, 4294901760
    %v2664 = vsub.f32 %v111, %v2663
    %v2665 = vand.u32 %v2664, 4294901760
    %2666 = vmatpush1.msra.mxu0 %v2665
    %2667 = vmatprep.subr.mxu0 0.0
    %v2668 = vand.u32 %v112, 4294901760
    %v2669 = vsub.f32 %v112, %v2668
    %v2670 = vand.u32 %v2669, 4294901760
    %2671 = vmatpush1.msra.mxu0 %v2670
    %2672 = vmatprep.subr.mxu0 0.0
    %v2673 = vand.u32 %v113, 4294901760
    %v2674 = vsub.f32 %v113, %v2673
    %v2675 = vand.u32 %v2674, 4294901760
    %2676 = vmatpush1.msra.mxu0 %v2675
    %2677 = vmatprep.subr.mxu0 0.0
    %2678 = vmatpush1.msra.mxu0 0.0
    %2679 = vmatprep.subr.mxu0 0.0
    %2680 = vmatpush1.msra.mxu0 0.0
    %2681 = vmatprep.subr.mxu0 0.0
    %2682 = vmatpush1.msra.mxu0 0.0
    %2683 = vmatprep.subr.mxu0 0.0
    %2684 = vmatpush1.msra.mxu0 0.0
    %2685 = vmatprep.subr.mxu0 0.0
    %2686 = vmatpush1.msra.mxu0 0.0
    %2687 = vmatprep.subr.mxu0 0.0
    %2688 = vmatpush1.msra.mxu0 0.0
    %2689 = vmatprep.subr.mxu0 0.0
    %2690 = vmatpush1.msra.mxu0 0.0
    %2691 = vmatprep.subr.mxu0 0.0
    %2692 = vmatpush1.msra.mxu0 0.0
    %2693 = vmatprep.subr.mxu0 0.0
    %2694 = vmatpush1.msra.mxu0 0.0
    %2695 = vmatprep.subr.mxu0 0.0
    %2696 = vmatpush1.msra.mxu0 0.0
    %2697 = vmatprep.subr.mxu0 0.0
    %2698 = vmatpush1.msra.mxu0 0.0
    %2699 = vmatprep.subr.mxu0 0.0
    %2700 = vmatpush1.msra.mxu0 0.0
    %2701 = vmatprep.subr.mxu0 0.0
    %2702 = vmatpush1.msra.mxu0 0.0
    %2703 = vmatprep.subr.mxu0 0.0
    %2704 = vmatpush1.msra.mxu0 0.0
    %2705 = vmatprep.subr.mxu0 0.0
    %2706 = vmatpush1.msra.mxu0 0.0
    %2707 = vmatprep.subr.mxu0 0.0
    %2708 = vmatpush1.msra.mxu0 0.0
    %2709 = vmatprep.subr.mxu0 0.0
    %2710 = vmatpush1.msra.mxu0 0.0
    %2711 = vmatprep.subr.mxu0 0.0
    %2712 = vmatpush1.msra.mxu0 0.0
    %2713 = vmatprep.subr.mxu0 0.0
    %2714 = vmatpush1.msra.mxu0 0.0
    %2715 = vmatprep.subr.mxu0 0.0
    %2716 = vmatpush1.msra.mxu0 0.0
    %2717 = vmatprep.subr.mxu0 0.0
    %2718 = vmatpush1.msra.mxu0 0.0
    %2719 = vmatprep.subr.mxu0 0.0
    %2720 = vmatpush1.msra.mxu0 0.0
    %2721 = vmatprep.subr.mxu0 0.0
    %2722 = vmatpush1.msra.mxu0 0.0
    %2723 = vmatprep.subr.mxu0 0.0
    %2724 = vmatpush1.msra.mxu0 0.0
    %2725 = vmatprep.mubr.f32.mxu0 0.0
    %v2726 = vand.u32 %v2272, 4294901760
    %2727 = vmatmul.mubr.f32.gmra.mrb[0].mxu0 %v2726
    %v2728 = vpop.f32.mrb[0].mxu0
    %v2729 = vadd.f32 %v2634, %v2728
    %v2730 = vpop.f32.mrb[0].mxu0
    %2731 = vdwg.mxu0
    %2732 = vmatprep.subr.mxu0 0.0
    %v2733 = vand.u32 %v106, 4294901760
    %2734 = vmatpush1.msra.mxu0 %v2733
    %2735 = vmatprep.subr.mxu0 0.0
    %v2736 = vand.u32 %v107, 4294901760
    %2737 = vmatpush1.msra.mxu0 %v2736
    %2738 = vmatprep.subr.mxu0 0.0
    %v2739 = vand.u32 %v108, 4294901760
    %2740 = vmatpush1.msra.mxu0 %v2739
    %2741 = vmatprep.subr.mxu0 0.0
    %v2742 = vand.u32 %v109, 4294901760
    %2743 = vmatpush1.msra.mxu0 %v2742
    %2744 = vmatprep.subr.mxu0 0.0
    %v2745 = vand.u32 %v110, 4294901760
    %2746 = vmatpush1.msra.mxu0 %v2745
    %2747 = vmatprep.subr.mxu0 0.0
    %v2748 = vand.u32 %v111, 4294901760
    %2749 = vmatpush1.msra.mxu0 %v2748
    %2750 = vmatprep.subr.mxu0 0.0
    %v2751 = vand.u32 %v112, 4294901760
    %2752 = vmatpush1.msra.mxu0 %v2751
    %2753 = vmatprep.subr.mxu0 0.0
    %v2754 = vand.u32 %v113, 4294901760
    %2755 = vmatpush1.msra.mxu0 %v2754
    %2756 = vmatprep.subr.mxu0 0.0
    %2757 = vmatpush1.msra.mxu0 0.0
    %2758 = vmatprep.subr.mxu0 0.0
    %2759 = vmatpush1.msra.mxu0 0.0
    %2760 = vmatprep.subr.mxu0 0.0
    %2761 = vmatpush1.msra.mxu0 0.0
    %2762 = vmatprep.subr.mxu0 0.0
    %2763 = vmatpush1.msra.mxu0 0.0
    %2764 = vmatprep.subr.mxu0 0.0
    %2765 = vmatpush1.msra.mxu0 0.0
    %2766 = vmatprep.subr.mxu0 0.0
    %2767 = vmatpush1.msra.mxu0 0.0
    %2768 = vmatprep.subr.mxu0 0.0
    %2769 = vmatpush1.msra.mxu0 0.0
    %2770 = vmatprep.subr.mxu0 0.0
    %2771 = vmatpush1.msra.mxu0 0.0
    %2772 = vmatprep.subr.mxu0 0.0
    %2773 = vmatpush1.msra.mxu0 0.0
    %2774 = vmatprep.subr.mxu0 0.0
    %2775 = vmatpush1.msra.mxu0 0.0
    %2776 = vmatprep.subr.mxu0 0.0
    %2777 = vmatpush1.msra.mxu0 0.0
    %2778 = vmatprep.subr.mxu0 0.0
    %2779 = vmatpush1.msra.mxu0 0.0
    %2780 = vmatprep.subr.mxu0 0.0
    %2781 = vmatpush1.msra.mxu0 0.0
    %2782 = vmatprep.subr.mxu0 0.0
    %2783 = vmatpush1.msra.mxu0 0.0
    %2784 = vmatprep.subr.mxu0 0.0
    %2785 = vmatpush1.msra.mxu0 0.0
    %2786 = vmatprep.subr.mxu0 0.0
    %2787 = vmatpush1.msra.mxu0 0.0
    %2788 = vmatprep.subr.mxu0 0.0
    %2789 = vmatpush1.msra.mxu0 0.0
    %2790 = vmatprep.subr.mxu0 0.0
    %2791 = vmatpush1.msra.mxu0 0.0
    %2792 = vmatprep.subr.mxu0 0.0
    %2793 = vmatpush1.msra.mxu0 0.0
    %2794 = vmatprep.subr.mxu0 0.0
    %2795 = vmatpush1.msra.mxu0 0.0
    %2796 = vmatprep.subr.mxu0 0.0
    %2797 = vmatpush1.msra.mxu0 0.0
    %2798 = vmatprep.subr.mxu0 0.0
    %2799 = vmatpush1.msra.mxu0 0.0
    %2800 = vmatprep.subr.mxu0 0.0
    %2801 = vmatpush1.msra.mxu0 0.0
    %2802 = vmatprep.subr.mxu0 0.0
    %2803 = vmatpush1.msra.mxu0 0.0
    %2804 = vmatprep.mubr.f32.mxu0 0.0
    %v2805 = vand.u32 %v2272, 4294901760
    %2806 = vmatmul.mubr.f32.gmra.mrb[0].mxu0 %v2805
    %v2807 = vpop.f32.mrb[0].mxu0
    %v2808 = vadd.f32 %v2729, %v2807
    %v2809 = vpop.f32.mrb[0].mxu0
    %2810 = vdwg.mxu0
    %v2811 = vrsqrt.pop %v2808
    %v2813 = vsel %vm678, %v2811, 0
    %2815 = vmatprep.subr.mxu0 0.0
    %v2816 = vand.u32 %v684, 4294901760
    %2817 = vmatpush1.msra.mxu0 %v2816
    %2818 = vmatprep.subr.mxu0 0.0
    %2819 = vmatpush1.msra.mxu0 0.0
    %2820 = vmatprep.subr.mxu0 0.0
    %2821 = vmatpush1.msra.mxu0 0.0
    %2822 = vmatprep.subr.mxu0 0.0
    %2823 = vmatpush1.msra.mxu0 0.0
    %2824 = vmatprep.subr.mxu0 0.0
    %2825 = vmatpush1.msra.mxu0 0.0
    %2826 = vmatprep.subr.mxu0 0.0
    %2827 = vmatpush1.msra.mxu0 0.0
    %2828 = vmatprep.subr.mxu0 0.0
    %2829 = vmatpush1.msra.mxu0 0.0
    %2830 = vmatprep.subr.mxu0 0.0
    %2831 = vmatpush1.msra.mxu0 0.0
    %2832 = vmatprep.subr.mxu0 0.0
    %2833 = vmatpush1.msra.mxu0 0.0
    %2834 = vmatprep.subr.mxu0 0.0
    %2835 = vmatpush1.msra.mxu0 0.0
    %2836 = vmatprep.subr.mxu0 0.0
    %2837 = vmatpush1.msra.mxu0 0.0
    %2838 = vmatprep.subr.mxu0 0.0
    %2839 = vmatpush1.msra.mxu0 0.0
    %2840 = vmatprep.subr.mxu0 0.0
    %2841 = vmatpush1.msra.mxu0 0.0
    %2842 = vmatprep.subr.mxu0 0.0
    %2843 = vmatpush1.msra.mxu0 0.0
    %2844 = vmatprep.subr.mxu0 0.0
    %2845 = vmatpush1.msra.mxu0 0.0
    %2846 = vmatprep.subr.mxu0 0.0
    %2847 = vmatpush1.msra.mxu0 0.0
    %2848 = vmatprep.subr.mxu0 0.0
    %2849 = vmatpush1.msra.mxu0 0.0
    %2850 = vmatprep.subr.mxu0 0.0
    %2851 = vmatpush1.msra.mxu0 0.0
    %2852 = vmatprep.subr.mxu0 0.0
    %2853 = vmatpush1.msra.mxu0 0.0
    %2854 = vmatprep.subr.mxu0 0.0
    %2855 = vmatpush1.msra.mxu0 0.0
    %2856 = vmatprep.subr.mxu0 0.0
    %2857 = vmatpush1.msra.mxu0 0.0
    %2858 = vmatprep.subr.mxu0 0.0
    %2859 = vmatpush1.msra.mxu0 0.0
    %2860 = vmatprep.subr.mxu0 0.0
    %2861 = vmatpush1.msra.mxu0 0.0
    %2862 = vmatprep.subr.mxu0 0.0
    %2863 = vmatpush1.msra.mxu0 0.0
    %2864 = vmatprep.subr.mxu0 0.0
    %2865 = vmatpush1.msra.mxu0 0.0
    %2866 = vmatprep.subr.mxu0 0.0
    %2867 = vmatpush1.msra.mxu0 0.0
    %2868 = vmatprep.subr.mxu0 0.0
    %2869 = vmatpush1.msra.mxu0 0.0
    %2870 = vmatprep.subr.mxu0 0.0
    %2871 = vmatpush1.msra.mxu0 0.0
    %2872 = vmatprep.subr.mxu0 0.0
    %2873 = vmatpush1.msra.mxu0 0.0
    %2874 = vmatprep.subr.mxu0 0.0
    %2875 = vmatpush1.msra.mxu0 0.0
    %2876 = vmatprep.subr.mxu0 0.0
    %2877 = vmatpush1.msra.mxu0 0.0
    %2878 = vmatprep.subr.mxu0 0.0
    %2879 = vmatpush1.msra.mxu0 0.0
    %2880 = vmatprep.mubr.f32.mxu0 0.0
    %v2881 = vand.u32 %v2813, 4294901760
    %v2882 = vsub.f32 %v2813, %v2881
    %v2883 = vand.u32 %v2882, 4294901760
    %v2884 = vsub.f32 %v2882, %v2883
    %v2885 = vand.u32 %v2884, 4294901760
    %2886 = vmatmul.mubr.f32.gmra.mrb[0].mxu0 %v2885
    %v2887 = vpop.f32.mrb[0].mxu0
    %v2888 = vadd.f32 0.0, %v2887
    %v2889 = vpop.f32.mrb[0].mxu0
    %2890 = vdwg.mxu0
    %2891 = vmatprep.subr.mxu0 0.0
    %v2892 = vand.u32 %v684, 4294901760
    %v2893 = vsub.f32 %v684, %v2892
    %v2894 = vand.u32 %v2893, 4294901760
    %v2895 = vsub.f32 %v2893, %v2894
    %v2896 = vand.u32 %v2895, 4294901760
    %2897 = vmatpush1.msra.mxu0 %v2896
    %2898 = vmatprep.subr.mxu0 0.0
    %2899 = vmatpush1.msra.mxu0 0.0
    %2900 = vmatprep.subr.mxu0 0.0
    %2901 = vmatpush1.msra.mxu0 0.0
    %2902 = vmatprep.subr.mxu0 0.0
    %2903 = vmatpush1.msra.mxu0 0.0
    %2904 = vmatprep.subr.mxu0 0.0
    %2905 = vmatpush1.msra.mxu0 0.0
    %2906 = vmatprep.subr.mxu0 0.0
    %2907 = vmatpush1.msra.mxu0 0.0
    %2908 = vmatprep.subr.mxu0 0.0
    %2909 = vmatpush1.msra.mxu0 0.0
    %2910 = vmatprep.subr.mxu0 0.0
    %2911 = vmatpush1.msra.mxu0 0.0
    %2912 = vmatprep.subr.mxu0 0.0
    %2913 = vmatpush1.msra.mxu0 0.0
    %2914 = vmatprep.subr.mxu0 0.0
    %2915 = vmatpush1.msra.mxu0 0.0
    %2916 = vmatprep.subr.mxu0 0.0
    %2917 = vmatpush1.msra.mxu0 0.0
    %2918 = vmatprep.subr.mxu0 0.0
    %2919 = vmatpush1.msra.mxu0 0.0
    %2920 = vmatprep.subr.mxu0 0.0
    %2921 = vmatpush1.msra.mxu0 0.0
    %2922 = vmatprep.subr.mxu0 0.0
    %2923 = vmatpush1.msra.mxu0 0.0
    %2924 = vmatprep.subr.mxu0 0.0
    %2925 = vmatpush1.msra.mxu0 0.0
    %2926 = vmatprep.subr.mxu0 0.0
    %2927 = vmatpush1.msra.mxu0 0.0
    %2928 = vmatprep.subr.mxu0 0.0
    %2929 = vmatpush1.msra.mxu0 0.0
    %2930 = vmatprep.subr.mxu0 0.0
    %2931 = vmatpush1.msra.mxu0 0.0
    %2932 = vmatprep.subr.mxu0 0.0
    %2933 = vmatpush1.msra.mxu0 0.0
    %2934 = vmatprep.subr.mxu0 0.0
    %2935 = vmatpush1.msra.mxu0 0.0
    %2936 = vmatprep.subr.mxu0 0.0
    %2937 = vmatpush1.msra.mxu0 0.0
    %2938 = vmatprep.subr.mxu0 0.0
    %2939 = vmatpush1.msra.mxu0 0.0
    %2940 = vmatprep.subr.mxu0 0.0
    %2941 = vmatpush1.msra.mxu0 0.0
    %2942 = vmatprep.subr.mxu0 0.0
    %2943 = vmatpush1.msra.mxu0 0.0
    %2944 = vmatprep.subr.mxu0 0.0
    %2945 = vmatpush1.msra.mxu0 0.0
    %2946 = vmatprep.subr.mxu0 0.0
    %2947 = vmatpush1.msra.mxu0 0.0
    %2948 = vmatprep.subr.mxu0 0.0
    %2949 = vmatpush1.msra.mxu0 0.0
    %2950 = vmatprep.subr.mxu0 0.0
    %2951 = vmatpush1.msra.mxu0 0.0
    %2952 = vmatprep.subr.mxu0 0.0
    %2953 = vmatpush1.msra.mxu0 0.0
    %2954 = vmatprep.subr.mxu0 0.0
    %2955 = vmatpush1.msra.mxu0 0.0
    %2956 = vmatprep.subr.mxu0 0.0
    %2957 = vmatpush1.msra.mxu0 0.0
    %2958 = vmatprep.subr.mxu0 0.0
    %2959 = vmatpush1.msra.mxu0 0.0
    %2960 = vmatprep.mubr.f32.mxu0 0.0
    %v2961 = vand.u32 %v2813, 4294901760
    %2962 = vmatmul.mubr.f32.gmra.mrb[0].mxu0 %v2961
    %v2963 = vpop.f32.mrb[0].mxu0
    %v2964 = vadd.f32 %v2888, %v2963
    %v2965 = vpop.f32.mrb[0].mxu0
    %2966 = vdwg.mxu0
    %2967 = vmatprep.subr.mxu0 0.0
    %v2968 = vand.u32 %v684, 4294901760
    %v2969 = vsub.f32 %v684, %v2968
    %2970 = vmatpush1.msra.mxu0 %v2969
    %2971 = vmatprep.subr.mxu0 0.0
    %2972 = vmatpush1.msra.mxu0 0.0
    %2973 = vmatprep.subr.mxu0 0.0
    %2974 = vmatpush1.msra.mxu0 0.0
    %2975 = vmatprep.subr.mxu0 0.0
    %2976 = vmatpush1.msra.mxu0 0.0
    %2977 = vmatprep.subr.mxu0 0.0
    %2978 = vmatpush1.msra.mxu0 0.0
    %2979 = vmatprep.subr.mxu0 0.0
    %2980 = vmatpush1.msra.mxu0 0.0
    %2981 = vmatprep.subr.mxu0 0.0
    %2982 = vmatpush1.msra.mxu0 0.0
    %2983 = vmatprep.subr.mxu0 0.0
    %2984 = vmatpush1.msra.mxu0 0.0
    %2985 = vmatprep.subr.mxu0 0.0
    %2986 = vmatpush1.msra.mxu0 0.0
    %2987 = vmatprep.subr.mxu0 0.0
    %2988 = vmatpush1.msra.mxu0 0.0
    %2989 = vmatprep.subr.mxu0 0.0
    %2990 = vmatpush1.msra.mxu0 0.0
    %2991 = vmatprep.subr.mxu0 0.0
    %2992 = vmatpush1.msra.mxu0 0.0
    %2993 = vmatprep.subr.mxu0 0.0
    %2994 = vmatpush1.msra.mxu0 0.0
    %2995 = vmatprep.subr.mxu0 0.0
    %2996 = vmatpush1.msra.mxu0 0.0
    %2997 = vmatprep.subr.mxu0 0.0
    %2998 = vmatpush1.msra.mxu0 0.0
    %2999 = vmatprep.subr.mxu0 0.0
    %3000 = vmatpush1.msra.mxu0 0.0
    %3001 = vmatprep.subr.mxu0 0.0
    %3002 = vmatpush1.msra.mxu0 0.0
    %3003 = vmatprep.subr.mxu0 0.0
    %3004 = vmatpush1.msra.mxu0 0.0
    %3005 = vmatprep.subr.mxu0 0.0
    %3006 = vmatpush1.msra.mxu0 0.0
    %3007 = vmatprep.subr.mxu0 0.0
    %3008 = vmatpush1.msra.mxu0 0.0
    %3009 = vmatprep.subr.mxu0 0.0
    %3010 = vmatpush1.msra.mxu0 0.0
    %3011 = vmatprep.subr.mxu0 0.0
    %3012 = vmatpush1.msra.mxu0 0.0
    %3013 = vmatprep.subr.mxu0 0.0
    %3014 = vmatpush1.msra.mxu0 0.0
    %3015 = vmatprep.subr.mxu0 0.0
    %3016 = vmatpush1.msra.mxu0 0.0
    %3017 = vmatprep.subr.mxu0 0.0
    %3018 = vmatpush1.msra.mxu0 0.0
    %3019 = vmatprep.subr.mxu0 0.0
    %3020 = vmatpush1.msra.mxu0 0.0
    %3021 = vmatprep.subr.mxu0 0.0
    %3022 = vmatpush1.msra.mxu0 0.0
    %3023 = vmatprep.subr.mxu0 0.0
    %3024 = vmatpush1.msra.mxu0 0.0
    %3025 = vmatprep.subr.mxu0 0.0
    %3026 = vmatpush1.msra.mxu0 0.0
    %3027 = vmatprep.subr.mxu0 0.0
    %3028 = vmatpush1.msra.mxu0 0.0
    %3029 = vmatprep.subr.mxu0 0.0
    %3030 = vmatpush1.msra.mxu0 0.0
    %3031 = vmatprep.subr.mxu0 0.0
    %3032 = vmatpush1.msra.mxu0 0.0
    %3033 = vmatprep.mubr.f32.mxu0 0.0
    %v3034 = vand.u32 %v2813, 4294901760
    %v3035 = vsub.f32 %v2813, %v3034
    %3036 = vmatmul.mubr.f32.gmra.mrb[0].mxu0 %v3035
    %v3037 = vpop.f32.mrb[0].mxu0
    %v3038 = vadd.f32 %v2964, %v3037
    %v3039 = vpop.f32.mrb[0].mxu0
    %3040 = vdwg.mxu0
    %3041 = vmatprep.subr.mxu0 0.0
    %v3042 = vand.u32 %v684, 4294901760
    %3043 = vmatpush1.msra.mxu0 %v3042
    %3044 = vmatprep.subr.mxu0 0.0
    %3045 = vmatpush1.msra.mxu0 0.0
    %3046 = vmatprep.subr.mxu0 0.0
    %3047 = vmatpush1.msra.mxu0 0.0
    %3048 = vmatprep.subr.mxu0 0.0
    %3049 = vmatpush1.msra.mxu0 0.0
    %3050 = vmatprep.subr.mxu0 0.0
    %3051 = vmatpush1.msra.mxu0 0.0
    %3052 = vmatprep.subr.mxu0 0.0
    %3053 = vmatpush1.msra.mxu0 0.0
    %3054 = vmatprep.subr.mxu0 0.0
    %3055 = vmatpush1.msra.mxu0 0.0
    %3056 = vmatprep.subr.mxu0 0.0
    %3057 = vmatpush1.msra.mxu0 0.0
    %3058 = vmatprep.subr.mxu0 0.0
    %3059 = vmatpush1.msra.mxu0 0.0
    %3060 = vmatprep.subr.mxu0 0.0
    %3061 = vmatpush1.msra.mxu0 0.0
    %3062 = vmatprep.subr.mxu0 0.0
    %3063 = vmatpush1.msra.mxu0 0.0
    %3064 = vmatprep.subr.mxu0 0.0
    %3065 = vmatpush1.msra.mxu0 0.0
    %3066 = vmatprep.subr.mxu0 0.0
    %3067 = vmatpush1.msra.mxu0 0.0
    %3068 = vmatprep.subr.mxu0 0.0
    %3069 = vmatpush1.msra.mxu0 0.0
    %3070 = vmatprep.subr.mxu0 0.0
    %3071 = vmatpush1.msra.mxu0 0.0
    %3072 = vmatprep.subr.mxu0 0.0
    %3073 = vmatpush1.msra.mxu0 0.0
    %3074 = vmatprep.subr.mxu0 0.0
    %3075 = vmatpush1.msra.mxu0 0.0
    %3076 = vmatprep.subr.mxu0 0.0
    %3077 = vmatpush1.msra.mxu0 0.0
    %3078 = vmatprep.subr.mxu0 0.0
    %3079 = vmatpush1.msra.mxu0 0.0
    %3080 = vmatprep.subr.mxu0 0.0
    %3081 = vmatpush1.msra.mxu0 0.0
    %3082 = vmatprep.subr.mxu0 0.0
    %3083 = vmatpush1.msra.mxu0 0.0
    %3084 = vmatprep.subr.mxu0 0.0
    %3085 = vmatpush1.msra.mxu0 0.0
    %3086 = vmatprep.subr.mxu0 0.0
    %3087 = vmatpush1.msra.mxu0 0.0
    %3088 = vmatprep.subr.mxu0 0.0
    %3089 = vmatpush1.msra.mxu0 0.0
    %3090 = vmatprep.subr.mxu0 0.0
    %3091 = vmatpush1.msra.mxu0 0.0
    %3092 = vmatprep.subr.mxu0 0.0
    %3093 = vmatpush1.msra.mxu0 0.0
    %3094 = vmatprep.subr.mxu0 0.0
    %3095 = vmatpush1.msra.mxu0 0.0
    %3096 = vmatprep.subr.mxu0 0.0
    %3097 = vmatpush1.msra.mxu0 0.0
    %3098 = vmatprep.subr.mxu0 0.0
    %3099 = vmatpush1.msra.mxu0 0.0
    %3100 = vmatprep.subr.mxu0 0.0
    %3101 = vmatpush1.msra.mxu0 0.0
    %3102 = vmatprep.subr.mxu0 0.0
    %3103 = vmatpush1.msra.mxu0 0.0
    %3104 = vmatprep.subr.mxu0 0.0
    %3105 = vmatpush1.msra.mxu0 0.0
    %3106 = vmatprep.mubr.f32.mxu0 0.0
    %v3107 = vand.u32 %v2813, 4294901760
    %v3108 = vsub.f32 %v2813, %v3107
    %v3109 = vand.u32 %v3108, 4294901760
    %3110 = vmatmul.mubr.f32.gmra.mrb[0].mxu0 %v3109
    %v3111 = vpop.f32.mrb[0].mxu0
    %v3112 = vadd.f32 %v3038, %v3111
    %v3113 = vpop.f32.mrb[0].mxu0
    %3114 = vdwg.mxu0
    %3115 = vmatprep.subr.mxu0 0.0
    %v3116 = vand.u32 %v684, 4294901760
    %v3117 = vsub.f32 %v684, %v3116
    %v3118 = vand.u32 %v3117, 4294901760
    %3119 = vmatpush1.msra.mxu0 %v3118
    %3120 = vmatprep.subr.mxu0 0.0
    %3121 = vmatpush1.msra.mxu0 0.0
    %3122 = vmatprep.subr.mxu0 0.0
    %3123 = vmatpush1.msra.mxu0 0.0
    %3124 = vmatprep.subr.mxu0 0.0
    %3125 = vmatpush1.msra.mxu0 0.0
    %3126 = vmatprep.subr.mxu0 0.0
    %3127 = vmatpush1.msra.mxu0 0.0
    %3128 = vmatprep.subr.mxu0 0.0
    %3129 = vmatpush1.msra.mxu0 0.0
    %3130 = vmatprep.subr.mxu0 0.0
    %3131 = vmatpush1.msra.mxu0 0.0
    %3132 = vmatprep.subr.mxu0 0.0
    %3133 = vmatpush1.msra.mxu0 0.0
    %3134 = vmatprep.subr.mxu0 0.0
    %3135 = vmatpush1.msra.mxu0 0.0
    %3136 = vmatprep.subr.mxu0 0.0
    %3137 = vmatpush1.msra.mxu0 0.0
    %3138 = vmatprep.subr.mxu0 0.0
    %3139 = vmatpush1.msra.mxu0 0.0
    %3140 = vmatprep.subr.mxu0 0.0
    %3141 = vmatpush1.msra.mxu0 0.0
    %3142 = vmatprep.subr.mxu0 0.0
    %3143 = vmatpush1.msra.mxu0 0.0
    %3144 = vmatprep.subr.mxu0 0.0
    %3145 = vmatpush1.msra.mxu0 0.0
    %3146 = vmatprep.subr.mxu0 0.0
    %3147 = vmatpush1.msra.mxu0 0.0
    %3148 = vmatprep.subr.mxu0 0.0
    %3149 = vmatpush1.msra.mxu0 0.0
    %3150 = vmatprep.subr.mxu0 0.0
    %3151 = vmatpush1.msra.mxu0 0.0
    %3152 = vmatprep.subr.mxu0 0.0
    %3153 = vmatpush1.msra.mxu0 0.0
    %3154 = vmatprep.subr.mxu0 0.0
    %3155 = vmatpush1.msra.mxu0 0.0
    %3156 = vmatprep.subr.mxu0 0.0
    %3157 = vmatpush1.msra.mxu0 0.0
    %3158 = vmatprep.subr.mxu0 0.0
    %3159 = vmatpush1.msra.mxu0 0.0
    %3160 = vmatprep.subr.mxu0 0.0
    %3161 = vmatpush1.msra.mxu0 0.0
    %3162 = vmatprep.subr.mxu0 0.0
    %3163 = vmatpush1.msra.mxu0 0.0
    %3164 = vmatprep.subr.mxu0 0.0
    %3165 = vmatpush1.msra.mxu0 0.0
    %3166 = vmatprep.subr.mxu0 0.0
    %3167 = vmatpush1.msra.mxu0 0.0
    %3168 = vmatprep.subr.mxu0 0.0
    %3169 = vmatpush1.msra.mxu0 0.0
    %3170 = vmatprep.subr.mxu0 0.0
    %3171 = vmatpush1.msra.mxu0 0.0
    %3172 = vmatprep.subr.mxu0 0.0
    %3173 = vmatpush1.msra.mxu0 0.0
    %3174 = vmatprep.subr.mxu0 0.0
    %3175 = vmatpush1.msra.mxu0 0.0
    %3176 = vmatprep.subr.mxu0 0.0
    %3177 = vmatpush1.msra.mxu0 0.0
    %3178 = vmatprep.subr.mxu0 0.0
    %3179 = vmatpush1.msra.mxu0 0.0
    %3180 = vmatprep.subr.mxu0 0.0
    %3181 = vmatpush1.msra.mxu0 0.0
    %3182 = vmatprep.mubr.f32.mxu0 0.0
    %v3183 = vand.u32 %v2813, 4294901760
    %3184 = vmatmul.mubr.f32.gmra.mrb[0].mxu0 %v3183
    %v3185 = vpop.f32.mrb[0].mxu0
    %v3186 = vadd.f32 %v3112, %v3185
    %v3187 = vpop.f32.mrb[0].mxu0
    %3188 = vdwg.mxu0
    %3189 = vmatprep.subr.mxu0 0.0
    %v3190 = vand.u32 %v684, 4294901760
    %3191 = vmatpush1.msra.mxu0 %v3190
    %3192 = vmatprep.subr.mxu0 0.0
    %3193 = vmatpush1.msra.mxu0 0.0
    %3194 = vmatprep.subr.mxu0 0.0
    %3195 = vmatpush1.msra.mxu0 0.0
    %3196 = vmatprep.subr.mxu0 0.0
    %3197 = vmatpush1.msra.mxu0 0.0
    %3198 = vmatprep.subr.mxu0 0.0
    %3199 = vmatpush1.msra.mxu0 0.0
    %3200 = vmatprep.subr.mxu0 0.0
    %3201 = vmatpush1.msra.mxu0 0.0
    %3202 = vmatprep.subr.mxu0 0.0
    %3203 = vmatpush1.msra.mxu0 0.0
    %3204 = vmatprep.subr.mxu0 0.0
    %3205 = vmatpush1.msra.mxu0 0.0
    %3206 = vmatprep.subr.mxu0 0.0
    %3207 = vmatpush1.msra.mxu0 0.0
    %3208 = vmatprep.subr.mxu0 0.0
    %3209 = vmatpush1.msra.mxu0 0.0
    %3210 = vmatprep.subr.mxu0 0.0
    %3211 = vmatpush1.msra.mxu0 0.0
    %3212 = vmatprep.subr.mxu0 0.0
    %3213 = vmatpush1.msra.mxu0 0.0
    %3214 = vmatprep.subr.mxu0 0.0
    %3215 = vmatpush1.msra.mxu0 0.0
    %3216 = vmatprep.subr.mxu0 0.0
    %3217 = vmatpush1.msra.mxu0 0.0
    %3218 = vmatprep.subr.mxu0 0.0
    %3219 = vmatpush1.msra.mxu0 0.0
    %3220 = vmatprep.subr.mxu0 0.0
    %3221 = vmatpush1.msra.mxu0 0.0
    %3222 = vmatprep.subr.mxu0 0.0
    %3223 = vmatpush1.msra.mxu0 0.0
    %3224 = vmatprep.subr.mxu0 0.0
    %3225 = vmatpush1.msra.mxu0 0.0
    %3226 = vmatprep.subr.mxu0 0.0
    %3227 = vmatpush1.msra.mxu0 0.0
    %3228 = vmatprep.subr.mxu0 0.0
    %3229 = vmatpush1.msra.mxu0 0.0
    %3230 = vmatprep.subr.mxu0 0.0
    %3231 = vmatpush1.msra.mxu0 0.0
    %3232 = vmatprep.subr.mxu0 0.0
    %3233 = vmatpush1.msra.mxu0 0.0
    %3234 = vmatprep.subr.mxu0 0.0
    %3235 = vmatpush1.msra.mxu0 0.0
    %3236 = vmatprep.subr.mxu0 0.0
    %3237 = vmatpush1.msra.mxu0 0.0
    %3238 = vmatprep.subr.mxu0 0.0
    %3239 = vmatpush1.msra.mxu0 0.0
    %3240 = vmatprep.subr.mxu0 0.0
    %3241 = vmatpush1.msra.mxu0 0.0
    %3242 = vmatprep.subr.mxu0 0.0
    %3243 = vmatpush1.msra.mxu0 0.0
    %3244 = vmatprep.subr.mxu0 0.0
    %3245 = vmatpush1.msra.mxu0 0.0
    %3246 = vmatprep.subr.mxu0 0.0
    %3247 = vmatpush1.msra.mxu0 0.0
    %3248 = vmatprep.subr.mxu0 0.0
    %3249 = vmatpush1.msra.mxu0 0.0
    %3250 = vmatprep.subr.mxu0 0.0
    %3251 = vmatpush1.msra.mxu0 0.0
    %3252 = vmatprep.subr.mxu0 0.0
    %3253 = vmatpush1.msra.mxu0 0.0
    %3254 = vmatprep.mubr.f32.mxu0 0.0
    %v3255 = vand.u32 %v2813, 4294901760
    %3256 = vmatmul.mubr.f32.gmra.mrb[0].mxu0 %v3255
    %v3257 = vpop.f32.mrb[0].mxu0
    %v3258 = vadd.f32 %v3186, %v3257
    %v3259 = vpop.f32.mrb[0].mxu0
    %3260 = vdwg.mxu0
    %v3262 = vrot.slane %v3258, 1
    %v3265 = vmul.f32 %v2259, %v3258
    %v3266 = vmul.f32 %v2266, %v3262
    %v3267 = vlaneseq
    %v3268 = vshrl.u32 %v3267, 7
    %v3269 = vsub.s32 0, %v3268
    %v3270 = vrot.slane %v3265, %v3269
    %v3271 = vlaneseq
    %v3272 = vshrl.u32 %v3271, 7
    %v3273 = vsub.s32 0, %v3272
    %v3274 = vrot.slane %v3266, %v3273
    %v3275 = vmul.f32 %v3270, %v98
    %v3276 = vmul.f32 %v3274, %v103
    %v3278 = vsel %vm115, %v3275, 0
    %v3281 = vsel %vm115, %v3276, 0
    %3283 = vmatprep.subr.mxu0 0.0
    %v3284 = vand.u32 %v106, 4294901760
    %3285 = vmatpush1.msra.mxu0 %v3284
    %3286 = vmatprep.subr.mxu0 0.0
    %v3287 = vand.u32 %v107, 4294901760
    %3288 = vmatpush1.msra.mxu0 %v3287
    %3289 = vmatprep.subr.mxu0 0.0
    %v3290 = vand.u32 %v108, 4294901760
    %3291 = vmatpush1.msra.mxu0 %v3290
    %3292 = vmatprep.subr.mxu0 0.0
    %v3293 = vand.u32 %v109, 4294901760
    %3294 = vmatpush1.msra.mxu0 %v3293
    %3295 = vmatprep.subr.mxu0 0.0
    %v3296 = vand.u32 %v110, 4294901760
    %3297 = vmatpush1.msra.mxu0 %v3296
    %3298 = vmatprep.subr.mxu0 0.0
    %v3299 = vand.u32 %v111, 4294901760
    %3300 = vmatpush1.msra.mxu0 %v3299
    %3301 = vmatprep.subr.mxu0 0.0
    %v3302 = vand.u32 %v112, 4294901760
    %3303 = vmatpush1.msra.mxu0 %v3302
    %3304 = vmatprep.subr.mxu0 0.0
    %v3305 = vand.u32 %v113, 4294901760
    %3306 = vmatpush1.msra.mxu0 %v3305
    %3307 = vmatprep.subr.mxu0 0.0
    %3308 = vmatpush1.msra.mxu0 0.0
    %3309 = vmatprep.subr.mxu0 0.0
    %3310 = vmatpush1.msra.mxu0 0.0
    %3311 = vmatprep.subr.mxu0 0.0
    %3312 = vmatpush1.msra.mxu0 0.0
    %3313 = vmatprep.subr.mxu0 0.0
    %3314 = vmatpush1.msra.mxu0 0.0
    %3315 = vmatprep.subr.mxu0 0.0
    %3316 = vmatpush1.msra.mxu0 0.0
    %3317 = vmatprep.subr.mxu0 0.0
    %3318 = vmatpush1.msra.mxu0 0.0
    %3319 = vmatprep.subr.mxu0 0.0
    %3320 = vmatpush1.msra.mxu0 0.0
    %3321 = vmatprep.subr.mxu0 0.0
    %3322 = vmatpush1.msra.mxu0 0.0
    %3323 = vmatprep.subr.mxu0 0.0
    %3324 = vmatpush1.msra.mxu0 0.0
    %3325 = vmatprep.subr.mxu0 0.0
    %3326 = vmatpush1.msra.mxu0 0.0
    %3327 = vmatprep.subr.mxu0 0.0
    %3328 = vmatpush1.msra.mxu0 0.0
    %3329 = vmatprep.subr.mxu0 0.0
    %3330 = vmatpush1.msra.mxu0 0.0
    %3331 = vmatprep.subr.mxu0 0.0
    %3332 = vmatpush1.msra.mxu0 0.0
    %3333 = vmatprep.subr.mxu0 0.0
    %3334 = vmatpush1.msra.mxu0 0.0
    %3335 = vmatprep.subr.mxu0 0.0
    %3336 = vmatpush1.msra.mxu0 0.0
    %3337 = vmatprep.subr.mxu0 0.0
    %3338 = vmatpush1.msra.mxu0 0.0
    %3339 = vmatprep.subr.mxu0 0.0
    %3340 = vmatpush1.msra.mxu0 0.0
    %3341 = vmatprep.subr.mxu0 0.0
    %3342 = vmatpush1.msra.mxu0 0.0
    %3343 = vmatprep.subr.mxu0 0.0
    %3344 = vmatpush1.msra.mxu0 0.0
    %3345 = vmatprep.subr.mxu0 0.0
    %3346 = vmatpush1.msra.mxu0 0.0
    %3347 = vmatprep.subr.mxu0 0.0
    %3348 = vmatpush1.msra.mxu0 0.0
    %3349 = vmatprep.subr.mxu0 0.0
    %3350 = vmatpush1.msra.mxu0 0.0
    %3351 = vmatprep.subr.mxu0 0.0
    %3352 = vmatpush1.msra.mxu0 0.0
    %3353 = vmatprep.subr.mxu0 0.0
    %3354 = vmatpush1.msra.mxu0 0.0
    %3355 = vmatprep.mubr.f32.mxu0 0.0
    %v3356 = vand.u32 %v3278, 4294901760
    %v3357 = vsub.f32 %v3278, %v3356
    %v3358 = vand.u32 %v3357, 4294901760
    %v3359 = vsub.f32 %v3357, %v3358
    %v3360 = vand.u32 %v3359, 4294901760
    %3361 = vmatmul.mubr.f32.gmra.mrb[0].mxu0 %v3360
    %v3362 = vpop.f32.mrb[0].mxu0
    %v3363 = vadd.f32 0.0, %v3362
    %v3364 = vpop.f32.mrb[0].mxu0
    %3365 = vmatprep.mubr.f32.mxu0 0.0
    %v3366 = vand.u32 %v3281, 4294901760
    %v3367 = vsub.f32 %v3281, %v3366
    %v3368 = vand.u32 %v3367, 4294901760
    %v3369 = vsub.f32 %v3367, %v3368
    %v3370 = vand.u32 %v3369, 4294901760
    %3371 = vmatmul.mubr.f32.gmra.mrb[0].mxu0 %v3370
    %v3372 = vpop.f32.mrb[0].mxu0
    %v3373 = vadd.f32 0.0, %v3372
    %v3374 = vpop.f32.mrb[0].mxu0
    %3375 = vdwg.mxu0
    %3376 = vmatprep.subr.mxu0 0.0
    %v3377 = vand.u32 %v106, 4294901760
    %v3378 = vsub.f32 %v106, %v3377
    %v3379 = vand.u32 %v3378, 4294901760
    %v3380 = vsub.f32 %v3378, %v3379
    %v3381 = vand.u32 %v3380, 4294901760
    %3382 = vmatpush1.msra.mxu0 %v3381
    %3383 = vmatprep.subr.mxu0 0.0
    %v3384 = vand.u32 %v107, 4294901760
    %v3385 = vsub.f32 %v107, %v3384
    %v3386 = vand.u32 %v3385, 4294901760
    %v3387 = vsub.f32 %v3385, %v3386
    %v3388 = vand.u32 %v3387, 4294901760
    %3389 = vmatpush1.msra.mxu0 %v3388
    %3390 = vmatprep.subr.mxu0 0.0
    %v3391 = vand.u32 %v108, 4294901760
    %v3392 = vsub.f32 %v108, %v3391
    %v3393 = vand.u32 %v3392, 4294901760
    %v3394 = vsub.f32 %v3392, %v3393
    %v3395 = vand.u32 %v3394, 4294901760
    %3396 = vmatpush1.msra.mxu0 %v3395
    %3397 = vmatprep.subr.mxu0 0.0
    %v3398 = vand.u32 %v109, 4294901760
    %v3399 = vsub.f32 %v109, %v3398
    %v3400 = vand.u32 %v3399, 4294901760
    %v3401 = vsub.f32 %v3399, %v3400
    %v3402 = vand.u32 %v3401, 4294901760
    %3403 = vmatpush1.msra.mxu0 %v3402
    %3404 = vmatprep.subr.mxu0 0.0
    %v3405 = vand.u32 %v110, 4294901760
    %v3406 = vsub.f32 %v110, %v3405
    %v3407 = vand.u32 %v3406, 4294901760
    %v3408 = vsub.f32 %v3406, %v3407
    %v3409 = vand.u32 %v3408, 4294901760
    %3410 = vmatpush1.msra.mxu0 %v3409
    %3411 = vmatprep.subr.mxu0 0.0
    %v3412 = vand.u32 %v111, 4294901760
    %v3413 = vsub.f32 %v111, %v3412
    %v3414 = vand.u32 %v3413, 4294901760
    %v3415 = vsub.f32 %v3413, %v3414
    %v3416 = vand.u32 %v3415, 4294901760
    %3417 = vmatpush1.msra.mxu0 %v3416
    %3418 = vmatprep.subr.mxu0 0.0
    %v3419 = vand.u32 %v112, 4294901760
    %v3420 = vsub.f32 %v112, %v3419
    %v3421 = vand.u32 %v3420, 4294901760
    %v3422 = vsub.f32 %v3420, %v3421
    %v3423 = vand.u32 %v3422, 4294901760
    %3424 = vmatpush1.msra.mxu0 %v3423
    %3425 = vmatprep.subr.mxu0 0.0
    %v3426 = vand.u32 %v113, 4294901760
    %v3427 = vsub.f32 %v113, %v3426
    %v3428 = vand.u32 %v3427, 4294901760
    %v3429 = vsub.f32 %v3427, %v3428
    %v3430 = vand.u32 %v3429, 4294901760
    %3431 = vmatpush1.msra.mxu0 %v3430
    %3432 = vmatprep.subr.mxu0 0.0
    %3433 = vmatpush1.msra.mxu0 0.0
    %3434 = vmatprep.subr.mxu0 0.0
    %3435 = vmatpush1.msra.mxu0 0.0
    %3436 = vmatprep.subr.mxu0 0.0
    %3437 = vmatpush1.msra.mxu0 0.0
    %3438 = vmatprep.subr.mxu0 0.0
    %3439 = vmatpush1.msra.mxu0 0.0
    %3440 = vmatprep.subr.mxu0 0.0
    %3441 = vmatpush1.msra.mxu0 0.0
    %3442 = vmatprep.subr.mxu0 0.0
    %3443 = vmatpush1.msra.mxu0 0.0
    %3444 = vmatprep.subr.mxu0 0.0
    %3445 = vmatpush1.msra.mxu0 0.0
    %3446 = vmatprep.subr.mxu0 0.0
    %3447 = vmatpush1.msra.mxu0 0.0
    %3448 = vmatprep.subr.mxu0 0.0
    %3449 = vmatpush1.msra.mxu0 0.0
    %3450 = vmatprep.subr.mxu0 0.0
    %3451 = vmatpush1.msra.mxu0 0.0
    %3452 = vmatprep.subr.mxu0 0.0
    %3453 = vmatpush1.msra.mxu0 0.0
    %3454 = vmatprep.subr.mxu0 0.0
    %3455 = vmatpush1.msra.mxu0 0.0
    %3456 = vmatprep.subr.mxu0 0.0
    %3457 = vmatpush1.msra.mxu0 0.0
    %3458 = vmatprep.subr.mxu0 0.0
    %3459 = vmatpush1.msra.mxu0 0.0
    %3460 = vmatprep.subr.mxu0 0.0
    %3461 = vmatpush1.msra.mxu0 0.0
    %3462 = vmatprep.subr.mxu0 0.0
    %3463 = vmatpush1.msra.mxu0 0.0
    %3464 = vmatprep.subr.mxu0 0.0
    %3465 = vmatpush1.msra.mxu0 0.0
    %3466 = vmatprep.subr.mxu0 0.0
    %3467 = vmatpush1.msra.mxu0 0.0
    %3468 = vmatprep.subr.mxu0 0.0
    %3469 = vmatpush1.msra.mxu0 0.0
    %3470 = vmatprep.subr.mxu0 0.0
    %3471 = vmatpush1.msra.mxu0 0.0
    %3472 = vmatprep.subr.mxu0 0.0
    %3473 = vmatpush1.msra.mxu0 0.0
    %3474 = vmatprep.subr.mxu0 0.0
    %3475 = vmatpush1.msra.mxu0 0.0
    %3476 = vmatprep.subr.mxu0 0.0
    %3477 = vmatpush1.msra.mxu0 0.0
    %3478 = vmatprep.subr.mxu0 0.0
    %3479 = vmatpush1.msra.mxu0 0.0
    %3480 = vmatprep.mubr.f32.mxu0 0.0
    %v3481 = vand.u32 %v3278, 4294901760
    %3482 = vmatmul.mubr.f32.gmra.mrb[0].mxu0 %v3481
    %v3483 = vpop.f32.mrb[0].mxu0
    %v3484 = vadd.f32 %v3363, %v3483
    %v3485 = vpop.f32.mrb[0].mxu0
    %3486 = vmatprep.mubr.f32.mxu0 0.0
    %v3487 = vand.u32 %v3281, 4294901760
    %3488 = vmatmul.mubr.f32.gmra.mrb[0].mxu0 %v3487
    %v3489 = vpop.f32.mrb[0].mxu0
    %v3490 = vadd.f32 %v3373, %v3489
    %v3491 = vpop.f32.mrb[0].mxu0
    %3492 = vdwg.mxu0
    %3493 = vmatprep.subr.mxu0 0.0
    %v3494 = vand.u32 %v106, 4294901760
    %v3495 = vsub.f32 %v106, %v3494
    %3496 = vmatpush1.msra.mxu0 %v3495
    %3497 = vmatprep.subr.mxu0 0.0
    %v3498 = vand.u32 %v107, 4294901760
    %v3499 = vsub.f32 %v107, %v3498
    %3500 = vmatpush1.msra.mxu0 %v3499
    %3501 = vmatprep.subr.mxu0 0.0
    %v3502 = vand.u32 %v108, 4294901760
    %v3503 = vsub.f32 %v108, %v3502
    %3504 = vmatpush1.msra.mxu0 %v3503
    %3505 = vmatprep.subr.mxu0 0.0
    %v3506 = vand.u32 %v109, 4294901760
    %v3507 = vsub.f32 %v109, %v3506
    %3508 = vmatpush1.msra.mxu0 %v3507
    %3509 = vmatprep.subr.mxu0 0.0
    %v3510 = vand.u32 %v110, 4294901760
    %v3511 = vsub.f32 %v110, %v3510
    %3512 = vmatpush1.msra.mxu0 %v3511
    %3513 = vmatprep.subr.mxu0 0.0
    %v3514 = vand.u32 %v111, 4294901760
    %v3515 = vsub.f32 %v111, %v3514
    %3516 = vmatpush1.msra.mxu0 %v3515
    %3517 = vmatprep.subr.mxu0 0.0
    %v3518 = vand.u32 %v112, 4294901760
    %v3519 = vsub.f32 %v112, %v3518
    %3520 = vmatpush1.msra.mxu0 %v3519
    %3521 = vmatprep.subr.mxu0 0.0
    %v3522 = vand.u32 %v113, 4294901760
    %v3523 = vsub.f32 %v113, %v3522
    %3524 = vmatpush1.msra.mxu0 %v3523
    %3525 = vmatprep.subr.mxu0 0.0
    %3526 = vmatpush1.msra.mxu0 0.0
    %3527 = vmatprep.subr.mxu0 0.0
    %3528 = vmatpush1.msra.mxu0 0.0
    %3529 = vmatprep.subr.mxu0 0.0
    %3530 = vmatpush1.msra.mxu0 0.0
    %3531 = vmatprep.subr.mxu0 0.0
    %3532 = vmatpush1.msra.mxu0 0.0
    %3533 = vmatprep.subr.mxu0 0.0
    %3534 = vmatpush1.msra.mxu0 0.0
    %3535 = vmatprep.subr.mxu0 0.0
    %3536 = vmatpush1.msra.mxu0 0.0
    %3537 = vmatprep.subr.mxu0 0.0
    %3538 = vmatpush1.msra.mxu0 0.0
    %3539 = vmatprep.subr.mxu0 0.0
    %3540 = vmatpush1.msra.mxu0 0.0
    %3541 = vmatprep.subr.mxu0 0.0
    %3542 = vmatpush1.msra.mxu0 0.0
    %3543 = vmatprep.subr.mxu0 0.0
    %3544 = vmatpush1.msra.mxu0 0.0
    %3545 = vmatprep.subr.mxu0 0.0
    %3546 = vmatpush1.msra.mxu0 0.0
    %3547 = vmatprep.subr.mxu0 0.0
    %3548 = vmatpush1.msra.mxu0 0.0
    %3549 = vmatprep.subr.mxu0 0.0
    %3550 = vmatpush1.msra.mxu0 0.0
    %3551 = vmatprep.subr.mxu0 0.0
    %3552 = vmatpush1.msra.mxu0 0.0
    %3553 = vmatprep.subr.mxu0 0.0
    %3554 = vmatpush1.msra.mxu0 0.0
    %3555 = vmatprep.subr.mxu0 0.0
    %3556 = vmatpush1.msra.mxu0 0.0
    %3557 = vmatprep.subr.mxu0 0.0
    %3558 = vmatpush1.msra.mxu0 0.0
    %3559 = vmatprep.subr.mxu0 0.0
    %3560 = vmatpush1.msra.mxu0 0.0
    %3561 = vmatprep.subr.mxu0 0.0
    %3562 = vmatpush1.msra.mxu0 0.0
    %3563 = vmatprep.subr.mxu0 0.0
    %3564 = vmatpush1.msra.mxu0 0.0
    %3565 = vmatprep.subr.mxu0 0.0
    %3566 = vmatpush1.msra.mxu0 0.0
    %3567 = vmatprep.subr.mxu0 0.0
    %3568 = vmatpush1.msra.mxu0 0.0
    %3569 = vmatprep.subr.mxu0 0.0
    %3570 = vmatpush1.msra.mxu0 0.0
    %3571 = vmatprep.subr.mxu0 0.0
    %3572 = vmatpush1.msra.mxu0 0.0
    %3573 = vmatprep.mubr.f32.mxu0 0.0
    %v3574 = vand.u32 %v3278, 4294901760
    %v3575 = vsub.f32 %v3278, %v3574
    %3576 = vmatmul.mubr.f32.gmra.mrb[0].mxu0 %v3575
    %v3577 = vpop.f32.mrb[0].mxu0
    %v3578 = vadd.f32 %v3484, %v3577
    %v3579 = vpop.f32.mrb[0].mxu0
    %3580 = vmatprep.mubr.f32.mxu0 0.0
    %v3581 = vand.u32 %v3281, 4294901760
    %v3582 = vsub.f32 %v3281, %v3581
    %3583 = vmatmul.mubr.f32.gmra.mrb[0].mxu0 %v3582
    %v3584 = vpop.f32.mrb[0].mxu0
    %v3585 = vadd.f32 %v3490, %v3584
    %v3586 = vpop.f32.mrb[0].mxu0
    %3587 = vdwg.mxu0
    %3588 = vmatprep.subr.mxu0 0.0
    %v3589 = vand.u32 %v106, 4294901760
    %3590 = vmatpush1.msra.mxu0 %v3589
    %3591 = vmatprep.subr.mxu0 0.0
    %v3592 = vand.u32 %v107, 4294901760
    %3593 = vmatpush1.msra.mxu0 %v3592
    %3594 = vmatprep.subr.mxu0 0.0
    %v3595 = vand.u32 %v108, 4294901760
    %3596 = vmatpush1.msra.mxu0 %v3595
    %3597 = vmatprep.subr.mxu0 0.0
    %v3598 = vand.u32 %v109, 4294901760
    %3599 = vmatpush1.msra.mxu0 %v3598
    %3600 = vmatprep.subr.mxu0 0.0
    %v3601 = vand.u32 %v110, 4294901760
    %3602 = vmatpush1.msra.mxu0 %v3601
    %3603 = vmatprep.subr.mxu0 0.0
    %v3604 = vand.u32 %v111, 4294901760
    %3605 = vmatpush1.msra.mxu0 %v3604
    %3606 = vmatprep.subr.mxu0 0.0
    %v3607 = vand.u32 %v112, 4294901760
    %3608 = vmatpush1.msra.mxu0 %v3607
    %3609 = vmatprep.subr.mxu0 0.0
    %v3610 = vand.u32 %v113, 4294901760
    %3611 = vmatpush1.msra.mxu0 %v3610
    %3612 = vmatprep.subr.mxu0 0.0
    %3613 = vmatpush1.msra.mxu0 0.0
    %3614 = vmatprep.subr.mxu0 0.0
    %3615 = vmatpush1.msra.mxu0 0.0
    %3616 = vmatprep.subr.mxu0 0.0
    %3617 = vmatpush1.msra.mxu0 0.0
    %3618 = vmatprep.subr.mxu0 0.0
    %3619 = vmatpush1.msra.mxu0 0.0
    %3620 = vmatprep.subr.mxu0 0.0
    %3621 = vmatpush1.msra.mxu0 0.0
    %3622 = vmatprep.subr.mxu0 0.0
    %3623 = vmatpush1.msra.mxu0 0.0
    %3624 = vmatprep.subr.mxu0 0.0
    %3625 = vmatpush1.msra.mxu0 0.0
    %3626 = vmatprep.subr.mxu0 0.0
    %3627 = vmatpush1.msra.mxu0 0.0
    %3628 = vmatprep.subr.mxu0 0.0
    %3629 = vmatpush1.msra.mxu0 0.0
    %3630 = vmatprep.subr.mxu0 0.0
    %3631 = vmatpush1.msra.mxu0 0.0
    %3632 = vmatprep.subr.mxu0 0.0
    %3633 = vmatpush1.msra.mxu0 0.0
    %3634 = vmatprep.subr.mxu0 0.0
    %3635 = vmatpush1.msra.mxu0 0.0
    %3636 = vmatprep.subr.mxu0 0.0
    %3637 = vmatpush1.msra.mxu0 0.0
    %3638 = vmatprep.subr.mxu0 0.0
    %3639 = vmatpush1.msra.mxu0 0.0
    %3640 = vmatprep.subr.mxu0 0.0
    %3641 = vmatpush1.msra.mxu0 0.0
    %3642 = vmatprep.subr.mxu0 0.0
    %3643 = vmatpush1.msra.mxu0 0.0
    %3644 = vmatprep.subr.mxu0 0.0
    %3645 = vmatpush1.msra.mxu0 0.0
    %3646 = vmatprep.subr.mxu0 0.0
    %3647 = vmatpush1.msra.mxu0 0.0
    %3648 = vmatprep.subr.mxu0 0.0
    %3649 = vmatpush1.msra.mxu0 0.0
    %3650 = vmatprep.subr.mxu0 0.0
    %3651 = vmatpush1.msra.mxu0 0.0
    %3652 = vmatprep.subr.mxu0 0.0
    %3653 = vmatpush1.msra.mxu0 0.0
    %3654 = vmatprep.subr.mxu0 0.0
    %3655 = vmatpush1.msra.mxu0 0.0
    %3656 = vmatprep.subr.mxu0 0.0
    %3657 = vmatpush1.msra.mxu0 0.0
    %3658 = vmatprep.subr.mxu0 0.0
    %3659 = vmatpush1.msra.mxu0 0.0
    %3660 = vmatprep.mubr.f32.mxu0 0.0
    %v3661 = vand.u32 %v3278, 4294901760
    %v3662 = vsub.f32 %v3278, %v3661
    %v3663 = vand.u32 %v3662, 4294901760
    %3664 = vmatmul.mubr.f32.gmra.mrb[0].mxu0 %v3663
    %v3665 = vpop.f32.mrb[0].mxu0
    %v3666 = vadd.f32 %v3578, %v3665
    %v3667 = vpop.f32.mrb[0].mxu0
    %3668 = vmatprep.mubr.f32.mxu0 0.0
    %v3669 = vand.u32 %v3281, 4294901760
    %v3670 = vsub.f32 %v3281, %v3669
    %v3671 = vand.u32 %v3670, 4294901760
    %3672 = vmatmul.mubr.f32.gmra.mrb[0].mxu0 %v3671
    %v3673 = vpop.f32.mrb[0].mxu0
    %v3674 = vadd.f32 %v3585, %v3673
    %v3675 = vpop.f32.mrb[0].mxu0
    %3676 = vdwg.mxu0
    %3677 = vmatprep.subr.mxu0 0.0
    %v3678 = vand.u32 %v106, 4294901760
    %v3679 = vsub.f32 %v106, %v3678
    %v3680 = vand.u32 %v3679, 4294901760
    %3681 = vmatpush1.msra.mxu0 %v3680
    %3682 = vmatprep.subr.mxu0 0.0
    %v3683 = vand.u32 %v107, 4294901760
    %v3684 = vsub.f32 %v107, %v3683
    %v3685 = vand.u32 %v3684, 4294901760
    %3686 = vmatpush1.msra.mxu0 %v3685
    %3687 = vmatprep.subr.mxu0 0.0
    %v3688 = vand.u32 %v108, 4294901760
    %v3689 = vsub.f32 %v108, %v3688
    %v3690 = vand.u32 %v3689, 4294901760
    %3691 = vmatpush1.msra.mxu0 %v3690
    %3692 = vmatprep.subr.mxu0 0.0
    %v3693 = vand.u32 %v109, 4294901760
    %v3694 = vsub.f32 %v109, %v3693
    %v3695 = vand.u32 %v3694, 4294901760
    %3696 = vmatpush1.msra.mxu0 %v3695
    %3697 = vmatprep.subr.mxu0 0.0
    %v3698 = vand.u32 %v110, 4294901760
    %v3699 = vsub.f32 %v110, %v3698
    %v3700 = vand.u32 %v3699, 4294901760
    %3701 = vmatpush1.msra.mxu0 %v3700
    %3702 = vmatprep.subr.mxu0 0.0
    %v3703 = vand.u32 %v111, 4294901760
    %v3704 = vsub.f32 %v111, %v3703
    %v3705 = vand.u32 %v3704, 4294901760
    %3706 = vmatpush1.msra.mxu0 %v3705
    %3707 = vmatprep.subr.mxu0 0.0
    %v3708 = vand.u32 %v112, 4294901760
    %v3709 = vsub.f32 %v112, %v3708
    %v3710 = vand.u32 %v3709, 4294901760
    %3711 = vmatpush1.msra.mxu0 %v3710
    %3712 = vmatprep.subr.mxu0 0.0
    %v3713 = vand.u32 %v113, 4294901760
    %v3714 = vsub.f32 %v113, %v3713
    %v3715 = vand.u32 %v3714, 4294901760
    %3716 = vmatpush1.msra.mxu0 %v3715
    %3717 = vmatprep.subr.mxu0 0.0
    %3718 = vmatpush1.msra.mxu0 0.0
    %3719 = vmatprep.subr.mxu0 0.0
    %3720 = vmatpush1.msra.mxu0 0.0
    %3721 = vmatprep.subr.mxu0 0.0
    %3722 = vmatpush1.msra.mxu0 0.0
    %3723 = vmatprep.subr.mxu0 0.0
    %3724 = vmatpush1.msra.mxu0 0.0
    %3725 = vmatprep.subr.mxu0 0.0
    %3726 = vmatpush1.msra.mxu0 0.0
    %3727 = vmatprep.subr.mxu0 0.0
    %3728 = vmatpush1.msra.mxu0 0.0
    %3729 = vmatprep.subr.mxu0 0.0
    %3730 = vmatpush1.msra.mxu0 0.0
    %3731 = vmatprep.subr.mxu0 0.0
    %3732 = vmatpush1.msra.mxu0 0.0
    %3733 = vmatprep.subr.mxu0 0.0
    %3734 = vmatpush1.msra.mxu0 0.0
    %3735 = vmatprep.subr.mxu0 0.0
    %3736 = vmatpush1.msra.mxu0 0.0
    %3737 = vmatprep.subr.mxu0 0.0
    %3738 = vmatpush1.msra.mxu0 0.0
    %3739 = vmatprep.subr.mxu0 0.0
    %3740 = vmatpush1.msra.mxu0 0.0
    %3741 = vmatprep.subr.mxu0 0.0
    %3742 = vmatpush1.msra.mxu0 0.0
    %3743 = vmatprep.subr.mxu0 0.0
    %3744 = vmatpush1.msra.mxu0 0.0
    %3745 = vmatprep.subr.mxu0 0.0
    %3746 = vmatpush1.msra.mxu0 0.0
    %3747 = vmatprep.subr.mxu0 0.0
    %3748 = vmatpush1.msra.mxu0 0.0
    %3749 = vmatprep.subr.mxu0 0.0
    %3750 = vmatpush1.msra.mxu0 0.0
    %3751 = vmatprep.subr.mxu0 0.0
    %3752 = vmatpush1.msra.mxu0 0.0
    %3753 = vmatprep.subr.mxu0 0.0
    %3754 = vmatpush1.msra.mxu0 0.0
    %3755 = vmatprep.subr.mxu0 0.0
    %3756 = vmatpush1.msra.mxu0 0.0
    %3757 = vmatprep.subr.mxu0 0.0
    %3758 = vmatpush1.msra.mxu0 0.0
    %3759 = vmatprep.subr.mxu0 0.0
    %3760 = vmatpush1.msra.mxu0 0.0
    %3761 = vmatprep.subr.mxu0 0.0
    %3762 = vmatpush1.msra.mxu0 0.0
    %3763 = vmatprep.subr.mxu0 0.0
    %3764 = vmatpush1.msra.mxu0 0.0
    %3765 = vmatprep.mubr.f32.mxu0 0.0
    %v3766 = vand.u32 %v3278, 4294901760
    %3767 = vmatmul.mubr.f32.gmra.mrb[0].mxu0 %v3766
    %v3768 = vpop.f32.mrb[0].mxu0
    %v3769 = vadd.f32 %v3666, %v3768
    %v3770 = vpop.f32.mrb[0].mxu0
    %3771 = vmatprep.mubr.f32.mxu0 0.0
    %v3772 = vand.u32 %v3281, 4294901760
    %3773 = vmatmul.mubr.f32.gmra.mrb[0].mxu0 %v3772
    %v3774 = vpop.f32.mrb[0].mxu0
    %v3775 = vadd.f32 %v3674, %v3774
    %v3776 = vpop.f32.mrb[0].mxu0
    %3777 = vdwg.mxu0
    %3778 = vmatprep.subr.mxu0 0.0
    %v3779 = vand.u32 %v106, 4294901760
    %3780 = vmatpush1.msra.mxu0 %v3779
    %3781 = vmatprep.subr.mxu0 0.0
    %v3782 = vand.u32 %v107, 4294901760
    %3783 = vmatpush1.msra.mxu0 %v3782
    %3784 = vmatprep.subr.mxu0 0.0
    %v3785 = vand.u32 %v108, 4294901760
    %3786 = vmatpush1.msra.mxu0 %v3785
    %3787 = vmatprep.subr.mxu0 0.0
    %v3788 = vand.u32 %v109, 4294901760
    %3789 = vmatpush1.msra.mxu0 %v3788
    %3790 = vmatprep.subr.mxu0 0.0
    %v3791 = vand.u32 %v110, 4294901760
    %3792 = vmatpush1.msra.mxu0 %v3791
    %3793 = vmatprep.subr.mxu0 0.0
    %v3794 = vand.u32 %v111, 4294901760
    %3795 = vmatpush1.msra.mxu0 %v3794
    %3796 = vmatprep.subr.mxu0 0.0
    %v3797 = vand.u32 %v112, 4294901760
    %3798 = vmatpush1.msra.mxu0 %v3797
    %3799 = vmatprep.subr.mxu0 0.0
    %v3800 = vand.u32 %v113, 4294901760
    %3801 = vmatpush1.msra.mxu0 %v3800
    %3802 = vmatprep.subr.mxu0 0.0
    %3803 = vmatpush1.msra.mxu0 0.0
    %3804 = vmatprep.subr.mxu0 0.0
    %3805 = vmatpush1.msra.mxu0 0.0
    %3806 = vmatprep.subr.mxu0 0.0
    %3807 = vmatpush1.msra.mxu0 0.0
    %3808 = vmatprep.subr.mxu0 0.0
    %3809 = vmatpush1.msra.mxu0 0.0
    %3810 = vmatprep.subr.mxu0 0.0
    %3811 = vmatpush1.msra.mxu0 0.0
    %3812 = vmatprep.subr.mxu0 0.0
    %3813 = vmatpush1.msra.mxu0 0.0
    %3814 = vmatprep.subr.mxu0 0.0
    %3815 = vmatpush1.msra.mxu0 0.0
    %3816 = vmatprep.subr.mxu0 0.0
    %3817 = vmatpush1.msra.mxu0 0.0
    %3818 = vmatprep.subr.mxu0 0.0
    %3819 = vmatpush1.msra.mxu0 0.0
    %3820 = vmatprep.subr.mxu0 0.0
    %3821 = vmatpush1.msra.mxu0 0.0
    %3822 = vmatprep.subr.mxu0 0.0
    %3823 = vmatpush1.msra.mxu0 0.0
    %3824 = vmatprep.subr.mxu0 0.0
    %3825 = vmatpush1.msra.mxu0 0.0
    %3826 = vmatprep.subr.mxu0 0.0
    %3827 = vmatpush1.msra.mxu0 0.0
    %3828 = vmatprep.subr.mxu0 0.0
    %3829 = vmatpush1.msra.mxu0 0.0
    %3830 = vmatprep.subr.mxu0 0.0
    %3831 = vmatpush1.msra.mxu0 0.0
    %3832 = vmatprep.subr.mxu0 0.0
    %3833 = vmatpush1.msra.mxu0 0.0
    %3834 = vmatprep.subr.mxu0 0.0
    %3835 = vmatpush1.msra.mxu0 0.0
    %3836 = vmatprep.subr.mxu0 0.0
    %3837 = vmatpush1.msra.mxu0 0.0
    %3838 = vmatprep.subr.mxu0 0.0
    %3839 = vmatpush1.msra.mxu0 0.0
    %3840 = vmatprep.subr.mxu0 0.0
    %3841 = vmatpush1.msra.mxu0 0.0
    %3842 = vmatprep.subr.mxu0 0.0
    %3843 = vmatpush1.msra.mxu0 0.0
    %3844 = vmatprep.subr.mxu0 0.0
    %3845 = vmatpush1.msra.mxu0 0.0
    %3846 = vmatprep.subr.mxu0 0.0
    %3847 = vmatpush1.msra.mxu0 0.0
    %3848 = vmatprep.subr.mxu0 0.0
    %3849 = vmatpush1.msra.mxu0 0.0
    %3850 = vmatprep.mubr.f32.mxu0 0.0
    %v3851 = vand.u32 %v3278, 4294901760
    %3852 = vmatmul.mubr.f32.gmra.mrb[0].mxu0 %v3851
    %v3853 = vpop.f32.mrb[0].mxu0
    %v3854 = vadd.f32 %v3769, %v3853
    %v3855 = vpop.f32.mrb[0].mxu0
    %3856 = vmatprep.mubr.f32.mxu0 0.0
    %v3857 = vand.u32 %v3281, 4294901760
    %3858 = vmatmul.mubr.f32.gmra.mrb[0].mxu0 %v3857
    %v3859 = vpop.f32.mrb[0].mxu0
    %v3860 = vadd.f32 %v3775, %v3859
    %v3861 = vpop.f32.mrb[0].mxu0
    %3862 = vdwg.mxu0
    %v3863 = vsel %vm678, %v3854, -inf
    %3864 = vmax.xlane.f32.xlu0 %v3863
    %v3865 = vpop.xlane.xlu0 %3864
    %v3866 = vsel %vm678, %v3860, -inf
    %3867 = vmax.xlane.f32.xlu0 %v3866
    %v3868 = vpop.xlane.xlu0 %3867
    %v3869 = vsub.f32 %v3854, %v3865
    %v3870 = vsub.f32 %v3860, %v3868
    %v3871 = vmul.f32 %v3869, 1.442695
    %v3872 = vpow.pop %v3871
    %v3873 = vmul.f32 %v3870, 1.442695
    %v3874 = vpow.pop %v3873
    %v3875 = vsel %vm678, %v3872, 0.0
    %3876 = vadd.xlane.f32.xlu0 %v3875
    %v3877 = vpop.xlane.xlu0 %3876
    %v3878 = vsel %vm678, %v3874, 0.0
    %3879 = vadd.xlane.f32.xlu0 %v3878
    %v3880 = vpop.xlane.xlu0 %3879
    %v3881 = vrcp.pop %v3877
    %v3882 = vmul.f32 %v3872, %v3881
    %v3883 = vrcp.pop %v3880
    %v3884 = vmul.f32 %v3874, %v3883
    %v3886 = vsel %vm678, %v3882, 0
    %v3889 = vsel %vm678, %v3884, 0
    %3891 = vmatprep.subr.mxu0 0.0
    %v3892 = vand.u32 %v684, 4294901760
    %3893 = vmatpush1.msra.mxu0 %v3892
    %3894 = vmatprep.subr.mxu0 0.0
    %3895 = vmatpush1.msra.mxu0 0.0
    %3896 = vmatprep.subr.mxu0 0.0
    %3897 = vmatpush1.msra.mxu0 0.0
    %3898 = vmatprep.subr.mxu0 0.0
    %3899 = vmatpush1.msra.mxu0 0.0
    %3900 = vmatprep.subr.mxu0 0.0
    %3901 = vmatpush1.msra.mxu0 0.0
    %3902 = vmatprep.subr.mxu0 0.0
    %3903 = vmatpush1.msra.mxu0 0.0
    %3904 = vmatprep.subr.mxu0 0.0
    %3905 = vmatpush1.msra.mxu0 0.0
    %3906 = vmatprep.subr.mxu0 0.0
    %3907 = vmatpush1.msra.mxu0 0.0
    %3908 = vmatprep.subr.mxu0 0.0
    %3909 = vmatpush1.msra.mxu0 0.0
    %3910 = vmatprep.subr.mxu0 0.0
    %3911 = vmatpush1.msra.mxu0 0.0
    %3912 = vmatprep.subr.mxu0 0.0
    %3913 = vmatpush1.msra.mxu0 0.0
    %3914 = vmatprep.subr.mxu0 0.0
    %3915 = vmatpush1.msra.mxu0 0.0
    %3916 = vmatprep.subr.mxu0 0.0
    %3917 = vmatpush1.msra.mxu0 0.0
    %3918 = vmatprep.subr.mxu0 0.0
    %3919 = vmatpush1.msra.mxu0 0.0
    %3920 = vmatprep.subr.mxu0 0.0
    %3921 = vmatpush1.msra.mxu0 0.0
    %3922 = vmatprep.subr.mxu0 0.0
    %3923 = vmatpush1.msra.mxu0 0.0
    %3924 = vmatprep.subr.mxu0 0.0
    %3925 = vmatpush1.msra.mxu0 0.0
    %3926 = vmatprep.subr.mxu0 0.0
    %3927 = vmatpush1.msra.mxu0 0.0
    %3928 = vmatprep.subr.mxu0 0.0
    %3929 = vmatpush1.msra.mxu0 0.0
    %3930 = vmatprep.subr.mxu0 0.0
    %3931 = vmatpush1.msra.mxu0 0.0
    %3932 = vmatprep.subr.mxu0 0.0
    %3933 = vmatpush1.msra.mxu0 0.0
    %3934 = vmatprep.subr.mxu0 0.0
    %3935 = vmatpush1.msra.mxu0 0.0
    %3936 = vmatprep.subr.mxu0 0.0
    %3937 = vmatpush1.msra.mxu0 0.0
    %3938 = vmatprep.subr.mxu0 0.0
    %3939 = vmatpush1.msra.mxu0 0.0
    %3940 = vmatprep.subr.mxu0 0.0
    %3941 = vmatpush1.msra.mxu0 0.0
    %3942 = vmatprep.subr.mxu0 0.0
    %3943 = vmatpush1.msra.mxu0 0.0
    %3944 = vmatprep.subr.mxu0 0.0
    %3945 = vmatpush1.msra.mxu0 0.0
    %3946 = vmatprep.subr.mxu0 0.0
    %3947 = vmatpush1.msra.mxu0 0.0
    %3948 = vmatprep.subr.mxu0 0.0
    %3949 = vmatpush1.msra.mxu0 0.0
    %3950 = vmatprep.subr.mxu0 0.0
    %3951 = vmatpush1.msra.mxu0 0.0
    %3952 = vmatprep.subr.mxu0 0.0
    %3953 = vmatpush1.msra.mxu0 0.0
    %3954 = vmatprep.subr.mxu0 0.0
    %3955 = vmatpush1.msra.mxu0 0.0
    %3956 = vmatprep.mubr.f32.mxu0 0.0
    %v3957 = vand.u32 %v3886, 4294901760
    %v3958 = vsub.f32 %v3886, %v3957
    %v3959 = vand.u32 %v3958, 4294901760
    %v3960 = vsub.f32 %v3958, %v3959
    %v3961 = vand.u32 %v3960, 4294901760
    %3962 = vmatmul.mubr.f32.gmra.mrb[0].mxu0 %v3961
    %v3963 = vpop.f32.mrb[0].mxu0
    %v3964 = vadd.f32 0.0, %v3963
    %v3965 = vpop.f32.mrb[0].mxu0
    %3966 = vmatprep.mubr.f32.mxu0 0.0
    %v3967 = vand.u32 %v3889, 4294901760
    %v3968 = vsub.f32 %v3889, %v3967
    %v3969 = vand.u32 %v3968, 4294901760
    %v3970 = vsub.f32 %v3968, %v3969
    %v3971 = vand.u32 %v3970, 4294901760
    %3972 = vmatmul.mubr.f32.gmra.mrb[0].mxu0 %v3971
    %v3973 = vpop.f32.mrb[0].mxu0
    %v3974 = vadd.f32 0.0, %v3973
    %v3975 = vpop.f32.mrb[0].mxu0
    %3976 = vdwg.mxu0
    %3977 = vmatprep.subr.mxu0 0.0
    %v3978 = vand.u32 %v684, 4294901760
    %v3979 = vsub.f32 %v684, %v3978
    %v3980 = vand.u32 %v3979, 4294901760
    %v3981 = vsub.f32 %v3979, %v3980
    %v3982 = vand.u32 %v3981, 4294901760
    %3983 = vmatpush1.msra.mxu0 %v3982
    %3984 = vmatprep.subr.mxu0 0.0
    %3985 = vmatpush1.msra.mxu0 0.0
    %3986 = vmatprep.subr.mxu0 0.0
    %3987 = vmatpush1.msra.mxu0 0.0
    %3988 = vmatprep.subr.mxu0 0.0
    %3989 = vmatpush1.msra.mxu0 0.0
    %3990 = vmatprep.subr.mxu0 0.0
    %3991 = vmatpush1.msra.mxu0 0.0
    %3992 = vmatprep.subr.mxu0 0.0
    %3993 = vmatpush1.msra.mxu0 0.0
    %3994 = vmatprep.subr.mxu0 0.0
    %3995 = vmatpush1.msra.mxu0 0.0
    %3996 = vmatprep.subr.mxu0 0.0
    %3997 = vmatpush1.msra.mxu0 0.0
    %3998 = vmatprep.subr.mxu0 0.0
    %3999 = vmatpush1.msra.mxu0 0.0
    %4000 = vmatprep.subr.mxu0 0.0
    %4001 = vmatpush1.msra.mxu0 0.0
    %4002 = vmatprep.subr.mxu0 0.0
    %4003 = vmatpush1.msra.mxu0 0.0
    %4004 = vmatprep.subr.mxu0 0.0
    %4005 = vmatpush1.msra.mxu0 0.0
    %4006 = vmatprep.subr.mxu0 0.0
    %4007 = vmatpush1.msra.mxu0 0.0
    %4008 = vmatprep.subr.mxu0 0.0
    %4009 = vmatpush1.msra.mxu0 0.0
    %4010 = vmatprep.subr.mxu0 0.0
    %4011 = vmatpush1.msra.mxu0 0.0
    %4012 = vmatprep.subr.mxu0 0.0
    %4013 = vmatpush1.msra.mxu0 0.0
    %4014 = vmatprep.subr.mxu0 0.0
    %4015 = vmatpush1.msra.mxu0 0.0
    %4016 = vmatprep.subr.mxu0 0.0
    %4017 = vmatpush1.msra.mxu0 0.0
    %4018 = vmatprep.subr.mxu0 0.0
    %4019 = vmatpush1.msra.mxu0 0.0
    %4020 = vmatprep.subr.mxu0 0.0
    %4021 = vmatpush1.msra.mxu0 0.0
    %4022 = vmatprep.subr.mxu0 0.0
    %4023 = vmatpush1.msra.mxu0 0.0
    %4024 = vmatprep.subr.mxu0 0.0
    %4025 = vmatpush1.msra.mxu0 0.0
    %4026 = vmatprep.subr.mxu0 0.0
    %4027 = vmatpush1.msra.mxu0 0.0
    %4028 = vmatprep.subr.mxu0 0.0
    %4029 = vmatpush1.msra.mxu0 0.0
    %4030 = vmatprep.subr.mxu0 0.0
    %4031 = vmatpush1.msra.mxu0 0.0
    %4032 = vmatprep.subr.mxu0 0.0
    %4033 = vmatpush1.msra.mxu0 0.0
    %4034 = vmatprep.subr.mxu0 0.0
    %4035 = vmatpush1.msra.mxu0 0.0
    %4036 = vmatprep.subr.mxu0 0.0
    %4037 = vmatpush1.msra.mxu0 0.0
    %4038 = vmatprep.subr.mxu0 0.0
    %4039 = vmatpush1.msra.mxu0 0.0
    %4040 = vmatprep.subr.mxu0 0.0
    %4041 = vmatpush1.msra.mxu0 0.0
    %4042 = vmatprep.subr.mxu0 0.0
    %4043 = vmatpush1.msra.mxu0 0.0
    %4044 = vmatprep.subr.mxu0 0.0
    %4045 = vmatpush1.msra.mxu0 0.0
    %4046 = vmatprep.mubr.f32.mxu0 0.0
    %v4047 = vand.u32 %v3886, 4294901760
    %4048 = vmatmul.mubr.f32.gmra.mrb[0].mxu0 %v4047
    %v4049 = vpop.f32.mrb[0].mxu0
    %v4050 = vadd.f32 %v3964, %v4049
    %v4051 = vpop.f32.mrb[0].mxu0
    %4052 = vmatprep.mubr.f32.mxu0 0.0
    %v4053 = vand.u32 %v3889, 4294901760
    %4054 = vmatmul.mubr.f32.gmra.mrb[0].mxu0 %v4053
    %v4055 = vpop.f32.mrb[0].mxu0
    %v4056 = vadd.f32 %v3974, %v4055
    %v4057 = vpop.f32.mrb[0].mxu0
    %4058 = vdwg.mxu0
    %4059 = vmatprep.subr.mxu0 0.0
    %v4060 = vand.u32 %v684, 4294901760
    %v4061 = vsub.f32 %v684, %v4060
    %4062 = vmatpush1.msra.mxu0 %v4061
    %4063 = vmatprep.subr.mxu0 0.0
    %4064 = vmatpush1.msra.mxu0 0.0
    %4065 = vmatprep.subr.mxu0 0.0
    %4066 = vmatpush1.msra.mxu0 0.0
    %4067 = vmatprep.subr.mxu0 0.0
    %4068 = vmatpush1.msra.mxu0 0.0
    %4069 = vmatprep.subr.mxu0 0.0
    %4070 = vmatpush1.msra.mxu0 0.0
    %4071 = vmatprep.subr.mxu0 0.0
    %4072 = vmatpush1.msra.mxu0 0.0
    %4073 = vmatprep.subr.mxu0 0.0
    %4074 = vmatpush1.msra.mxu0 0.0
    %4075 = vmatprep.subr.mxu0 0.0
    %4076 = vmatpush1.msra.mxu0 0.0
    %4077 = vmatprep.subr.mxu0 0.0
    %4078 = vmatpush1.msra.mxu0 0.0
    %4079 = vmatprep.subr.mxu0 0.0
    %4080 = vmatpush1.msra.mxu0 0.0
    %4081 = vmatprep.subr.mxu0 0.0
    %4082 = vmatpush1.msra.mxu0 0.0
    %4083 = vmatprep.subr.mxu0 0.0
    %4084 = vmatpush1.msra.mxu0 0.0
    %4085 = vmatprep.subr.mxu0 0.0
    %4086 = vmatpush1.msra.mxu0 0.0
    %4087 = vmatprep.subr.mxu0 0.0
    %4088 = vmatpush1.msra.mxu0 0.0
    %4089 = vmatprep.subr.mxu0 0.0
    %4090 = vmatpush1.msra.mxu0 0.0
    %4091 = vmatprep.subr.mxu0 0.0
    %4092 = vmatpush1.msra.mxu0 0.0
    %4093 = vmatprep.subr.mxu0 0.0
    %4094 = vmatpush1.msra.mxu0 0.0
    %4095 = vmatprep.subr.mxu0 0.0
    %4096 = vmatpush1.msra.mxu0 0.0
    %4097 = vmatprep.subr.mxu0 0.0
    %4098 = vmatpush1.msra.mxu0 0.0
    %4099 = vmatprep.subr.mxu0 0.0
    %4100 = vmatpush1.msra.mxu0 0.0
    %4101 = vmatprep.subr.mxu0 0.0
    %4102 = vmatpush1.msra.mxu0 0.0
    %4103 = vmatprep.subr.mxu0 0.0
    %4104 = vmatpush1.msra.mxu0 0.0
    %4105 = vmatprep.subr.mxu0 0.0
    %4106 = vmatpush1.msra.mxu0 0.0
    %4107 = vmatprep.subr.mxu0 0.0
    %4108 = vmatpush1.msra.mxu0 0.0
    %4109 = vmatprep.subr.mxu0 0.0
    %4110 = vmatpush1.msra.mxu0 0.0
    %4111 = vmatprep.subr.mxu0 0.0
    %4112 = vmatpush1.msra.mxu0 0.0
    %4113 = vmatprep.subr.mxu0 0.0
    %4114 = vmatpush1.msra.mxu0 0.0
    %4115 = vmatprep.subr.mxu0 0.0
    %4116 = vmatpush1.msra.mxu0 0.0
    %4117 = vmatprep.subr.mxu0 0.0
    %4118 = vmatpush1.msra.mxu0 0.0
    %4119 = vmatprep.subr.mxu0 0.0
    %4120 = vmatpush1.msra.mxu0 0.0
    %4121 = vmatprep.subr.mxu0 0.0
    %4122 = vmatpush1.msra.mxu0 0.0
    %4123 = vmatprep.subr.mxu0 0.0
    %4124 = vmatpush1.msra.mxu0 0.0
    %4125 = vmatprep.mubr.f32.mxu0 0.0
    %v4126 = vand.u32 %v3886, 4294901760
    %v4127 = vsub.f32 %v3886, %v4126
    %4128 = vmatmul.mubr.f32.gmra.mrb[0].mxu0 %v4127
    %v4129 = vpop.f32.mrb[0].mxu0
    %v4130 = vadd.f32 %v4050, %v4129
    %v4131 = vpop.f32.mrb[0].mxu0
    %4132 = vmatprep.mubr.f32.mxu0 0.0
    %v4133 = vand.u32 %v3889, 4294901760
    %v4134 = vsub.f32 %v3889, %v4133
    %4135 = vmatmul.mubr.f32.gmra.mrb[0].mxu0 %v4134
    %v4136 = vpop.f32.mrb[0].mxu0
    %v4137 = vadd.f32 %v4056, %v4136
    %v4138 = vpop.f32.mrb[0].mxu0
    %4139 = vdwg.mxu0
    %4140 = vmatprep.subr.mxu0 0.0
    %v4141 = vand.u32 %v684, 4294901760
    %4142 = vmatpush1.msra.mxu0 %v4141
    %4143 = vmatprep.subr.mxu0 0.0
    %4144 = vmatpush1.msra.mxu0 0.0
    %4145 = vmatprep.subr.mxu0 0.0
    %4146 = vmatpush1.msra.mxu0 0.0
    %4147 = vmatprep.subr.mxu0 0.0
    %4148 = vmatpush1.msra.mxu0 0.0
    %4149 = vmatprep.subr.mxu0 0.0
    %4150 = vmatpush1.msra.mxu0 0.0
    %4151 = vmatprep.subr.mxu0 0.0
    %4152 = vmatpush1.msra.mxu0 0.0
    %4153 = vmatprep.subr.mxu0 0.0
    %4154 = vmatpush1.msra.mxu0 0.0
    %4155 = vmatprep.subr.mxu0 0.0
    %4156 = vmatpush1.msra.mxu0 0.0
    %4157 = vmatprep.subr.mxu0 0.0
    %4158 = vmatpush1.msra.mxu0 0.0
    %4159 = vmatprep.subr.mxu0 0.0
    %4160 = vmatpush1.msra.mxu0 0.0
    %4161 = vmatprep.subr.mxu0 0.0
    %4162 = vmatpush1.msra.mxu0 0.0
    %4163 = vmatprep.subr.mxu0 0.0
    %4164 = vmatpush1.msra.mxu0 0.0
    %4165 = vmatprep.subr.mxu0 0.0
    %4166 = vmatpush1.msra.mxu0 0.0
    %4167 = vmatprep.subr.mxu0 0.0
    %4168 = vmatpush1.msra.mxu0 0.0
    %4169 = vmatprep.subr.mxu0 0.0
    %4170 = vmatpush1.msra.mxu0 0.0
    %4171 = vmatprep.subr.mxu0 0.0
    %4172 = vmatpush1.msra.mxu0 0.0
    %4173 = vmatprep.subr.mxu0 0.0
    %4174 = vmatpush1.msra.mxu0 0.0
    %4175 = vmatprep.subr.mxu0 0.0
    %4176 = vmatpush1.msra.mxu0 0.0
    %4177 = vmatprep.subr.mxu0 0.0
    %4178 = vmatpush1.msra.mxu0 0.0
    %4179 = vmatprep.subr.mxu0 0.0
    %4180 = vmatpush1.msra.mxu0 0.0
    %4181 = vmatprep.subr.mxu0 0.0
    %4182 = vmatpush1.msra.mxu0 0.0
    %4183 = vmatprep.subr.mxu0 0.0
    %4184 = vmatpush1.msra.mxu0 0.0
    %4185 = vmatprep.subr.mxu0 0.0
    %4186 = vmatpush1.msra.mxu0 0.0
    %4187 = vmatprep.subr.mxu0 0.0
    %4188 = vmatpush1.msra.mxu0 0.0
    %4189 = vmatprep.subr.mxu0 0.0
    %4190 = vmatpush1.msra.mxu0 0.0
    %4191 = vmatprep.subr.mxu0 0.0
    %4192 = vmatpush1.msra.mxu0 0.0
    %4193 = vmatprep.subr.mxu0 0.0
    %4194 = vmatpush1.msra.mxu0 0.0
    %4195 = vmatprep.subr.mxu0 0.0
    %4196 = vmatpush1.msra.mxu0 0.0
    %4197 = vmatprep.subr.mxu0 0.0
    %4198 = vmatpush1.msra.mxu0 0.0
    %4199 = vmatprep.subr.mxu0 0.0
    %4200 = vmatpush1.msra.mxu0 0.0
    %4201 = vmatprep.subr.mxu0 0.0
    %4202 = vmatpush1.msra.mxu0 0.0
    %4203 = vmatprep.subr.mxu0 0.0
    %4204 = vmatpush1.msra.mxu0 0.0
    %4205 = vmatprep.mubr.f32.mxu0 0.0
    %v4206 = vand.u32 %v3886, 4294901760
    %v4207 = vsub.f32 %v3886, %v4206
    %v4208 = vand.u32 %v4207, 4294901760
    %4209 = vmatmul.mubr.f32.gmra.mrb[0].mxu0 %v4208
    %v4210 = vpop.f32.mrb[0].mxu0
    %v4211 = vadd.f32 %v4130, %v4210
    %v4212 = vpop.f32.mrb[0].mxu0
    %4213 = vmatprep.mubr.f32.mxu0 0.0
    %v4214 = vand.u32 %v3889, 4294901760
    %v4215 = vsub.f32 %v3889, %v4214
    %v4216 = vand.u32 %v4215, 4294901760
    %4217 = vmatmul.mubr.f32.gmra.mrb[0].mxu0 %v4216
    %v4218 = vpop.f32.mrb[0].mxu0
    %v4219 = vadd.f32 %v4137, %v4218
    %v4220 = vpop.f32.mrb[0].mxu0
    %4221 = vdwg.mxu0
    %4222 = vmatprep.subr.mxu0 0.0
    %v4223 = vand.u32 %v684, 4294901760
    %v4224 = vsub.f32 %v684, %v4223
    %v4225 = vand.u32 %v4224, 4294901760
    %4226 = vmatpush1.msra.mxu0 %v4225
    %4227 = vmatprep.subr.mxu0 0.0
    %4228 = vmatpush1.msra.mxu0 0.0
    %4229 = vmatprep.subr.mxu0 0.0
    %4230 = vmatpush1.msra.mxu0 0.0
    %4231 = vmatprep.subr.mxu0 0.0
    %4232 = vmatpush1.msra.mxu0 0.0
    %4233 = vmatprep.subr.mxu0 0.0
    %4234 = vmatpush1.msra.mxu0 0.0
    %4235 = vmatprep.subr.mxu0 0.0
    %4236 = vmatpush1.msra.mxu0 0.0
    %4237 = vmatprep.subr.mxu0 0.0
    %4238 = vmatpush1.msra.mxu0 0.0
    %4239 = vmatprep.subr.mxu0 0.0
    %4240 = vmatpush1.msra.mxu0 0.0
    %4241 = vmatprep.subr.mxu0 0.0
    %4242 = vmatpush1.msra.mxu0 0.0
    %4243 = vmatprep.subr.mxu0 0.0
    %4244 = vmatpush1.msra.mxu0 0.0
    %4245 = vmatprep.subr.mxu0 0.0
    %4246 = vmatpush1.msra.mxu0 0.0
    %4247 = vmatprep.subr.mxu0 0.0
    %4248 = vmatpush1.msra.mxu0 0.0
    %4249 = vmatprep.subr.mxu0 0.0
    %4250 = vmatpush1.msra.mxu0 0.0
    %4251 = vmatprep.subr.mxu0 0.0
    %4252 = vmatpush1.msra.mxu0 0.0
    %4253 = vmatprep.subr.mxu0 0.0
    %4254 = vmatpush1.msra.mxu0 0.0
    %4255 = vmatprep.subr.mxu0 0.0
    %4256 = vmatpush1.msra.mxu0 0.0
    %4257 = vmatprep.subr.mxu0 0.0
    %4258 = vmatpush1.msra.mxu0 0.0
    %4259 = vmatprep.subr.mxu0 0.0
    %4260 = vmatpush1.msra.mxu0 0.0
    %4261 = vmatprep.subr.mxu0 0.0
    %4262 = vmatpush1.msra.mxu0 0.0
    %4263 = vmatprep.subr.mxu0 0.0
    %4264 = vmatpush1.msra.mxu0 0.0
    %4265 = vmatprep.subr.mxu0 0.0
    %4266 = vmatpush1.msra.mxu0 0.0
    %4267 = vmatprep.subr.mxu0 0.0
    %4268 = vmatpush1.msra.mxu0 0.0
    %4269 = vmatprep.subr.mxu0 0.0
    %4270 = vmatpush1.msra.mxu0 0.0
    %4271 = vmatprep.subr.mxu0 0.0
    %4272 = vmatpush1.msra.mxu0 0.0
    %4273 = vmatprep.subr.mxu0 0.0
    %4274 = vmatpush1.msra.mxu0 0.0
    %4275 = vmatprep.subr.mxu0 0.0
    %4276 = vmatpush1.msra.mxu0 0.0
    %4277 = vmatprep.subr.mxu0 0.0
    %4278 = vmatpush1.msra.mxu0 0.0
    %4279 = vmatprep.subr.mxu0 0.0
    %4280 = vmatpush1.msra.mxu0 0.0
    %4281 = vmatprep.subr.mxu0 0.0
    %4282 = vmatpush1.msra.mxu0 0.0
    %4283 = vmatprep.subr.mxu0 0.0
    %4284 = vmatpush1.msra.mxu0 0.0
    %4285 = vmatprep.subr.mxu0 0.0
    %4286 = vmatpush1.msra.mxu0 0.0
    %4287 = vmatprep.subr.mxu0 0.0
    %4288 = vmatpush1.msra.mxu0 0.0
    %4289 = vmatprep.mubr.f32.mxu0 0.0
    %v4290 = vand.u32 %v3886, 4294901760
    %4291 = vmatmul.mubr.f32.gmra.mrb[0].mxu0 %v4290
    %v4292 = vpop.f32.mrb[0].mxu0
    %v4293 = vadd.f32 %v4211, %v4292
    %v4294 = vpop.f32.mrb[0].mxu0
    %4295 = vmatprep.mubr.f32.mxu0 0.0
    %v4296 = vand.u32 %v3889, 4294901760
    %4297 = vmatmul.mubr.f32.gmra.mrb[0].mxu0 %v4296
    %v4298 = vpop.f32.mrb[0].mxu0
    %v4299 = vadd.f32 %v4219, %v4298
    %v4300 = vpop.f32.mrb[0].mxu0
    %4301 = vdwg.mxu0
    %4302 = vmatprep.subr.mxu0 0.0
    %v4303 = vand.u32 %v684, 4294901760
    %4304 = vmatpush1.msra.mxu0 %v4303
    %4305 = vmatprep.subr.mxu0 0.0
    %4306 = vmatpush1.msra.mxu0 0.0
    %4307 = vmatprep.subr.mxu0 0.0
    %4308 = vmatpush1.msra.mxu0 0.0
    %4309 = vmatprep.subr.mxu0 0.0
    %4310 = vmatpush1.msra.mxu0 0.0
    %4311 = vmatprep.subr.mxu0 0.0
    %4312 = vmatpush1.msra.mxu0 0.0
    %4313 = vmatprep.subr.mxu0 0.0
    %4314 = vmatpush1.msra.mxu0 0.0
    %4315 = vmatprep.subr.mxu0 0.0
    %4316 = vmatpush1.msra.mxu0 0.0
    %4317 = vmatprep.subr.mxu0 0.0
    %4318 = vmatpush1.msra.mxu0 0.0
    %4319 = vmatprep.subr.mxu0 0.0
    %4320 = vmatpush1.msra.mxu0 0.0
    %4321 = vmatprep.subr.mxu0 0.0
    %4322 = vmatpush1.msra.mxu0 0.0
    %4323 = vmatprep.subr.mxu0 0.0
    %4324 = vmatpush1.msra.mxu0 0.0
    %4325 = vmatprep.subr.mxu0 0.0
    %4326 = vmatpush1.msra.mxu0 0.0
    %4327 = vmatprep.subr.mxu0 0.0
    %4328 = vmatpush1.msra.mxu0 0.0
    %4329 = vmatprep.subr.mxu0 0.0
    %4330 = vmatpush1.msra.mxu0 0.0
    %4331 = vmatprep.subr.mxu0 0.0
    %4332 = vmatpush1.msra.mxu0 0.0
    %4333 = vmatprep.subr.mxu0 0.0
    %4334 = vmatpush1.msra.mxu0 0.0
    %4335 = vmatprep.subr.mxu0 0.0
    %4336 = vmatpush1.msra.mxu0 0.0
    %4337 = vmatprep.subr.mxu0 0.0
    %4338 = vmatpush1.msra.mxu0 0.0
    %4339 = vmatprep.subr.mxu0 0.0
    %4340 = vmatpush1.msra.mxu0 0.0
    %4341 = vmatprep.subr.mxu0 0.0
    %4342 = vmatpush1.msra.mxu0 0.0
    %4343 = vmatprep.subr.mxu0 0.0
    %4344 = vmatpush1.msra.mxu0 0.0
    %4345 = vmatprep.subr.mxu0 0.0
    %4346 = vmatpush1.msra.mxu0 0.0
    %4347 = vmatprep.subr.mxu0 0.0
    %4348 = vmatpush1.msra.mxu0 0.0
    %4349 = vmatprep.subr.mxu0 0.0
    %4350 = vmatpush1.msra.mxu0 0.0
    %4351 = vmatprep.subr.mxu0 0.0
    %4352 = vmatpush1.msra.mxu0 0.0
    %4353 = vmatprep.subr.mxu0 0.0
    %4354 = vmatpush1.msra.mxu0 0.0
    %4355 = vmatprep.subr.mxu0 0.0
    %4356 = vmatpush1.msra.mxu0 0.0
    %4357 = vmatprep.subr.mxu0 0.0
    %4358 = vmatpush1.msra.mxu0 0.0
    %4359 = vmatprep.subr.mxu0 0.0
    %4360 = vmatpush1.msra.mxu0 0.0
    %4361 = vmatprep.subr.mxu0 0.0
    %4362 = vmatpush1.msra.mxu0 0.0
    %4363 = vmatprep.subr.mxu0 0.0
    %4364 = vmatpush1.msra.mxu0 0.0
    %4365 = vmatprep.subr.mxu0 0.0
    %4366 = vmatpush1.msra.mxu0 0.0
    %4367 = vmatprep.mubr.f32.mxu0 0.0
    %v4368 = vand.u32 %v3886, 4294901760
    %4369 = vmatmul.mubr.f32.gmra.mrb[0].mxu0 %v4368
    %v4370 = vpop.f32.mrb[0].mxu0
    %v4371 = vadd.f32 %v4293, %v4370
    %v4372 = vpop.f32.mrb[0].mxu0
    %4373 = vmatprep.mubr.f32.mxu0 0.0
    %v4374 = vand.u32 %v3889, 4294901760
    %4375 = vmatmul.mubr.f32.gmra.mrb[0].mxu0 %v4374
    %v4376 = vpop.f32.mrb[0].mxu0
    %v4377 = vadd.f32 %v4299, %v4376
    %v4378 = vpop.f32.mrb[0].mxu0
    %4379 = vdwg.mxu0
    %v4380 = vmul.f32 %v4371, %v98
    %v4381 = vmul.f32 %v4377, %v103
    %v4382 = vsel %vm115, %v4380, 0.0
    %v4383 = vrot.slane %v4382, 4
    %v4384 = vadd.f32 %v4382, %v4383
    %v4385 = vrot.slane %v4384, 2
    %v4386 = vadd.f32 %v4384, %v4385
    %v4387 = vrot.slane %v4386, 1
    %v4388 = vadd.f32 %v4386, %v4387
    %v4389 = vsel %vm115, %v4381, 0.0
    %v4390 = vrot.slane %v4389, 4
    %v4391 = vadd.f32 %v4389, %v4390
    %v4392 = vrot.slane %v4391, 2
    %v4393 = vadd.f32 %v4391, %v4392
    %v4394 = vrot.slane %v4393, 1
    %v4395 = vadd.f32 %v4393, %v4394
    %v4396 = vmul.f32 %v4388, %v4388
    %v4397 = vmul.f32 %v4395, %v4395
    %v4400 = vsel %vm136, %v4397, %v4396
    %v4401 = vsel %vm115, %v4400, 0
    %4403 = vmatprep.subr.mxu0 0.0
    %v4404 = vand.u32 %v106, 4294901760
    %4405 = vmatpush1.msra.mxu0 %v4404
    %4406 = vmatprep.subr.mxu0 0.0
    %v4407 = vand.u32 %v107, 4294901760
    %4408 = vmatpush1.msra.mxu0 %v4407
    %4409 = vmatprep.subr.mxu0 0.0
    %v4410 = vand.u32 %v108, 4294901760
    %4411 = vmatpush1.msra.mxu0 %v4410
    %4412 = vmatprep.subr.mxu0 0.0
    %v4413 = vand.u32 %v109, 4294901760
    %4414 = vmatpush1.msra.mxu0 %v4413
    %4415 = vmatprep.subr.mxu0 0.0
    %v4416 = vand.u32 %v110, 4294901760
    %4417 = vmatpush1.msra.mxu0 %v4416
    %4418 = vmatprep.subr.mxu0 0.0
    %v4419 = vand.u32 %v111, 4294901760
    %4420 = vmatpush1.msra.mxu0 %v4419
    %4421 = vmatprep.subr.mxu0 0.0
    %v4422 = vand.u32 %v112, 4294901760
    %4423 = vmatpush1.msra.mxu0 %v4422
    %4424 = vmatprep.subr.mxu0 0.0
    %v4425 = vand.u32 %v113, 4294901760
    %4426 = vmatpush1.msra.mxu0 %v4425
    %4427 = vmatprep.subr.mxu0 0.0
    %4428 = vmatpush1.msra.mxu0 0.0
    %4429 = vmatprep.subr.mxu0 0.0
    %4430 = vmatpush1.msra.mxu0 0.0
    %4431 = vmatprep.subr.mxu0 0.0
    %4432 = vmatpush1.msra.mxu0 0.0
    %4433 = vmatprep.subr.mxu0 0.0
    %4434 = vmatpush1.msra.mxu0 0.0
    %4435 = vmatprep.subr.mxu0 0.0
    %4436 = vmatpush1.msra.mxu0 0.0
    %4437 = vmatprep.subr.mxu0 0.0
    %4438 = vmatpush1.msra.mxu0 0.0
    %4439 = vmatprep.subr.mxu0 0.0
    %4440 = vmatpush1.msra.mxu0 0.0
    %4441 = vmatprep.subr.mxu0 0.0
    %4442 = vmatpush1.msra.mxu0 0.0
    %4443 = vmatprep.subr.mxu0 0.0
    %4444 = vmatpush1.msra.mxu0 0.0
    %4445 = vmatprep.subr.mxu0 0.0
    %4446 = vmatpush1.msra.mxu0 0.0
    %4447 = vmatprep.subr.mxu0 0.0
    %4448 = vmatpush1.msra.mxu0 0.0
    %4449 = vmatprep.subr.mxu0 0.0
    %4450 = vmatpush1.msra.mxu0 0.0
    %4451 = vmatprep.subr.mxu0 0.0
    %4452 = vmatpush1.msra.mxu0 0.0
    %4453 = vmatprep.subr.mxu0 0.0
    %4454 = vmatpush1.msra.mxu0 0.0
    %4455 = vmatprep.subr.mxu0 0.0
    %4456 = vmatpush1.msra.mxu0 0.0
    %4457 = vmatprep.subr.mxu0 0.0
    %4458 = vmatpush1.msra.mxu0 0.0
    %4459 = vmatprep.subr.mxu0 0.0
    %4460 = vmatpush1.msra.mxu0 0.0
    %4461 = vmatprep.subr.mxu0 0.0
    %4462 = vmatpush1.msra.mxu0 0.0
    %4463 = vmatprep.subr.mxu0 0.0
    %4464 = vmatpush1.msra.mxu0 0.0
    %4465 = vmatprep.subr.mxu0 0.0
    %4466 = vmatpush1.msra.mxu0 0.0
    %4467 = vmatprep.subr.mxu0 0.0
    %4468 = vmatpush1.msra.mxu0 0.0
    %4469 = vmatprep.subr.mxu0 0.0
    %4470 = vmatpush1.msra.mxu0 0.0
    %4471 = vmatprep.subr.mxu0 0.0
    %4472 = vmatpush1.msra.mxu0 0.0
    %4473 = vmatprep.subr.mxu0 0.0
    %4474 = vmatpush1.msra.mxu0 0.0
    %4475 = vmatprep.mubr.f32.mxu0 0.0
    %v4476 = vand.u32 %v4401, 4294901760
    %v4477 = vsub.f32 %v4401, %v4476
    %v4478 = vand.u32 %v4477, 4294901760
    %v4479 = vsub.f32 %v4477, %v4478
    %v4480 = vand.u32 %v4479, 4294901760
    %4481 = vmatmul.mubr.f32.gmra.mrb[0].mxu0 %v4480
    %v4482 = vpop.f32.mrb[0].mxu0
    %v4483 = vadd.f32 1e-07, %v4482
    %v4484 = vpop.f32.mrb[0].mxu0
    %4485 = vdwg.mxu0
    %4486 = vmatprep.subr.mxu0 0.0
    %v4487 = vand.u32 %v106, 4294901760
    %v4488 = vsub.f32 %v106, %v4487
    %v4489 = vand.u32 %v4488, 4294901760
    %v4490 = vsub.f32 %v4488, %v4489
    %v4491 = vand.u32 %v4490, 4294901760
    %4492 = vmatpush1.msra.mxu0 %v4491
    %4493 = vmatprep.subr.mxu0 0.0
    %v4494 = vand.u32 %v107, 4294901760
    %v4495 = vsub.f32 %v107, %v4494
    %v4496 = vand.u32 %v4495, 4294901760
    %v4497 = vsub.f32 %v4495, %v4496
    %v4498 = vand.u32 %v4497, 4294901760
    %4499 = vmatpush1.msra.mxu0 %v4498
    %4500 = vmatprep.subr.mxu0 0.0
    %v4501 = vand.u32 %v108, 4294901760
    %v4502 = vsub.f32 %v108, %v4501
    %v4503 = vand.u32 %v4502, 4294901760
    %v4504 = vsub.f32 %v4502, %v4503
    %v4505 = vand.u32 %v4504, 4294901760
    %4506 = vmatpush1.msra.mxu0 %v4505
    %4507 = vmatprep.subr.mxu0 0.0
    %v4508 = vand.u32 %v109, 4294901760
    %v4509 = vsub.f32 %v109, %v4508
    %v4510 = vand.u32 %v4509, 4294901760
    %v4511 = vsub.f32 %v4509, %v4510
    %v4512 = vand.u32 %v4511, 4294901760
    %4513 = vmatpush1.msra.mxu0 %v4512
    %4514 = vmatprep.subr.mxu0 0.0
    %v4515 = vand.u32 %v110, 4294901760
    %v4516 = vsub.f32 %v110, %v4515
    %v4517 = vand.u32 %v4516, 4294901760
    %v4518 = vsub.f32 %v4516, %v4517
    %v4519 = vand.u32 %v4518, 4294901760
    %4520 = vmatpush1.msra.mxu0 %v4519
    %4521 = vmatprep.subr.mxu0 0.0
    %v4522 = vand.u32 %v111, 4294901760
    %v4523 = vsub.f32 %v111, %v4522
    %v4524 = vand.u32 %v4523, 4294901760
    %v4525 = vsub.f32 %v4523, %v4524
    %v4526 = vand.u32 %v4525, 4294901760
    %4527 = vmatpush1.msra.mxu0 %v4526
    %4528 = vmatprep.subr.mxu0 0.0
    %v4529 = vand.u32 %v112, 4294901760
    %v4530 = vsub.f32 %v112, %v4529
    %v4531 = vand.u32 %v4530, 4294901760
    %v4532 = vsub.f32 %v4530, %v4531
    %v4533 = vand.u32 %v4532, 4294901760
    %4534 = vmatpush1.msra.mxu0 %v4533
    %4535 = vmatprep.subr.mxu0 0.0
    %v4536 = vand.u32 %v113, 4294901760
    %v4537 = vsub.f32 %v113, %v4536
    %v4538 = vand.u32 %v4537, 4294901760
    %v4539 = vsub.f32 %v4537, %v4538
    %v4540 = vand.u32 %v4539, 4294901760
    %4541 = vmatpush1.msra.mxu0 %v4540
    %4542 = vmatprep.subr.mxu0 0.0
    %4543 = vmatpush1.msra.mxu0 0.0
    %4544 = vmatprep.subr.mxu0 0.0
    %4545 = vmatpush1.msra.mxu0 0.0
    %4546 = vmatprep.subr.mxu0 0.0
    %4547 = vmatpush1.msra.mxu0 0.0
    %4548 = vmatprep.subr.mxu0 0.0
    %4549 = vmatpush1.msra.mxu0 0.0
    %4550 = vmatprep.subr.mxu0 0.0
    %4551 = vmatpush1.msra.mxu0 0.0
    %4552 = vmatprep.subr.mxu0 0.0
    %4553 = vmatpush1.msra.mxu0 0.0
    %4554 = vmatprep.subr.mxu0 0.0
    %4555 = vmatpush1.msra.mxu0 0.0
    %4556 = vmatprep.subr.mxu0 0.0
    %4557 = vmatpush1.msra.mxu0 0.0
    %4558 = vmatprep.subr.mxu0 0.0
    %4559 = vmatpush1.msra.mxu0 0.0
    %4560 = vmatprep.subr.mxu0 0.0
    %4561 = vmatpush1.msra.mxu0 0.0
    %4562 = vmatprep.subr.mxu0 0.0
    %4563 = vmatpush1.msra.mxu0 0.0
    %4564 = vmatprep.subr.mxu0 0.0
    %4565 = vmatpush1.msra.mxu0 0.0
    %4566 = vmatprep.subr.mxu0 0.0
    %4567 = vmatpush1.msra.mxu0 0.0
    %4568 = vmatprep.subr.mxu0 0.0
    %4569 = vmatpush1.msra.mxu0 0.0
    %4570 = vmatprep.subr.mxu0 0.0
    %4571 = vmatpush1.msra.mxu0 0.0
    %4572 = vmatprep.subr.mxu0 0.0
    %4573 = vmatpush1.msra.mxu0 0.0
    %4574 = vmatprep.subr.mxu0 0.0
    %4575 = vmatpush1.msra.mxu0 0.0
    %4576 = vmatprep.subr.mxu0 0.0
    %4577 = vmatpush1.msra.mxu0 0.0
    %4578 = vmatprep.subr.mxu0 0.0
    %4579 = vmatpush1.msra.mxu0 0.0
    %4580 = vmatprep.subr.mxu0 0.0
    %4581 = vmatpush1.msra.mxu0 0.0
    %4582 = vmatprep.subr.mxu0 0.0
    %4583 = vmatpush1.msra.mxu0 0.0
    %4584 = vmatprep.subr.mxu0 0.0
    %4585 = vmatpush1.msra.mxu0 0.0
    %4586 = vmatprep.subr.mxu0 0.0
    %4587 = vmatpush1.msra.mxu0 0.0
    %4588 = vmatprep.subr.mxu0 0.0
    %4589 = vmatpush1.msra.mxu0 0.0
    %4590 = vmatprep.mubr.f32.mxu0 0.0
    %v4591 = vand.u32 %v4401, 4294901760
    %4592 = vmatmul.mubr.f32.gmra.mrb[0].mxu0 %v4591
    %v4593 = vpop.f32.mrb[0].mxu0
    %v4594 = vadd.f32 %v4483, %v4593
    %v4595 = vpop.f32.mrb[0].mxu0
    %4596 = vdwg.mxu0
    %4597 = vmatprep.subr.mxu0 0.0
    %v4598 = vand.u32 %v106, 4294901760
    %v4599 = vsub.f32 %v106, %v4598
    %4600 = vmatpush1.msra.mxu0 %v4599
    %4601 = vmatprep.subr.mxu0 0.0
    %v4602 = vand.u32 %v107, 4294901760
    %v4603 = vsub.f32 %v107, %v4602
    %4604 = vmatpush1.msra.mxu0 %v4603
    %4605 = vmatprep.subr.mxu0 0.0
    %v4606 = vand.u32 %v108, 4294901760
    %v4607 = vsub.f32 %v108, %v4606
    %4608 = vmatpush1.msra.mxu0 %v4607
    %4609 = vmatprep.subr.mxu0 0.0
    %v4610 = vand.u32 %v109, 4294901760
    %v4611 = vsub.f32 %v109, %v4610
    %4612 = vmatpush1.msra.mxu0 %v4611
    %4613 = vmatprep.subr.mxu0 0.0
    %v4614 = vand.u32 %v110, 4294901760
    %v4615 = vsub.f32 %v110, %v4614
    %4616 = vmatpush1.msra.mxu0 %v4615
    %4617 = vmatprep.subr.mxu0 0.0
    %v4618 = vand.u32 %v111, 4294901760
    %v4619 = vsub.f32 %v111, %v4618
    %4620 = vmatpush1.msra.mxu0 %v4619
    %4621 = vmatprep.subr.mxu0 0.0
    %v4622 = vand.u32 %v112, 4294901760
    %v4623 = vsub.f32 %v112, %v4622
    %4624 = vmatpush1.msra.mxu0 %v4623
    %4625 = vmatprep.subr.mxu0 0.0
    %v4626 = vand.u32 %v113, 4294901760
    %v4627 = vsub.f32 %v113, %v4626
    %4628 = vmatpush1.msra.mxu0 %v4627
    %4629 = vmatprep.subr.mxu0 0.0
    %4630 = vmatpush1.msra.mxu0 0.0
    %4631 = vmatprep.subr.mxu0 0.0
    %4632 = vmatpush1.msra.mxu0 0.0
    %4633 = vmatprep.subr.mxu0 0.0
    %4634 = vmatpush1.msra.mxu0 0.0
    %4635 = vmatprep.subr.mxu0 0.0
    %4636 = vmatpush1.msra.mxu0 0.0
    %4637 = vmatprep.subr.mxu0 0.0
    %4638 = vmatpush1.msra.mxu0 0.0
    %4639 = vmatprep.subr.mxu0 0.0
    %4640 = vmatpush1.msra.mxu0 0.0
    %4641 = vmatprep.subr.mxu0 0.0
    %4642 = vmatpush1.msra.mxu0 0.0
    %4643 = vmatprep.subr.mxu0 0.0
    %4644 = vmatpush1.msra.mxu0 0.0
    %4645 = vmatprep.subr.mxu0 0.0
    %4646 = vmatpush1.msra.mxu0 0.0
    %4647 = vmatprep.subr.mxu0 0.0
    %4648 = vmatpush1.msra.mxu0 0.0
    %4649 = vmatprep.subr.mxu0 0.0
    %4650 = vmatpush1.msra.mxu0 0.0
    %4651 = vmatprep.subr.mxu0 0.0
    %4652 = vmatpush1.msra.mxu0 0.0
    %4653 = vmatprep.subr.mxu0 0.0
    %4654 = vmatpush1.msra.mxu0 0.0
    %4655 = vmatprep.subr.mxu0 0.0
    %4656 = vmatpush1.msra.mxu0 0.0
    %4657 = vmatprep.subr.mxu0 0.0
    %4658 = vmatpush1.msra.mxu0 0.0
    %4659 = vmatprep.subr.mxu0 0.0
    %4660 = vmatpush1.msra.mxu0 0.0
    %4661 = vmatprep.subr.mxu0 0.0
    %4662 = vmatpush1.msra.mxu0 0.0
    %4663 = vmatprep.subr.mxu0 0.0
    %4664 = vmatpush1.msra.mxu0 0.0
    %4665 = vmatprep.subr.mxu0 0.0
    %4666 = vmatpush1.msra.mxu0 0.0
    %4667 = vmatprep.subr.mxu0 0.0
    %4668 = vmatpush1.msra.mxu0 0.0
    %4669 = vmatprep.subr.mxu0 0.0
    %4670 = vmatpush1.msra.mxu0 0.0
    %4671 = vmatprep.subr.mxu0 0.0
    %4672 = vmatpush1.msra.mxu0 0.0
    %4673 = vmatprep.subr.mxu0 0.0
    %4674 = vmatpush1.msra.mxu0 0.0
    %4675 = vmatprep.subr.mxu0 0.0
    %4676 = vmatpush1.msra.mxu0 0.0
    %4677 = vmatprep.mubr.f32.mxu0 0.0
    %v4678 = vand.u32 %v4401, 4294901760
    %v4679 = vsub.f32 %v4401, %v4678
    %4680 = vmatmul.mubr.f32.gmra.mrb[0].mxu0 %v4679
    %v4681 = vpop.f32.mrb[0].mxu0
    %v4682 = vadd.f32 %v4594, %v4681
    %v4683 = vpop.f32.mrb[0].mxu0
    %4684 = vdwg.mxu0
    %4685 = vmatprep.subr.mxu0 0.0
    %v4686 = vand.u32 %v106, 4294901760
    %4687 = vmatpush1.msra.mxu0 %v4686
    %4688 = vmatprep.subr.mxu0 0.0
    %v4689 = vand.u32 %v107, 4294901760
    %4690 = vmatpush1.msra.mxu0 %v4689
    %4691 = vmatprep.subr.mxu0 0.0
    %v4692 = vand.u32 %v108, 4294901760
    %4693 = vmatpush1.msra.mxu0 %v4692
    %4694 = vmatprep.subr.mxu0 0.0
    %v4695 = vand.u32 %v109, 4294901760
    %4696 = vmatpush1.msra.mxu0 %v4695
    %4697 = vmatprep.subr.mxu0 0.0
    %v4698 = vand.u32 %v110, 4294901760
    %4699 = vmatpush1.msra.mxu0 %v4698
    %4700 = vmatprep.subr.mxu0 0.0
    %v4701 = vand.u32 %v111, 4294901760
    %4702 = vmatpush1.msra.mxu0 %v4701
    %4703 = vmatprep.subr.mxu0 0.0
    %v4704 = vand.u32 %v112, 4294901760
    %4705 = vmatpush1.msra.mxu0 %v4704
    %4706 = vmatprep.subr.mxu0 0.0
    %v4707 = vand.u32 %v113, 4294901760
    %4708 = vmatpush1.msra.mxu0 %v4707
    %4709 = vmatprep.subr.mxu0 0.0
    %4710 = vmatpush1.msra.mxu0 0.0
    %4711 = vmatprep.subr.mxu0 0.0
    %4712 = vmatpush1.msra.mxu0 0.0
    %4713 = vmatprep.subr.mxu0 0.0
    %4714 = vmatpush1.msra.mxu0 0.0
    %4715 = vmatprep.subr.mxu0 0.0
    %4716 = vmatpush1.msra.mxu0 0.0
    %4717 = vmatprep.subr.mxu0 0.0
    %4718 = vmatpush1.msra.mxu0 0.0
    %4719 = vmatprep.subr.mxu0 0.0
    %4720 = vmatpush1.msra.mxu0 0.0
    %4721 = vmatprep.subr.mxu0 0.0
    %4722 = vmatpush1.msra.mxu0 0.0
    %4723 = vmatprep.subr.mxu0 0.0
    %4724 = vmatpush1.msra.mxu0 0.0
    %4725 = vmatprep.subr.mxu0 0.0
    %4726 = vmatpush1.msra.mxu0 0.0
    %4727 = vmatprep.subr.mxu0 0.0
    %4728 = vmatpush1.msra.mxu0 0.0
    %4729 = vmatprep.subr.mxu0 0.0
    %4730 = vmatpush1.msra.mxu0 0.0
    %4731 = vmatprep.subr.mxu0 0.0
    %4732 = vmatpush1.msra.mxu0 0.0
    %4733 = vmatprep.subr.mxu0 0.0
    %4734 = vmatpush1.msra.mxu0 0.0
    %4735 = vmatprep.subr.mxu0 0.0
    %4736 = vmatpush1.msra.mxu0 0.0
    %4737 = vmatprep.subr.mxu0 0.0
    %4738 = vmatpush1.msra.mxu0 0.0
    %4739 = vmatprep.subr.mxu0 0.0
    %4740 = vmatpush1.msra.mxu0 0.0
    %4741 = vmatprep.subr.mxu0 0.0
    %4742 = vmatpush1.msra.mxu0 0.0
    %4743 = vmatprep.subr.mxu0 0.0
    %4744 = vmatpush1.msra.mxu0 0.0
    %4745 = vmatprep.subr.mxu0 0.0
    %4746 = vmatpush1.msra.mxu0 0.0
    %4747 = vmatprep.subr.mxu0 0.0
    %4748 = vmatpush1.msra.mxu0 0.0
    %4749 = vmatprep.subr.mxu0 0.0
    %4750 = vmatpush1.msra.mxu0 0.0
    %4751 = vmatprep.subr.mxu0 0.0
    %4752 = vmatpush1.msra.mxu0 0.0
    %4753 = vmatprep.subr.mxu0 0.0
    %4754 = vmatpush1.msra.mxu0 0.0
    %4755 = vmatprep.subr.mxu0 0.0
    %4756 = vmatpush1.msra.mxu0 0.0
    %4757 = vmatprep.mubr.f32.mxu0 0.0
    %v4758 = vand.u32 %v4401, 4294901760
    %v4759 = vsub.f32 %v4401, %v4758
    %v4760 = vand.u32 %v4759, 4294901760
    %4761 = vmatmul.mubr.f32.gmra.mrb[0].mxu0 %v4760
    %v4762 = vpop.f32.mrb[0].mxu0
    %v4763 = vadd.f32 %v4682, %v4762
    %v4764 = vpop.f32.mrb[0].mxu0
    %4765 = vdwg.mxu0
    %4766 = vmatprep.subr.mxu0 0.0
    %v4767 = vand.u32 %v106, 4294901760
    %v4768 = vsub.f32 %v106, %v4767
    %v4769 = vand.u32 %v4768, 4294901760
    %4770 = vmatpush1.msra.mxu0 %v4769
    %4771 = vmatprep.subr.mxu0 0.0
    %v4772 = vand.u32 %v107, 4294901760
    %v4773 = vsub.f32 %v107, %v4772
    %v4774 = vand.u32 %v4773, 4294901760
    %4775 = vmatpush1.msra.mxu0 %v4774
    %4776 = vmatprep.subr.mxu0 0.0
    %v4777 = vand.u32 %v108, 4294901760
    %v4778 = vsub.f32 %v108, %v4777
    %v4779 = vand.u32 %v4778, 4294901760
    %4780 = vmatpush1.msra.mxu0 %v4779
    %4781 = vmatprep.subr.mxu0 0.0
    %v4782 = vand.u32 %v109, 4294901760
    %v4783 = vsub.f32 %v109, %v4782
    %v4784 = vand.u32 %v4783, 4294901760
    %4785 = vmatpush1.msra.mxu0 %v4784
    %4786 = vmatprep.subr.mxu0 0.0
    %v4787 = vand.u32 %v110, 4294901760
    %v4788 = vsub.f32 %v110, %v4787
    %v4789 = vand.u32 %v4788, 4294901760
    %4790 = vmatpush1.msra.mxu0 %v4789
    %4791 = vmatprep.subr.mxu0 0.0
    %v4792 = vand.u32 %v111, 4294901760
    %v4793 = vsub.f32 %v111, %v4792
    %v4794 = vand.u32 %v4793, 4294901760
    %4795 = vmatpush1.msra.mxu0 %v4794
    %4796 = vmatprep.subr.mxu0 0.0
    %v4797 = vand.u32 %v112, 4294901760
    %v4798 = vsub.f32 %v112, %v4797
    %v4799 = vand.u32 %v4798, 4294901760
    %4800 = vmatpush1.msra.mxu0 %v4799
    %4801 = vmatprep.subr.mxu0 0.0
    %v4802 = vand.u32 %v113, 4294901760
    %v4803 = vsub.f32 %v113, %v4802
    %v4804 = vand.u32 %v4803, 4294901760
    %4805 = vmatpush1.msra.mxu0 %v4804
    %4806 = vmatprep.subr.mxu0 0.0
    %4807 = vmatpush1.msra.mxu0 0.0
    %4808 = vmatprep.subr.mxu0 0.0
    %4809 = vmatpush1.msra.mxu0 0.0
    %4810 = vmatprep.subr.mxu0 0.0
    %4811 = vmatpush1.msra.mxu0 0.0
    %4812 = vmatprep.subr.mxu0 0.0
    %4813 = vmatpush1.msra.mxu0 0.0
    %4814 = vmatprep.subr.mxu0 0.0
    %4815 = vmatpush1.msra.mxu0 0.0
    %4816 = vmatprep.subr.mxu0 0.0
    %4817 = vmatpush1.msra.mxu0 0.0
    %4818 = vmatprep.subr.mxu0 0.0
    %4819 = vmatpush1.msra.mxu0 0.0
    %4820 = vmatprep.subr.mxu0 0.0
    %4821 = vmatpush1.msra.mxu0 0.0
    %4822 = vmatprep.subr.mxu0 0.0
    %4823 = vmatpush1.msra.mxu0 0.0
    %4824 = vmatprep.subr.mxu0 0.0
    %4825 = vmatpush1.msra.mxu0 0.0
    %4826 = vmatprep.subr.mxu0 0.0
    %4827 = vmatpush1.msra.mxu0 0.0
    %4828 = vmatprep.subr.mxu0 0.0
    %4829 = vmatpush1.msra.mxu0 0.0
    %4830 = vmatprep.subr.mxu0 0.0
    %4831 = vmatpush1.msra.mxu0 0.0
    %4832 = vmatprep.subr.mxu0 0.0
    %4833 = vmatpush1.msra.mxu0 0.0
    %4834 = vmatprep.subr.mxu0 0.0
    %4835 = vmatpush1.msra.mxu0 0.0
    %4836 = vmatprep.subr.mxu0 0.0
    %4837 = vmatpush1.msra.mxu0 0.0
    %4838 = vmatprep.subr.mxu0 0.0
    %4839 = vmatpush1.msra.mxu0 0.0
    %4840 = vmatprep.subr.mxu0 0.0
    %4841 = vmatpush1.msra.mxu0 0.0
    %4842 = vmatprep.subr.mxu0 0.0
    %4843 = vmatpush1.msra.mxu0 0.0
    %4844 = vmatprep.subr.mxu0 0.0
    %4845 = vmatpush1.msra.mxu0 0.0
    %4846 = vmatprep.subr.mxu0 0.0
    %4847 = vmatpush1.msra.mxu0 0.0
    %4848 = vmatprep.subr.mxu0 0.0
    %4849 = vmatpush1.msra.mxu0 0.0
    %4850 = vmatprep.subr.mxu0 0.0
    %4851 = vmatpush1.msra.mxu0 0.0
    %4852 = vmatprep.subr.mxu0 0.0
    %4853 = vmatpush1.msra.mxu0 0.0
    %4854 = vmatprep.mubr.f32.mxu0 0.0
    %v4855 = vand.u32 %v4401, 4294901760
    %4856 = vmatmul.mubr.f32.gmra.mrb[0].mxu0 %v4855
    %v4857 = vpop.f32.mrb[0].mxu0
    %v4858 = vadd.f32 %v4763, %v4857
    %v4859 = vpop.f32.mrb[0].mxu0
    %4860 = vdwg.mxu0
    %4861 = vmatprep.subr.mxu0 0.0
    %v4862 = vand.u32 %v106, 4294901760
    %4863 = vmatpush1.msra.mxu0 %v4862
    %4864 = vmatprep.subr.mxu0 0.0
    %v4865 = vand.u32 %v107, 4294901760
    %4866 = vmatpush1.msra.mxu0 %v4865
    %4867 = vmatprep.subr.mxu0 0.0
    %v4868 = vand.u32 %v108, 4294901760
    %4869 = vmatpush1.msra.mxu0 %v4868
    %4870 = vmatprep.subr.mxu0 0.0
    %v4871 = vand.u32 %v109, 4294901760
    %4872 = vmatpush1.msra.mxu0 %v4871
    %4873 = vmatprep.subr.mxu0 0.0
    %v4874 = vand.u32 %v110, 4294901760
    %4875 = vmatpush1.msra.mxu0 %v4874
    %4876 = vmatprep.subr.mxu0 0.0
    %v4877 = vand.u32 %v111, 4294901760
    %4878 = vmatpush1.msra.mxu0 %v4877
    %4879 = vmatprep.subr.mxu0 0.0
    %v4880 = vand.u32 %v112, 4294901760
    %4881 = vmatpush1.msra.mxu0 %v4880
    %4882 = vmatprep.subr.mxu0 0.0
    %v4883 = vand.u32 %v113, 4294901760
    %4884 = vmatpush1.msra.mxu0 %v4883
    %4885 = vmatprep.subr.mxu0 0.0
    %4886 = vmatpush1.msra.mxu0 0.0
    %4887 = vmatprep.subr.mxu0 0.0
    %4888 = vmatpush1.msra.mxu0 0.0
    %4889 = vmatprep.subr.mxu0 0.0
    %4890 = vmatpush1.msra.mxu0 0.0
    %4891 = vmatprep.subr.mxu0 0.0
    %4892 = vmatpush1.msra.mxu0 0.0
    %4893 = vmatprep.subr.mxu0 0.0
    %4894 = vmatpush1.msra.mxu0 0.0
    %4895 = vmatprep.subr.mxu0 0.0
    %4896 = vmatpush1.msra.mxu0 0.0
    %4897 = vmatprep.subr.mxu0 0.0
    %4898 = vmatpush1.msra.mxu0 0.0
    %4899 = vmatprep.subr.mxu0 0.0
    %4900 = vmatpush1.msra.mxu0 0.0
    %4901 = vmatprep.subr.mxu0 0.0
    %4902 = vmatpush1.msra.mxu0 0.0
    %4903 = vmatprep.subr.mxu0 0.0
    %4904 = vmatpush1.msra.mxu0 0.0
    %4905 = vmatprep.subr.mxu0 0.0
    %4906 = vmatpush1.msra.mxu0 0.0
    %4907 = vmatprep.subr.mxu0 0.0
    %4908 = vmatpush1.msra.mxu0 0.0
    %4909 = vmatprep.subr.mxu0 0.0
    %4910 = vmatpush1.msra.mxu0 0.0
    %4911 = vmatprep.subr.mxu0 0.0
    %4912 = vmatpush1.msra.mxu0 0.0
    %4913 = vmatprep.subr.mxu0 0.0
    %4914 = vmatpush1.msra.mxu0 0.0
    %4915 = vmatprep.subr.mxu0 0.0
    %4916 = vmatpush1.msra.mxu0 0.0
    %4917 = vmatprep.subr.mxu0 0.0
    %4918 = vmatpush1.msra.mxu0 0.0
    %4919 = vmatprep.subr.mxu0 0.0
    %4920 = vmatpush1.msra.mxu0 0.0
    %4921 = vmatprep.subr.mxu0 0.0
    %4922 = vmatpush1.msra.mxu0 0.0
    %4923 = vmatprep.subr.mxu0 0.0
    %4924 = vmatpush1.msra.mxu0 0.0
    %4925 = vmatprep.subr.mxu0 0.0
    %4926 = vmatpush1.msra.mxu0 0.0
    %4927 = vmatprep.subr.mxu0 0.0
    %4928 = vmatpush1.msra.mxu0 0.0
    %4929 = vmatprep.subr.mxu0 0.0
    %4930 = vmatpush1.msra.mxu0 0.0
    %4931 = vmatprep.subr.mxu0 0.0
    %4932 = vmatpush1.msra.mxu0 0.0
    %4933 = vmatprep.mubr.f32.mxu0 0.0
    %v4934 = vand.u32 %v4401, 4294901760
    %4935 = vmatmul.mubr.f32.gmra.mrb[0].mxu0 %v4934
    %v4936 = vpop.f32.mrb[0].mxu0
    %v4937 = vadd.f32 %v4858, %v4936
    %v4938 = vpop.f32.mrb[0].mxu0
    %4939 = vdwg.mxu0
    %v4940 = vrsqrt.pop %v4937
    %v4942 = vsel %vm678, %v4940, 0
    %4944 = vmatprep.subr.mxu0 0.0
    %v4945 = vand.u32 %v684, 4294901760
    %4946 = vmatpush1.msra.mxu0 %v4945
    %4947 = vmatprep.subr.mxu0 0.0
    %4948 = vmatpush1.msra.mxu0 0.0
    %4949 = vmatprep.subr.mxu0 0.0
    %4950 = vmatpush1.msra.mxu0 0.0
    %4951 = vmatprep.subr.mxu0 0.0
    %4952 = vmatpush1.msra.mxu0 0.0
    %4953 = vmatprep.subr.mxu0 0.0
    %4954 = vmatpush1.msra.mxu0 0.0
    %4955 = vmatprep.subr.mxu0 0.0
    %4956 = vmatpush1.msra.mxu0 0.0
    %4957 = vmatprep.subr.mxu0 0.0
    %4958 = vmatpush1.msra.mxu0 0.0
    %4959 = vmatprep.subr.mxu0 0.0
    %4960 = vmatpush1.msra.mxu0 0.0
    %4961 = vmatprep.subr.mxu0 0.0
    %4962 = vmatpush1.msra.mxu0 0.0
    %4963 = vmatprep.subr.mxu0 0.0
    %4964 = vmatpush1.msra.mxu0 0.0
    %4965 = vmatprep.subr.mxu0 0.0
    %4966 = vmatpush1.msra.mxu0 0.0
    %4967 = vmatprep.subr.mxu0 0.0
    %4968 = vmatpush1.msra.mxu0 0.0
    %4969 = vmatprep.subr.mxu0 0.0
    %4970 = vmatpush1.msra.mxu0 0.0
    %4971 = vmatprep.subr.mxu0 0.0
    %4972 = vmatpush1.msra.mxu0 0.0
    %4973 = vmatprep.subr.mxu0 0.0
    %4974 = vmatpush1.msra.mxu0 0.0
    %4975 = vmatprep.subr.mxu0 0.0
    %4976 = vmatpush1.msra.mxu0 0.0
    %4977 = vmatprep.subr.mxu0 0.0
    %4978 = vmatpush1.msra.mxu0 0.0
    %4979 = vmatprep.subr.mxu0 0.0
    %4980 = vmatpush1.msra.mxu0 0.0
    %4981 = vmatprep.subr.mxu0 0.0
    %4982 = vmatpush1.msra.mxu0 0.0
    %4983 = vmatprep.subr.mxu0 0.0
    %4984 = vmatpush1.msra.mxu0 0.0
    %4985 = vmatprep.subr.mxu0 0.0
    %4986 = vmatpush1.msra.mxu0 0.0
    %4987 = vmatprep.subr.mxu0 0.0
    %4988 = vmatpush1.msra.mxu0 0.0
    %4989 = vmatprep.subr.mxu0 0.0
    %4990 = vmatpush1.msra.mxu0 0.0
    %4991 = vmatprep.subr.mxu0 0.0
    %4992 = vmatpush1.msra.mxu0 0.0
    %4993 = vmatprep.subr.mxu0 0.0
    %4994 = vmatpush1.msra.mxu0 0.0
    %4995 = vmatprep.subr.mxu0 0.0
    %4996 = vmatpush1.msra.mxu0 0.0
    %4997 = vmatprep.subr.mxu0 0.0
    %4998 = vmatpush1.msra.mxu0 0.0
    %4999 = vmatprep.subr.mxu0 0.0
    %5000 = vmatpush1.msra.mxu0 0.0
    %5001 = vmatprep.subr.mxu0 0.0
    %5002 = vmatpush1.msra.mxu0 0.0
    %5003 = vmatprep.subr.mxu0 0.0
    %5004 = vmatpush1.msra.mxu0 0.0
    %5005 = vmatprep.subr.mxu0 0.0
    %5006 = vmatpush1.msra.mxu0 0.0
    %5007 = vmatprep.subr.mxu0 0.0
    %5008 = vmatpush1.msra.mxu0 0.0
    %5009 = vmatprep.mubr.f32.mxu0 0.0
    %v5010 = vand.u32 %v4942, 4294901760
    %v5011 = vsub.f32 %v4942, %v5010
    %v5012 = vand.u32 %v5011, 4294901760
    %v5013 = vsub.f32 %v5011, %v5012
    %v5014 = vand.u32 %v5013, 4294901760
    %5015 = vmatmul.mubr.f32.gmra.mrb[0].mxu0 %v5014
    %v5016 = vpop.f32.mrb[0].mxu0
    %v5017 = vadd.f32 0.0, %v5016
    %v5018 = vpop.f32.mrb[0].mxu0
    %5019 = vdwg.mxu0
    %5020 = vmatprep.subr.mxu0 0.0
    %v5021 = vand.u32 %v684, 4294901760
    %v5022 = vsub.f32 %v684, %v5021
    %v5023 = vand.u32 %v5022, 4294901760
    %v5024 = vsub.f32 %v5022, %v5023
    %v5025 = vand.u32 %v5024, 4294901760
    %5026 = vmatpush1.msra.mxu0 %v5025
    %5027 = vmatprep.subr.mxu0 0.0
    %5028 = vmatpush1.msra.mxu0 0.0
    %5029 = vmatprep.subr.mxu0 0.0
    %5030 = vmatpush1.msra.mxu0 0.0
    %5031 = vmatprep.subr.mxu0 0.0
    %5032 = vmatpush1.msra.mxu0 0.0
    %5033 = vmatprep.subr.mxu0 0.0
    %5034 = vmatpush1.msra.mxu0 0.0
    %5035 = vmatprep.subr.mxu0 0.0
    %5036 = vmatpush1.msra.mxu0 0.0
    %5037 = vmatprep.subr.mxu0 0.0
    %5038 = vmatpush1.msra.mxu0 0.0
    %5039 = vmatprep.subr.mxu0 0.0
    %5040 = vmatpush1.msra.mxu0 0.0
    %5041 = vmatprep.subr.mxu0 0.0
    %5042 = vmatpush1.msra.mxu0 0.0
    %5043 = vmatprep.subr.mxu0 0.0
    %5044 = vmatpush1.msra.mxu0 0.0
    %5045 = vmatprep.subr.mxu0 0.0
    %5046 = vmatpush1.msra.mxu0 0.0
    %5047 = vmatprep.subr.mxu0 0.0
    %5048 = vmatpush1.msra.mxu0 0.0
    %5049 = vmatprep.subr.mxu0 0.0
    %5050 = vmatpush1.msra.mxu0 0.0
    %5051 = vmatprep.subr.mxu0 0.0
    %5052 = vmatpush1.msra.mxu0 0.0
    %5053 = vmatprep.subr.mxu0 0.0
    %5054 = vmatpush1.msra.mxu0 0.0
    %5055 = vmatprep.subr.mxu0 0.0
    %5056 = vmatpush1.msra.mxu0 0.0
    %5057 = vmatprep.subr.mxu0 0.0
    %5058 = vmatpush1.msra.mxu0 0.0
    %5059 = vmatprep.subr.mxu0 0.0
    %5060 = vmatpush1.msra.mxu0 0.0
    %5061 = vmatprep.subr.mxu0 0.0
    %5062 = vmatpush1.msra.mxu0 0.0
    %5063 = vmatprep.subr.mxu0 0.0
    %5064 = vmatpush1.msra.mxu0 0.0
    %5065 = vmatprep.subr.mxu0 0.0
    %5066 = vmatpush1.msra.mxu0 0.0
    %5067 = vmatprep.subr.mxu0 0.0
    %5068 = vmatpush1.msra.mxu0 0.0
    %5069 = vmatprep.subr.mxu0 0.0
    %5070 = vmatpush1.msra.mxu0 0.0
    %5071 = vmatprep.subr.mxu0 0.0
    %5072 = vmatpush1.msra.mxu0 0.0
    %5073 = vmatprep.subr.mxu0 0.0
    %5074 = vmatpush1.msra.mxu0 0.0
    %5075 = vmatprep.subr.mxu0 0.0
    %5076 = vmatpush1.msra.mxu0 0.0
    %5077 = vmatprep.subr.mxu0 0.0
    %5078 = vmatpush1.msra.mxu0 0.0
    %5079 = vmatprep.subr.mxu0 0.0
    %5080 = vmatpush1.msra.mxu0 0.0
    %5081 = vmatprep.subr.mxu0 0.0
    %5082 = vmatpush1.msra.mxu0 0.0
    %5083 = vmatprep.subr.mxu0 0.0
    %5084 = vmatpush1.msra.mxu0 0.0
    %5085 = vmatprep.subr.mxu0 0.0
    %5086 = vmatpush1.msra.mxu0 0.0
    %5087 = vmatprep.subr.mxu0 0.0
    %5088 = vmatpush1.msra.mxu0 0.0
    %5089 = vmatprep.mubr.f32.mxu0 0.0
    %v5090 = vand.u32 %v4942, 4294901760
    %5091 = vmatmul.mubr.f32.gmra.mrb[0].mxu0 %v5090
    %v5092 = vpop.f32.mrb[0].mxu0
    %v5093 = vadd.f32 %v5017, %v5092
    %v5094 = vpop.f32.mrb[0].mxu0
    %5095 = vdwg.mxu0
    %5096 = vmatprep.subr.mxu0 0.0
    %v5097 = vand.u32 %v684, 4294901760
    %v5098 = vsub.f32 %v684, %v5097
    %5099 = vmatpush1.msra.mxu0 %v5098
    %5100 = vmatprep.subr.mxu0 0.0
    %5101 = vmatpush1.msra.mxu0 0.0
    %5102 = vmatprep.subr.mxu0 0.0
    %5103 = vmatpush1.msra.mxu0 0.0
    %5104 = vmatprep.subr.mxu0 0.0
    %5105 = vmatpush1.msra.mxu0 0.0
    %5106 = vmatprep.subr.mxu0 0.0
    %5107 = vmatpush1.msra.mxu0 0.0
    %5108 = vmatprep.subr.mxu0 0.0
    %5109 = vmatpush1.msra.mxu0 0.0
    %5110 = vmatprep.subr.mxu0 0.0
    %5111 = vmatpush1.msra.mxu0 0.0
    %5112 = vmatprep.subr.mxu0 0.0
    %5113 = vmatpush1.msra.mxu0 0.0
    %5114 = vmatprep.subr.mxu0 0.0
    %5115 = vmatpush1.msra.mxu0 0.0
    %5116 = vmatprep.subr.mxu0 0.0
    %5117 = vmatpush1.msra.mxu0 0.0
    %5118 = vmatprep.subr.mxu0 0.0
    %5119 = vmatpush1.msra.mxu0 0.0
    %5120 = vmatprep.subr.mxu0 0.0
    %5121 = vmatpush1.msra.mxu0 0.0
    %5122 = vmatprep.subr.mxu0 0.0
    %5123 = vmatpush1.msra.mxu0 0.0
    %5124 = vmatprep.subr.mxu0 0.0
    %5125 = vmatpush1.msra.mxu0 0.0
    %5126 = vmatprep.subr.mxu0 0.0
    %5127 = vmatpush1.msra.mxu0 0.0
    %5128 = vmatprep.subr.mxu0 0.0
    %5129 = vmatpush1.msra.mxu0 0.0
    %5130 = vmatprep.subr.mxu0 0.0
    %5131 = vmatpush1.msra.mxu0 0.0
    %5132 = vmatprep.subr.mxu0 0.0
    %5133 = vmatpush1.msra.mxu0 0.0
    %5134 = vmatprep.subr.mxu0 0.0
    %5135 = vmatpush1.msra.mxu0 0.0
    %5136 = vmatprep.subr.mxu0 0.0
    %5137 = vmatpush1.msra.mxu0 0.0
    %5138 = vmatprep.subr.mxu0 0.0
    %5139 = vmatpush1.msra.mxu0 0.0
    %5140 = vmatprep.subr.mxu0 0.0
    %5141 = vmatpush1.msra.mxu0 0.0
    %5142 = vmatprep.subr.mxu0 0.0
    %5143 = vmatpush1.msra.mxu0 0.0
    %5144 = vmatprep.subr.mxu0 0.0
    %5145 = vmatpush1.msra.mxu0 0.0
    %5146 = vmatprep.subr.mxu0 0.0
    %5147 = vmatpush1.msra.mxu0 0.0
    %5148 = vmatprep.subr.mxu0 0.0
    %5149 = vmatpush1.msra.mxu0 0.0
    %5150 = vmatprep.subr.mxu0 0.0
    %5151 = vmatpush1.msra.mxu0 0.0
    %5152 = vmatprep.subr.mxu0 0.0
    %5153 = vmatpush1.msra.mxu0 0.0
    %5154 = vmatprep.subr.mxu0 0.0
    %5155 = vmatpush1.msra.mxu0 0.0
    %5156 = vmatprep.subr.mxu0 0.0
    %5157 = vmatpush1.msra.mxu0 0.0
    %5158 = vmatprep.subr.mxu0 0.0
    %5159 = vmatpush1.msra.mxu0 0.0
    %5160 = vmatprep.subr.mxu0 0.0
    %5161 = vmatpush1.msra.mxu0 0.0
    %5162 = vmatprep.mubr.f32.mxu0 0.0
    %v5163 = vand.u32 %v4942, 4294901760
    %v5164 = vsub.f32 %v4942, %v5163
    %5165 = vmatmul.mubr.f32.gmra.mrb[0].mxu0 %v5164
    %v5166 = vpop.f32.mrb[0].mxu0
    %v5167 = vadd.f32 %v5093, %v5166
    %v5168 = vpop.f32.mrb[0].mxu0
    %5169 = vdwg.mxu0
    %5170 = vmatprep.subr.mxu0 0.0
    %v5171 = vand.u32 %v684, 4294901760
    %5172 = vmatpush1.msra.mxu0 %v5171
    %5173 = vmatprep.subr.mxu0 0.0
    %5174 = vmatpush1.msra.mxu0 0.0
    %5175 = vmatprep.subr.mxu0 0.0
    %5176 = vmatpush1.msra.mxu0 0.0
    %5177 = vmatprep.subr.mxu0 0.0
    %5178 = vmatpush1.msra.mxu0 0.0
    %5179 = vmatprep.subr.mxu0 0.0
    %5180 = vmatpush1.msra.mxu0 0.0
    %5181 = vmatprep.subr.mxu0 0.0
    %5182 = vmatpush1.msra.mxu0 0.0
    %5183 = vmatprep.subr.mxu0 0.0
    %5184 = vmatpush1.msra.mxu0 0.0
    %5185 = vmatprep.subr.mxu0 0.0
    %5186 = vmatpush1.msra.mxu0 0.0
    %5187 = vmatprep.subr.mxu0 0.0
    %5188 = vmatpush1.msra.mxu0 0.0
    %5189 = vmatprep.subr.mxu0 0.0
    %5190 = vmatpush1.msra.mxu0 0.0
    %5191 = vmatprep.subr.mxu0 0.0
    %5192 = vmatpush1.msra.mxu0 0.0
    %5193 = vmatprep.subr.mxu0 0.0
    %5194 = vmatpush1.msra.mxu0 0.0
    %5195 = vmatprep.subr.mxu0 0.0
    %5196 = vmatpush1.msra.mxu0 0.0
    %5197 = vmatprep.subr.mxu0 0.0
    %5198 = vmatpush1.msra.mxu0 0.0
    %5199 = vmatprep.subr.mxu0 0.0
    %5200 = vmatpush1.msra.mxu0 0.0
    %5201 = vmatprep.subr.mxu0 0.0
    %5202 = vmatpush1.msra.mxu0 0.0
    %5203 = vmatprep.subr.mxu0 0.0
    %5204 = vmatpush1.msra.mxu0 0.0
    %5205 = vmatprep.subr.mxu0 0.0
    %5206 = vmatpush1.msra.mxu0 0.0
    %5207 = vmatprep.subr.mxu0 0.0
    %5208 = vmatpush1.msra.mxu0 0.0
    %5209 = vmatprep.subr.mxu0 0.0
    %5210 = vmatpush1.msra.mxu0 0.0
    %5211 = vmatprep.subr.mxu0 0.0
    %5212 = vmatpush1.msra.mxu0 0.0
    %5213 = vmatprep.subr.mxu0 0.0
    %5214 = vmatpush1.msra.mxu0 0.0
    %5215 = vmatprep.subr.mxu0 0.0
    %5216 = vmatpush1.msra.mxu0 0.0
    %5217 = vmatprep.subr.mxu0 0.0
    %5218 = vmatpush1.msra.mxu0 0.0
    %5219 = vmatprep.subr.mxu0 0.0
    %5220 = vmatpush1.msra.mxu0 0.0
    %5221 = vmatprep.subr.mxu0 0.0
    %5222 = vmatpush1.msra.mxu0 0.0
    %5223 = vmatprep.subr.mxu0 0.0
    %5224 = vmatpush1.msra.mxu0 0.0
    %5225 = vmatprep.subr.mxu0 0.0
    %5226 = vmatpush1.msra.mxu0 0.0
    %5227 = vmatprep.subr.mxu0 0.0
    %5228 = vmatpush1.msra.mxu0 0.0
    %5229 = vmatprep.subr.mxu0 0.0
    %5230 = vmatpush1.msra.mxu0 0.0
    %5231 = vmatprep.subr.mxu0 0.0
    %5232 = vmatpush1.msra.mxu0 0.0
    %5233 = vmatprep.subr.mxu0 0.0
    %5234 = vmatpush1.msra.mxu0 0.0
    %5235 = vmatprep.mubr.f32.mxu0 0.0
    %v5236 = vand.u32 %v4942, 4294901760
    %v5237 = vsub.f32 %v4942, %v5236
    %v5238 = vand.u32 %v5237, 4294901760
    %5239 = vmatmul.mubr.f32.gmra.mrb[0].mxu0 %v5238
    %v5240 = vpop.f32.mrb[0].mxu0
    %v5241 = vadd.f32 %v5167, %v5240
    %v5242 = vpop.f32.mrb[0].mxu0
    %5243 = vdwg.mxu0
    %5244 = vmatprep.subr.mxu0 0.0
    %v5245 = vand.u32 %v684, 4294901760
    %v5246 = vsub.f32 %v684, %v5245
    %v5247 = vand.u32 %v5246, 4294901760
    %5248 = vmatpush1.msra.mxu0 %v5247
    %5249 = vmatprep.subr.mxu0 0.0
    %5250 = vmatpush1.msra.mxu0 0.0
    %5251 = vmatprep.subr.mxu0 0.0
    %5252 = vmatpush1.msra.mxu0 0.0
    %5253 = vmatprep.subr.mxu0 0.0
    %5254 = vmatpush1.msra.mxu0 0.0
    %5255 = vmatprep.subr.mxu0 0.0
    %5256 = vmatpush1.msra.mxu0 0.0
    %5257 = vmatprep.subr.mxu0 0.0
    %5258 = vmatpush1.msra.mxu0 0.0
    %5259 = vmatprep.subr.mxu0 0.0
    %5260 = vmatpush1.msra.mxu0 0.0
    %5261 = vmatprep.subr.mxu0 0.0
    %5262 = vmatpush1.msra.mxu0 0.0
    %5263 = vmatprep.subr.mxu0 0.0
    %5264 = vmatpush1.msra.mxu0 0.0
    %5265 = vmatprep.subr.mxu0 0.0
    %5266 = vmatpush1.msra.mxu0 0.0
    %5267 = vmatprep.subr.mxu0 0.0
    %5268 = vmatpush1.msra.mxu0 0.0
    %5269 = vmatprep.subr.mxu0 0.0
    %5270 = vmatpush1.msra.mxu0 0.0
    %5271 = vmatprep.subr.mxu0 0.0
    %5272 = vmatpush1.msra.mxu0 0.0
    %5273 = vmatprep.subr.mxu0 0.0
    %5274 = vmatpush1.msra.mxu0 0.0
    %5275 = vmatprep.subr.mxu0 0.0
    %5276 = vmatpush1.msra.mxu0 0.0
    %5277 = vmatprep.subr.mxu0 0.0
    %5278 = vmatpush1.msra.mxu0 0.0
    %5279 = vmatprep.subr.mxu0 0.0
    %5280 = vmatpush1.msra.mxu0 0.0
    %5281 = vmatprep.subr.mxu0 0.0
    %5282 = vmatpush1.msra.mxu0 0.0
    %5283 = vmatprep.subr.mxu0 0.0
    %5284 = vmatpush1.msra.mxu0 0.0
    %5285 = vmatprep.subr.mxu0 0.0
    %5286 = vmatpush1.msra.mxu0 0.0
    %5287 = vmatprep.subr.mxu0 0.0
    %5288 = vmatpush1.msra.mxu0 0.0
    %5289 = vmatprep.subr.mxu0 0.0
    %5290 = vmatpush1.msra.mxu0 0.0
    %5291 = vmatprep.subr.mxu0 0.0
    %5292 = vmatpush1.msra.mxu0 0.0
    %5293 = vmatprep.subr.mxu0 0.0
    %5294 = vmatpush1.msra.mxu0 0.0
    %5295 = vmatprep.subr.mxu0 0.0
    %5296 = vmatpush1.msra.mxu0 0.0
    %5297 = vmatprep.subr.mxu0 0.0
    %5298 = vmatpush1.msra.mxu0 0.0
    %5299 = vmatprep.subr.mxu0 0.0
    %5300 = vmatpush1.msra.mxu0 0.0
    %5301 = vmatprep.subr.mxu0 0.0
    %5302 = vmatpush1.msra.mxu0 0.0
    %5303 = vmatprep.subr.mxu0 0.0
    %5304 = vmatpush1.msra.mxu0 0.0
    %5305 = vmatprep.subr.mxu0 0.0
    %5306 = vmatpush1.msra.mxu0 0.0
    %5307 = vmatprep.subr.mxu0 0.0
    %5308 = vmatpush1.msra.mxu0 0.0
    %5309 = vmatprep.subr.mxu0 0.0
    %5310 = vmatpush1.msra.mxu0 0.0
    %5311 = vmatprep.mubr.f32.mxu0 0.0
    %v5312 = vand.u32 %v4942, 4294901760
    %5313 = vmatmul.mubr.f32.gmra.mrb[0].mxu0 %v5312
    %v5314 = vpop.f32.mrb[0].mxu0
    %v5315 = vadd.f32 %v5241, %v5314
    %v5316 = vpop.f32.mrb[0].mxu0
    %5317 = vdwg.mxu0
    %5318 = vmatprep.subr.mxu0 0.0
    %v5319 = vand.u32 %v684, 4294901760
    %5320 = vmatpush1.msra.mxu0 %v5319
    %5321 = vmatprep.subr.mxu0 0.0
    %5322 = vmatpush1.msra.mxu0 0.0
    %5323 = vmatprep.subr.mxu0 0.0
    %5324 = vmatpush1.msra.mxu0 0.0
    %5325 = vmatprep.subr.mxu0 0.0
    %5326 = vmatpush1.msra.mxu0 0.0
    %5327 = vmatprep.subr.mxu0 0.0
    %5328 = vmatpush1.msra.mxu0 0.0
    %5329 = vmatprep.subr.mxu0 0.0
    %5330 = vmatpush1.msra.mxu0 0.0
    %5331 = vmatprep.subr.mxu0 0.0
    %5332 = vmatpush1.msra.mxu0 0.0
    %5333 = vmatprep.subr.mxu0 0.0
    %5334 = vmatpush1.msra.mxu0 0.0
    %5335 = vmatprep.subr.mxu0 0.0
    %5336 = vmatpush1.msra.mxu0 0.0
    %5337 = vmatprep.subr.mxu0 0.0
    %5338 = vmatpush1.msra.mxu0 0.0
    %5339 = vmatprep.subr.mxu0 0.0
    %5340 = vmatpush1.msra.mxu0 0.0
    %5341 = vmatprep.subr.mxu0 0.0
    %5342 = vmatpush1.msra.mxu0 0.0
    %5343 = vmatprep.subr.mxu0 0.0
    %5344 = vmatpush1.msra.mxu0 0.0
    %5345 = vmatprep.subr.mxu0 0.0
    %5346 = vmatpush1.msra.mxu0 0.0
    %5347 = vmatprep.subr.mxu0 0.0
    %5348 = vmatpush1.msra.mxu0 0.0
    %5349 = vmatprep.subr.mxu0 0.0
    %5350 = vmatpush1.msra.mxu0 0.0
    %5351 = vmatprep.subr.mxu0 0.0
    %5352 = vmatpush1.msra.mxu0 0.0
    %5353 = vmatprep.subr.mxu0 0.0
    %5354 = vmatpush1.msra.mxu0 0.0
    %5355 = vmatprep.subr.mxu0 0.0
    %5356 = vmatpush1.msra.mxu0 0.0
    %5357 = vmatprep.subr.mxu0 0.0
    %5358 = vmatpush1.msra.mxu0 0.0
    %5359 = vmatprep.subr.mxu0 0.0
    %5360 = vmatpush1.msra.mxu0 0.0
    %5361 = vmatprep.subr.mxu0 0.0
    %5362 = vmatpush1.msra.mxu0 0.0
    %5363 = vmatprep.subr.mxu0 0.0
    %5364 = vmatpush1.msra.mxu0 0.0
    %5365 = vmatprep.subr.mxu0 0.0
    %5366 = vmatpush1.msra.mxu0 0.0
    %5367 = vmatprep.subr.mxu0 0.0
    %5368 = vmatpush1.msra.mxu0 0.0
    %5369 = vmatprep.subr.mxu0 0.0
    %5370 = vmatpush1.msra.mxu0 0.0
    %5371 = vmatprep.subr.mxu0 0.0
    %5372 = vmatpush1.msra.mxu0 0.0
    %5373 = vmatprep.subr.mxu0 0.0
    %5374 = vmatpush1.msra.mxu0 0.0
    %5375 = vmatprep.subr.mxu0 0.0
    %5376 = vmatpush1.msra.mxu0 0.0
    %5377 = vmatprep.subr.mxu0 0.0
    %5378 = vmatpush1.msra.mxu0 0.0
    %5379 = vmatprep.subr.mxu0 0.0
    %5380 = vmatpush1.msra.mxu0 0.0
    %5381 = vmatprep.subr.mxu0 0.0
    %5382 = vmatpush1.msra.mxu0 0.0
    %5383 = vmatprep.mubr.f32.mxu0 0.0
    %v5384 = vand.u32 %v4942, 4294901760
    %5385 = vmatmul.mubr.f32.gmra.mrb[0].mxu0 %v5384
    %v5386 = vpop.f32.mrb[0].mxu0
    %v5387 = vadd.f32 %v5315, %v5386
    %v5388 = vpop.f32.mrb[0].mxu0
    %5389 = vdwg.mxu0
    %v5391 = vrot.slane %v5387, 1
    %v5394 = vmul.f32 %v4388, %v5387
    %v5395 = vmul.f32 %v4395, %v5391
    %v5398 = vrot.slane %v5395, 7
    %v5399 = vsel %vm136, %v5398, %v5394
    %vm5401 = vcmask 517120
    %5402 = vst.msk [vmem:[#allocation2] sm:$0x3] %vm5401, %v5399
    // Predicated region
    $region18: #{tpu_custom_call.1} parent=1 // pred_check
      _
    $region19: #{tpu_custom_call.1} parent=1 // pred_check_branch
      %5404 = sbr.rel (0) target = $region21
    $region20: #{tpu_custom_call.1} parent=1 // pred_region
      %s5406 = ssub.s32 32, 32
      %5407 = vsyncadd [#allocation3], %s5406
      %s5409 = sshll.u32 [#allocation2], 4
      %s5410 = int_to_ptr.vmem [resolvable:$true] %s5409
      %5412 = dma.vmem_to_hbm [thread:$0]  %s5410, 32, %s4, [#allocation3]
    $region21: #{tpu_custom_call.1} parent=1 // pred_fallthru
      _
    // Predicated region
    $region22: #{tpu_custom_call.1} parent=1 // pred_check
      _
    $region23: #{tpu_custom_call.1} parent=1 // pred_check_branch
      %5414 = sbr.rel (0) target = $region25
    $region24: #{tpu_custom_call.1} parent=1 // pred_region
      %5415 = dma.done [#allocation3], 32
    $region25: #{tpu_custom_call.1} parent=1 // pred_fallthru
      _
    %5416 = vsyncpa [#allocation3], 1

</llo_original>
